<compile_context>
chip_gen: v7x
topology: tpu7x:2x2x1
jax: 0.10.0
libtpu: 0.0.40
codegen_flags: <defaults>
</compile_context>

<pallas_src>
import functools

import numpy as np
import jax
import jax.numpy as jnp
from jax import lax
from jax.experimental import pallas as pl
from jax.experimental.pallas import tpu as pltpu


def _round_up(x, m):
  return ((x + m - 1) // m) * m


def _shifted_dft2_operator(h, w):
  """Real/imag parts of the fused 2-D "fftshift(fft2(.))" operator.

  M is (H*W, H*W) with M[r*W + c, u*W + v] = Fh_s[u, r] * Fw_s[c, v] so that
  flat_image @ M == flatten(fftshift(fft2(image), axes=(-2, -1))).
  Entries that are exactly zero in exact arithmetic are snapped, so spectrum
  bins whose imaginary part is mathematically zero (DC / Nyquist bins of a
  real input) come out exactly real.
  """
  def shifted_dft(n, roll_axis):
    k = np.arange(n)
    ang = -2.0 * np.pi * (np.outer(k, k) % n) / n
    fr = np.cos(ang)
    fi = np.sin(ang)
    fr[np.abs(fr) < 1e-9] = 0.0     # snap exact zeros (angles at ±pi/2)
    fi[np.abs(fi) < 1e-9] = 0.0     # snap exact zeros (angles at 0, pi)
    f = fr + 1j * fi
    return np.roll(f, n // 2, axis=roll_axis)   # fold fftshift into the DFT

  fh = shifted_dft(h, roll_axis=0)   # applied from the left (rows)
  fw = shifted_dft(w, roll_axis=1)   # applied from the right (cols)
  m = np.einsum("uh,wv->hwuv", fh, fw).reshape(h * w, h * w)
  return (jnp.asarray(m.real, dtype=jnp.float32),
          jnp.asarray(m.imag, dtype=jnp.float32))


def _atan2(y, x):
  """Elementwise atan2(y, x) from basic VPU ops (Cephes atanf polynomial)."""
  abs_y = jnp.abs(y)
  abs_x = jnp.abs(x)
  mx = jnp.maximum(abs_x, abs_y)
  mn = jnp.minimum(abs_x, abs_y)
  t = mn / jnp.maximum(mx, jnp.float32(1e-30))          # t in [0, 1]
  big = t > jnp.float32(0.4142135623730950)             # tan(pi/8)
  xr = jnp.where(big, (t - 1.0) / (t + 1.0), t)
  off = jnp.where(big, jnp.float32(np.pi / 4), jnp.float32(0.0))
  z = xr * xr
  poly = ((((8.05374449538e-2 * z - 1.38776856032e-1) * z
            + 1.99777106478e-1) * z - 3.33329491539e-1) * z * xr + xr)
  a = off + poly
  a = jnp.where(abs_y > abs_x, jnp.float32(np.pi / 2) - a, a)
  a = jnp.where(x < 0.0, jnp.float32(np.pi) - a, a)
  a = jnp.where(y < 0.0, -a, a)
  return a


def _fourier_loss_kernel(mr_ref, mi_ref, sr_ref, hr_ref, out_ref, *, tb, hw):
  mr = mr_ref[...]
  mi = mi_ref[...]

  def spec_diff(x):
    # Fused fftshift(fft2(.)): one matmul per real/imag part, full f32.
    zr = jnp.dot(x, mr, preferred_element_type=jnp.float32,
                 precision=lax.Precision.HIGHEST)
    zi = jnp.dot(x, mi, preferred_element_type=jnp.float32,
                 precision=lax.Precision.HIGHEST)
    mag = jnp.sqrt(zr * zr + zi * zi)
    ph = _atan2(zi, zr)
    return mag - ph           # only one (TB, HW) temp stays live per input

  absd = jnp.abs(spec_diff(sr_ref[...]) - spec_diff(hr_ref[...]))
  if tb == 8:
    psum = absd                                          # already (8, HW)
  else:
    psum = jnp.sum(absd.reshape(tb // 8, 8, hw), axis=0)  # sublane reduce
  out_ref[0, :, :] = psum     # lane-dense per-block partial; mean in wrapper


def fourier_difference_perceptual_loss(sr_image, hr_image):
  """mean | (|Fs|-|Fh|) - (angle(Fs)-angle(Fh)) |, F* = fftshift(fft2(.))."""
  B, C, H, W = sr_image.shape
  N = B * C
  HW = H * W
  if HW > 2048:
    # TODO(synk): separable row/col-DFT kernel for large images; the fused
    # (H*W, H*W) operator only makes sense for small spectra.
    raise NotImplementedError("fused 2-D DFT path requires H*W <= 2048")

  # Images batched per grid step (rows of the (TB, HW) @ (HW, HW) MXU matmul).
  tb = min(_round_up(N, 8), 256)
  n_pad = _round_up(N, tb)
  g = n_pad // tb

  sr_f = sr_image.reshape(N, HW).astype(jnp.float32)
  hr_f = hr_image.reshape(N, HW).astype(jnp.float32)
  if n_pad != N:
    pad = ((0, n_pad - N), (0, 0))     # zero rows contribute exactly 0
    sr_f = jnp.pad(sr_f, pad)
    hr_f = jnp.pad(hr_f, pad)

  mr, mi = _shifted_dft2_operator(H, W)
  kernel = functools.partial(_fourier_loss_kernel, tb=tb, hw=HW)

  partials = pl.pallas_call(
      kernel,
      out_shape=jax.ShapeDtypeStruct((g, 8, HW), jnp.float32),
      grid_spec=pltpu.PrefetchScalarGridSpec(
          num_scalar_prefetch=0,
          grid=(g,),
          in_specs=[
              pl.BlockSpec((HW, HW), lambda i: (0, 0)),   # DFT real part
              pl.BlockSpec((HW, HW), lambda i: (0, 0)),   # DFT imag part
              pl.BlockSpec((tb, HW), lambda i: (i, 0)),   # sr rows
              pl.BlockSpec((tb, HW), lambda i: (i, 0)),   # hr rows
          ],
          out_specs=pl.BlockSpec((1, 8, HW), lambda i: (i, 0, 0)),
      ),
      compiler_params=pltpu.CompilerParams(
          dimension_semantics=("parallel",)),
  )(mr, mi, sr_f, hr_f)

  return jnp.sum(partials) / jnp.float32(N * HW)


def _reference_loss_fft(sr_image, hr_image):
  """Pure-JAX mirror of the PyTorch module (jnp.fft based)."""
  def mag_phase(x):
    f = jnp.fft.fftshift(jnp.fft.fft2(x.astype(jnp.float32)), axes=(-2, -1))
    return jnp.abs(f), jnp.angle(f)
  sm, sp = mag_phase(sr_image)
  hm, hp = mag_phase(hr_image)
  return jnp.mean(jnp.abs((sm - hm) - (sp - hp)))


def _reference_loss_matmul(sr_image, hr_image):
  """Same math as the kernel (matmul DFT), written in plain jnp."""
  B, C, H, W = sr_image.shape
  mr, mi = _shifted_dft2_operator(H, W)

  def mag_phase(x):
    xf = x.reshape(B * C, H * W).astype(jnp.float32)
    zr = jnp.dot(xf, mr, precision=lax.Precision.HIGHEST)
    zi = jnp.dot(xf, mi, precision=lax.Precision.HIGHEST)
    return jnp.sqrt(zr * zr + zi * zi), jnp.arctan2(zi, zr)

  sm, sp = mag_phase(sr_image)
  hm, hp = mag_phase(hr_image)
  return jnp.mean(jnp.abs((sm - hm) - (sp - hp)))


if __name__ == "__main__":
  key = jax.random.PRNGKey(0)
  k1, k2 = jax.random.split(key)
  B, C, H, W = 2, 4, 16, 16
  sr = jax.random.normal(k1, (B, C, H, W), dtype=jnp.float32)
  hr = jax.random.normal(k2, (B, C, H, W), dtype=jnp.float32)

  loss = jax.block_until_ready(fourier_difference_perceptual_loss(sr, hr))

  # Tight check: identical mathematical definition (matmul DFT) in plain jnp.
  ref_tight = jax.block_until_ready(_reference_loss_matmul(sr, hr))
  if not np.isclose(float(loss), float(ref_tight), rtol=1e-3, atol=1e-2):
    raise AssertionError(
        f"mismatch vs matmul reference: kernel={float(loss)} "
        f"ref={float(ref_tight)}")

  # FFT check: angle() has a ±pi branch cut at spectrum bins whose imaginary
  # part is mathematically zero (the 4 DC/Nyquist bins of each real image);
  # numerically different but equally valid FFT roundings can land on either
  # side, each shifting the mean by up to 2*pi / (B*C*H*W).  Allow for all of
  # them on top of the normal numerical tolerance.
  branch_cut_slack = 2 * B * C * 4 * 2.0 * np.pi / (B * C * H * W)
  ref_fft = jax.block_until_ready(_reference_loss_fft(sr, hr))
  if not np.isclose(float(loss), float(ref_fft),
                    rtol=1e-3, atol=1e-2 + branch_cut_slack):
    raise AssertionError(
        f"mismatch vs fft reference: kernel={float(loss)} "
        f"ref={float(ref_fft)}")

  print("KERNEL_OK")
</pallas_src>

<mosaic_0001>
module attributes {stable_mosaic.version = 11 : i64} {
  func.func @_fourier_loss_kernel(%arg0: i32, %arg1: memref<256x256xf32, #tpu.memory_space<vmem>>, %arg2: memref<256x256xf32, #tpu.memory_space<vmem>>, %arg3: memref<8x256xf32, #tpu.memory_space<vmem>>, %arg4: memref<8x256xf32, #tpu.memory_space<vmem>>, %arg5: memref<1x8x256xf32, #tpu.memory_space<vmem>>) attributes {dimension_semantics = [#tpu.dimension_semantics<parallel>], iteration_bounds = array<i64: 1>, scalar_prefetch = 0 : i64, scratch_operands = 0 : i64, tpu.core_type = #tpu.core_type<tc>, window_params = [{pipeline_mode = #tpu.pipeline_mode<synchronous>, transform_indices = @transform_0, window_bounds = array<i64: 256, 256>}, {pipeline_mode = #tpu.pipeline_mode<synchronous>, transform_indices = @transform_1, window_bounds = array<i64: 256, 256>}, {transform_indices = @transform_2, window_bounds = array<i64: 8, 256>}, {transform_indices = @transform_3, window_bounds = array<i64: 8, 256>}, {transform_indices = @transform_4, window_bounds = array<i64: 1, 8, 256>}]} {
    %c0 = arith.constant 0 : index
    %c0_0 = arith.constant 0 : index
    %0 = vector.load %arg1[%c0, %c0_0] : memref<256x256xf32, #tpu.memory_space<vmem>>, vector<256x256xf32>
    %c0_1 = arith.constant 0 : index
    %c0_2 = arith.constant 0 : index
    %1 = vector.load %arg2[%c0_1, %c0_2] : memref<256x256xf32, #tpu.memory_space<vmem>>, vector<256x256xf32>
    %c0_3 = arith.constant 0 : index
    %c0_4 = arith.constant 0 : index
    %2 = vector.load %arg3[%c0_3, %c0_4] : memref<8x256xf32, #tpu.memory_space<vmem>>, vector<8x256xf32>
    %cst = arith.constant dense<0.000000e+00> : vector<8x256xf32>
    %3 = tpu.matmul %2, %0, %cst {dimension_numbers = #tpu.dot_dimension_numbers<[1], [0], [0], [1], [0, 0, 1, 1], [], []>, precision = #tpu.contract_precision<fp32>} : vector<8x256xf32>, vector<256x256xf32>, vector<8x256xf32> -> vector<8x256xf32>
    %cst_5 = arith.constant dense<0.000000e+00> : vector<8x256xf32>
    %4 = tpu.matmul %2, %1, %cst_5 {dimension_numbers = #tpu.dot_dimension_numbers<[1], [0], [0], [1], [0, 0, 1, 1], [], []>, precision = #tpu.contract_precision<fp32>} : vector<8x256xf32>, vector<256x256xf32>, vector<8x256xf32> -> vector<8x256xf32>
    %5 = arith.mulf %3, %3 : vector<8x256xf32>
    %6 = arith.mulf %4, %4 : vector<8x256xf32>
    %7 = arith.addf %5, %6 : vector<8x256xf32>
    %8 = math.sqrt %7 : vector<8x256xf32>
    %9 = math.absf %4 : vector<8x256xf32>
    %10 = math.absf %3 : vector<8x256xf32>
    %11 = arith.maximumf %10, %9 : vector<8x256xf32>
    %12 = arith.minimumf %10, %9 : vector<8x256xf32>
    %cst_6 = arith.constant 1.000000e-30 : f32
    %13 = vector.broadcast %cst_6 : f32 to vector<8x256xf32>
    %14 = arith.maximumf %11, %13 : vector<8x256xf32>
    %15 = arith.divf %12, %14 : vector<8x256xf32>
    %cst_7 = arith.constant 0.414213568 : f32
    %16 = vector.broadcast %cst_7 : f32 to vector<8x256xf32>
    %17 = arith.cmpf ogt, %15, %16 : vector<8x256xf32>
    %cst_8 = arith.constant 1.000000e+00 : f32
    %18 = vector.broadcast %cst_8 : f32 to vector<8x256xf32>
    %19 = arith.subf %15, %18 : vector<8x256xf32>
    %cst_9 = arith.constant 1.000000e+00 : f32
    %20 = vector.broadcast %cst_9 : f32 to vector<8x256xf32>
    %21 = arith.addf %15, %20 : vector<8x256xf32>
    %22 = arith.divf %19, %21 : vector<8x256xf32>
    %23 = arith.select %17, %22, %15 : vector<8x256xi1>, vector<8x256xf32>
    %cst_10 = arith.constant 0.785398185 : f32
    %cst_11 = arith.constant 0.000000e+00 : f32
    %24 = vector.broadcast %cst_10 : f32 to vector<8x256xf32>
    %25 = vector.broadcast %cst_11 : f32 to vector<8x256xf32>
    %26 = arith.select %17, %24, %25 : vector<8x256xi1>, vector<8x256xf32>
    %27 = arith.mulf %23, %23 : vector<8x256xf32>
    %cst_12 = arith.constant 0.0805374458 : f32
    %28 = vector.broadcast %cst_12 : f32 to vector<8x256xf32>
    %29 = arith.mulf %28, %27 : vector<8x256xf32>
    %cst_13 = arith.constant 0.138776854 : f32
    %30 = vector.broadcast %cst_13 : f32 to vector<8x256xf32>
    %31 = arith.subf %29, %30 : vector<8x256xf32>
    %32 = arith.mulf %31, %27 : vector<8x256xf32>
    %cst_14 = arith.constant 0.199777111 : f32
    %33 = vector.broadcast %cst_14 : f32 to vector<8x256xf32>
    %34 = arith.addf %32, %33 : vector<8x256xf32>
    %35 = arith.mulf %34, %27 : vector<8x256xf32>
    %cst_15 = arith.constant 0.333329499 : f32
    %36 = vector.broadcast %cst_15 : f32 to vector<8x256xf32>
    %37 = arith.subf %35, %36 : vector<8x256xf32>
    %38 = arith.mulf %37, %27 : vector<8x256xf32>
    %39 = arith.mulf %38, %23 : vector<8x256xf32>
    %40 = arith.addf %39, %23 : vector<8x256xf32>
    %41 = arith.addf %26, %40 : vector<8x256xf32>
    %42 = arith.cmpf ogt, %9, %10 : vector<8x256xf32>
    %cst_16 = arith.constant 1.57079637 : f32
    %43 = vector.broadcast %cst_16 : f32 to vector<8x256xf32>
    %44 = arith.subf %43, %41 : vector<8x256xf32>
    %45 = arith.select %42, %44, %41 : vector<8x256xi1>, vector<8x256xf32>
    %cst_17 = arith.constant 0.000000e+00 : f32
    %46 = vector.broadcast %cst_17 : f32 to vector<8x256xf32>
    %47 = arith.cmpf olt, %3, %46 : vector<8x256xf32>
    %cst_18 = arith.constant 3.14159274 : f32
    %48 = vector.broadcast %cst_18 : f32 to vector<8x256xf32>
    %49 = arith.subf %48, %45 : vector<8x256xf32>
    %50 = arith.select %47, %49, %45 : vector<8x256xi1>, vector<8x256xf32>
    %cst_19 = arith.constant 0.000000e+00 : f32
    %51 = vector.broadcast %cst_19 : f32 to vector<8x256xf32>
    %52 = arith.cmpf olt, %4, %51 : vector<8x256xf32>
    %cst_20 = arith.constant 0.000000e+00 : f32
    %53 = vector.broadcast %cst_20 : f32 to vector<8x256xf32>
    %54 = arith.subf %53, %50 : vector<8x256xf32>
    %55 = arith.select %52, %54, %50 : vector<8x256xi1>, vector<8x256xf32>
    %56 = arith.subf %8, %55 : vector<8x256xf32>
    %c0_21 = arith.constant 0 : index
    %c0_22 = arith.constant 0 : index
    %57 = vector.load %arg4[%c0_21, %c0_22] : memref<8x256xf32, #tpu.memory_space<vmem>>, vector<8x256xf32>
    %cst_23 = arith.constant dense<0.000000e+00> : vector<8x256xf32>
    %58 = tpu.matmul %57, %0, %cst_23 {dimension_numbers = #tpu.dot_dimension_numbers<[1], [0], [0], [1], [0, 0, 1, 1], [], []>, precision = #tpu.contract_precision<fp32>} : vector<8x256xf32>, vector<256x256xf32>, vector<8x256xf32> -> vector<8x256xf32>
    %cst_24 = arith.constant dense<0.000000e+00> : vector<8x256xf32>
    %59 = tpu.matmul %57, %1, %cst_24 {dimension_numbers = #tpu.dot_dimension_numbers<[1], [0], [0], [1], [0, 0, 1, 1], [], []>, precision = #tpu.contract_precision<fp32>} : vector<8x256xf32>, vector<256x256xf32>, vector<8x256xf32> -> vector<8x256xf32>
    %60 = arith.mulf %58, %58 : vector<8x256xf32>
    %61 = arith.mulf %59, %59 : vector<8x256xf32>
    %62 = arith.addf %60, %61 : vector<8x256xf32>
    %63 = math.sqrt %62 : vector<8x256xf32>
    %64 = math.absf %59 : vector<8x256xf32>
    %65 = math.absf %58 : vector<8x256xf32>
    %66 = arith.maximumf %65, %64 : vector<8x256xf32>
    %67 = arith.minimumf %65, %64 : vector<8x256xf32>
    %cst_25 = arith.constant 1.000000e-30 : f32
    %68 = vector.broadcast %cst_25 : f32 to vector<8x256xf32>
    %69 = arith.maximumf %66, %68 : vector<8x256xf32>
    %70 = arith.divf %67, %69 : vector<8x256xf32>
    %cst_26 = arith.constant 0.414213568 : f32
    %71 = vector.broadcast %cst_26 : f32 to vector<8x256xf32>
    %72 = arith.cmpf ogt, %70, %71 : vector<8x256xf32>
    %cst_27 = arith.constant 1.000000e+00 : f32
    %73 = vector.broadcast %cst_27 : f32 to vector<8x256xf32>
    %74 = arith.subf %70, %73 : vector<8x256xf32>
    %cst_28 = arith.constant 1.000000e+00 : f32
    %75 = vector.broadcast %cst_28 : f32 to vector<8x256xf32>
    %76 = arith.addf %70, %75 : vector<8x256xf32>
    %77 = arith.divf %74, %76 : vector<8x256xf32>
    %78 = arith.select %72, %77, %70 : vector<8x256xi1>, vector<8x256xf32>
    %cst_29 = arith.constant 0.785398185 : f32
    %cst_30 = arith.constant 0.000000e+00 : f32
    %79 = vector.broadcast %cst_29 : f32 to vector<8x256xf32>
    %80 = vector.broadcast %cst_30 : f32 to vector<8x256xf32>
    %81 = arith.select %72, %79, %80 : vector<8x256xi1>, vector<8x256xf32>
    %82 = arith.mulf %78, %78 : vector<8x256xf32>
    %cst_31 = arith.constant 0.0805374458 : f32
    %83 = vector.broadcast %cst_31 : f32 to vector<8x256xf32>
    %84 = arith.mulf %83, %82 : vector<8x256xf32>
    %cst_32 = arith.constant 0.138776854 : f32
    %85 = vector.broadcast %cst_32 : f32 to vector<8x256xf32>
    %86 = arith.subf %84, %85 : vector<8x256xf32>
    %87 = arith.mulf %86, %82 : vector<8x256xf32>
    %cst_33 = arith.constant 0.199777111 : f32
    %88 = vector.broadcast %cst_33 : f32 to vector<8x256xf32>
    %89 = arith.addf %87, %88 : vector<8x256xf32>
    %90 = arith.mulf %89, %82 : vector<8x256xf32>
    %cst_34 = arith.constant 0.333329499 : f32
    %91 = vector.broadcast %cst_34 : f32 to vector<8x256xf32>
    %92 = arith.subf %90, %91 : vector<8x256xf32>
    %93 = arith.mulf %92, %82 : vector<8x256xf32>
    %94 = arith.mulf %93, %78 : vector<8x256xf32>
    %95 = arith.addf %94, %78 : vector<8x256xf32>
    %96 = arith.addf %81, %95 : vector<8x256xf32>
    %97 = arith.cmpf ogt, %64, %65 : vector<8x256xf32>
    %cst_35 = arith.constant 1.57079637 : f32
    %98 = vector.broadcast %cst_35 : f32 to vector<8x256xf32>
    %99 = arith.subf %98, %96 : vector<8x256xf32>
    %100 = arith.select %97, %99, %96 : vector<8x256xi1>, vector<8x256xf32>
    %cst_36 = arith.constant 0.000000e+00 : f32
    %101 = vector.broadcast %cst_36 : f32 to vector<8x256xf32>
    %102 = arith.cmpf olt, %58, %101 : vector<8x256xf32>
    %cst_37 = arith.constant 3.14159274 : f32
    %103 = vector.broadcast %cst_37 : f32 to vector<8x256xf32>
    %104 = arith.subf %103, %100 : vector<8x256xf32>
    %105 = arith.select %102, %104, %100 : vector<8x256xi1>, vector<8x256xf32>
    %cst_38 = arith.constant 0.000000e+00 : f32
    %106 = vector.broadcast %cst_38 : f32 to vector<8x256xf32>
    %107 = arith.cmpf olt, %59, %106 : vector<8x256xf32>
    %cst_39 = arith.constant 0.000000e+00 : f32
    %108 = vector.broadcast %cst_39 : f32 to vector<8x256xf32>
    %109 = arith.subf %108, %105 : vector<8x256xf32>
    %110 = arith.select %107, %109, %105 : vector<8x256xi1>, vector<8x256xf32>
    %111 = arith.subf %63, %110 : vector<8x256xf32>
    %112 = arith.subf %56, %111 : vector<8x256xf32>
    %113 = math.absf %112 : vector<8x256xf32>
    %c0_40 = arith.constant 0 : index
    %c0_41 = arith.constant 0 : index
    %c0_42 = arith.constant 0 : index
    %114 = vector.load %arg5[%c0_40, %c0_41, %c0_42] : memref<1x8x256xf32, #tpu.memory_space<vmem>>, vector<1x8x256xf32>
    %115 = vector.shape_cast %114 : vector<1x8x256xf32> to vector<8x256xf32>
    %116 = vector.shape_cast %113 : vector<8x256xf32> to vector<1x8x256xf32>
    tpu.vector_store %arg5[%c0_40, %c0_41, %c0_42], %116 {strides = array<i32>} : memref<1x8x256xf32, #tpu.memory_space<vmem>>, vector<1x8x256xf32>,
    return
  }
  func.func @transform_0(%arg0: i32) -> (i32, i32) {
    %c0_i32 = arith.constant 0 : i32
    %c0_i32_0 = arith.constant 0 : i32
    %c0_i32_1 = arith.constant 0 : i32
    return %c0_i32, %c0_i32_0 : i32, i32
  }
  func.func @transform_1(%arg0: i32) -> (i32, i32) {
    %c0_i32 = arith.constant 0 : i32
    %c0_i32_0 = arith.constant 0 : i32
    %c0_i32_1 = arith.constant 0 : i32
    return %c0_i32, %c0_i32_0 : i32, i32
  }
  func.func @transform_2(%arg0: i32) -> (i32, i32) {
    %c0_i32 = arith.constant 0 : i32
    %c0_i32_0 = arith.constant 0 : i32
    return %arg0, %c0_i32 : i32, i32
  }
  func.func @transform_3(%arg0: i32) -> (i32, i32) {
    %c0_i32 = arith.constant 0 : i32
    %c0_i32_0 = arith.constant 0 : i32
    return %arg0, %c0_i32 : i32, i32
  }
  func.func @transform_4(%arg0: i32) -> (i32, i32, i32) {
    %c0_i32 = arith.constant 0 : i32
    %c0_i32_0 = arith.constant 0 : i32
    %c0_i32_1 = arith.constant 0 : i32
    return %arg0, %c0_i32, %c0_i32_0 : i32, i32, i32
  }
}

</mosaic_0001>

<llo_original>
// kernel: tpu_custom_call.1
$region0: #{tpu_custom_call.1}
  #allocation0 [shape = 'u32[]', space=smem, size = 0x4, offset = 0x4, fixed_abs, tag = 'smem constant byte address 0x4 - core index']
  #allocation1 [shape = 'u32[144,128]{1,0:T(1,128)}', space=vmem, size = 0x12000, scoped, tag = 'internal scratch']
  %s0 = inlined_call_operand.hbm [shape: f32[256,256], index: 0, kind: input, shape index: {}]
  %s1 = inlined_call_operand.hbm [shape: f32[256,256], index: 1, kind: input, shape index: {}]
  %s2 = inlined_call_operand.hbm [shape: f32[8,256], index: 2, kind: input, shape index: {}]
  %s3 = inlined_call_operand.hbm [shape: f32[8,256], index: 3, kind: input, shape index: {}]
  %s4 = inlined_call_operand.hbm [shape: f32[1,8,256], index: 4, kind: output, shape index: {}]
  %s5 = sld [smem:[#allocation0]]
  $region42: #{tpu_custom_call.1} parent=0
    _
  %s7 = ssub.s32 1, %s5
  %s8 = scalar_select 0, %s7, %s5
  $region1: #{tpu_custom_call.1} parent=0
    #allocation2 [shape = 'u8[262144]{0}', space=vmem, size = 0x40000, scoped, tag = 'input window, operand 0, single buffered']
    #allocation3 [shape = 's32[1]{0}', space=sflag, size = 0x4, scoped, tag = 'scoped memory for tpu_custom_call.1']
    #allocation4 [shape = 's32[1]{0}', space=sflag, size = 0x4, scoped, tag = 'scoped memory for tpu_custom_call.1']
    #allocation5 [shape = 'u8[262144]{0}', space=vmem, size = 0x40000, scoped, tag = 'input window, operand 1, single buffered']
    #allocation6 [shape = 's32[1]{0}', space=sflag, size = 0x4, scoped, tag = 'scoped memory for tpu_custom_call.1']
    #allocation7 [shape = 'u8[8192]{0}', space=vmem, size = 0x2000, scoped, tag = 'input window, operand 2, single buffered']
    #allocation8 [shape = 'u8[8192]{0}', space=vmem, size = 0x2000, scoped, tag = 'input window, operand 3, single buffered']
    #allocation9 [shape = 's32[1]{0}', space=sflag, size = 0x4, scoped, tag = 'scoped memory for tpu_custom_call.1']
    #allocation10 [shape = 'u8[8192]{0}', space=vmem, size = 0x2000, scoped, tag = 'output window, operand 0, single buffered']
    %9 = vsyncpa [#allocation3], 0
    %10 = vsyncpa [#allocation6], 0
    %11 = vsyncpa [#allocation9], 0
    %12 = vsyncpa [#allocation4], 0
    // Predicated region
    $region2: #{tpu_custom_call.1} parent=1 // pred_check
      _
    $region3: #{tpu_custom_call.1} parent=1 // pred_check_branch
      %14 = sbr.rel (0) target = $region5
    $region4: #{tpu_custom_call.1} parent=1 // pred_region
      %s16 = ssub.s32 8192, 8192
      %17 = vsyncadd [#allocation3], %s16
      %s18 = sshll.u32 [#allocation2], 4
      %s19 = int_to_ptr.vmem [resolvable:$true] %s18
      %24 = dma.hbm_to_vmem [thread:$0]  %s0, 8192, %s19, [#allocation3], 256, 256, 16
    $region5: #{tpu_custom_call.1} parent=1 // pred_fallthru
      _
    // Predicated region
    $region6: #{tpu_custom_call.1} parent=1 // pred_check
      _
    $region7: #{tpu_custom_call.1} parent=1 // pred_check_branch
      %26 = sbr.rel (0) target = $region9
    $region8: #{tpu_custom_call.1} parent=1 // pred_region
      %s28 = ssub.s32 8192, 8192
      %29 = vsyncadd [#allocation6], %s28
      %s30 = sshll.u32 [#allocation5], 4
      %s31 = int_to_ptr.vmem [resolvable:$true] %s30
      %36 = dma.hbm_to_vmem [thread:$0]  %s1, 8192, %s31, [#allocation6], 256, 256, 16
    $region9: #{tpu_custom_call.1} parent=1 // pred_fallthru
      _
    // Predicated region
    $region10: #{tpu_custom_call.1} parent=1 // pred_check
      _
    $region11: #{tpu_custom_call.1} parent=1 // pred_check_branch
      %38 = sbr.rel (0) target = $region13
    $region12: #{tpu_custom_call.1} parent=1 // pred_region
      %s40 = ssub.s32 256, 256
      %41 = vsyncadd [#allocation6], %s40
      %s43 = sshll.u32 [#allocation7], 4
      %s44 = int_to_ptr.vmem [resolvable:$true] %s43
      %46 = dma.hbm_to_vmem [thread:$0]  %s2, 256, %s44, [#allocation6]
    $region13: #{tpu_custom_call.1} parent=1 // pred_fallthru
      _
    // Predicated region
    $region14: #{tpu_custom_call.1} parent=1 // pred_check
      _
    $region15: #{tpu_custom_call.1} parent=1 // pred_check_branch
      %48 = sbr.rel (0) target = $region17
    $region16: #{tpu_custom_call.1} parent=1 // pred_region
      %s50 = ssub.s32 256, 256
      %51 = vsyncadd [#allocation9], %s50
      %s53 = sshll.u32 [#allocation8], 4
      %s54 = int_to_ptr.vmem [resolvable:$true] %s53
      %56 = dma.hbm_to_vmem [thread:$0]  %s3, 256, %s54, [#allocation9]
    $region17: #{tpu_custom_call.1} parent=1 // pred_fallthru
      _
    // Predicated region
    $region18: #{tpu_custom_call.1} parent=1 // pred_check
      _
    $region19: #{tpu_custom_call.1} parent=1 // pred_check_branch
      %58 = sbr.rel (0) target = $region21
    $region20: #{tpu_custom_call.1} parent=1 // pred_region
      %59 = dma.done [#allocation3], 8192
    $region21: #{tpu_custom_call.1} parent=1 // pred_fallthru
      _
    // Predicated region
    $region22: #{tpu_custom_call.1} parent=1 // pred_check
      _
    $region23: #{tpu_custom_call.1} parent=1 // pred_check_branch
      %61 = sbr.rel (0) target = $region25
    $region24: #{tpu_custom_call.1} parent=1 // pred_region
      %62 = dma.done [#allocation6], 8192
    $region25: #{tpu_custom_call.1} parent=1 // pred_fallthru
      _
    // Predicated region
    $region26: #{tpu_custom_call.1} parent=1 // pred_check
      _
    $region27: #{tpu_custom_call.1} parent=1 // pred_check_branch
      %64 = sbr.rel (0) target = $region29
    $region28: #{tpu_custom_call.1} parent=1 // pred_region
      %65 = dma.done [#allocation6], 256
    $region29: #{tpu_custom_call.1} parent=1 // pred_fallthru
      _
    // Predicated region
    $region30: #{tpu_custom_call.1} parent=1 // pred_check
      _
    $region31: #{tpu_custom_call.1} parent=1 // pred_check_branch
      %67 = sbr.rel (0) target = $region33
    $region32: #{tpu_custom_call.1} parent=1 // pred_region
      %68 = dma.done [#allocation9], 256
    $region33: #{tpu_custom_call.1} parent=1 // pred_fallthru
      _
    %v69 = vld [vmem:[#allocation2] sm:$0xff]
    %v70 = vld [vmem:[#allocation2 + $0x8] sm:$0xff]
    %v71 = vld [vmem:[#allocation2 + $0x10] sm:$0xff]
    %v72 = vld [vmem:[#allocation2 + $0x18] sm:$0xff]
    %v73 = vld [vmem:[#allocation2 + $0x20] sm:$0xff]
    %v74 = vld [vmem:[#allocation2 + $0x28] sm:$0xff]
    %v75 = vld [vmem:[#allocation2 + $0x30] sm:$0xff]
    %v76 = vld [vmem:[#allocation2 + $0x38] sm:$0xff]
    %v77 = vld [vmem:[#allocation2 + $0x40] sm:$0xff]
    %v78 = vld [vmem:[#allocation2 + $0x48] sm:$0xff]
    %v79 = vld [vmem:[#allocation2 + $0x50] sm:$0xff]
    %v80 = vld [vmem:[#allocation2 + $0x58] sm:$0xff]
    %v81 = vld [vmem:[#allocation2 + $0x60] sm:$0xff]
    %v82 = vld [vmem:[#allocation2 + $0x68] sm:$0xff]
    %v83 = vld [vmem:[#allocation2 + $0x70] sm:$0xff]
    %v84 = vld [vmem:[#allocation2 + $0x78] sm:$0xff]
    %v85 = vld [vmem:[#allocation2 + $0x80] sm:$0xff]
    %v86 = vld [vmem:[#allocation2 + $0x88] sm:$0xff]
    %v87 = vld [vmem:[#allocation2 + $0x90] sm:$0xff]
    %v88 = vld [vmem:[#allocation2 + $0x98] sm:$0xff]
    %v89 = vld [vmem:[#allocation2 + $0xa0] sm:$0xff]
    %v90 = vld [vmem:[#allocation2 + $0xa8] sm:$0xff]
    %v91 = vld [vmem:[#allocation2 + $0xb0] sm:$0xff]
    %v92 = vld [vmem:[#allocation2 + $0xb8] sm:$0xff]
    %v93 = vld [vmem:[#allocation2 + $0xc0] sm:$0xff]
    %v94 = vld [vmem:[#allocation2 + $0xc8] sm:$0xff]
    %v95 = vld [vmem:[#allocation2 + $0xd0] sm:$0xff]
    %v96 = vld [vmem:[#allocation2 + $0xd8] sm:$0xff]
    %v97 = vld [vmem:[#allocation2 + $0xe0] sm:$0xff]
    %v98 = vld [vmem:[#allocation2 + $0xe8] sm:$0xff]
    %v99 = vld [vmem:[#allocation2 + $0xf0] sm:$0xff]
    %v100 = vld [vmem:[#allocation2 + $0xf8] sm:$0xff]
    %v101 = vld [vmem:[#allocation2 + $0x100] sm:$0xff]
    %v102 = vld [vmem:[#allocation2 + $0x108] sm:$0xff]
    %v103 = vld [vmem:[#allocation2 + $0x110] sm:$0xff]
    %v104 = vld [vmem:[#allocation2 + $0x118] sm:$0xff]
    %v105 = vld [vmem:[#allocation2 + $0x120] sm:$0xff]
    %v106 = vld [vmem:[#allocation2 + $0x128] sm:$0xff]
    %v107 = vld [vmem:[#allocation2 + $0x130] sm:$0xff]
    %v108 = vld [vmem:[#allocation2 + $0x138] sm:$0xff]
    %v109 = vld [vmem:[#allocation2 + $0x140] sm:$0xff]
    %v110 = vld [vmem:[#allocation2 + $0x148] sm:$0xff]
    %v111 = vld [vmem:[#allocation2 + $0x150] sm:$0xff]
    %v112 = vld [vmem:[#allocation2 + $0x158] sm:$0xff]
    %v113 = vld [vmem:[#allocation2 + $0x160] sm:$0xff]
    %v114 = vld [vmem:[#allocation2 + $0x168] sm:$0xff]
    %v115 = vld [vmem:[#allocation2 + $0x170] sm:$0xff]
    %v116 = vld [vmem:[#allocation2 + $0x178] sm:$0xff]
    %v117 = vld [vmem:[#allocation2 + $0x180] sm:$0xff]
    %v118 = vld [vmem:[#allocation2 + $0x188] sm:$0xff]
    %v119 = vld [vmem:[#allocation2 + $0x190] sm:$0xff]
    %v120 = vld [vmem:[#allocation2 + $0x198] sm:$0xff]
    %v121 = vld [vmem:[#allocation2 + $0x1a0] sm:$0xff]
    %v122 = vld [vmem:[#allocation2 + $0x1a8] sm:$0xff]
    %v123 = vld [vmem:[#allocation2 + $0x1b0] sm:$0xff]
    %v124 = vld [vmem:[#allocation2 + $0x1b8] sm:$0xff]
    %v125 = vld [vmem:[#allocation2 + $0x1c0] sm:$0xff]
    %v126 = vld [vmem:[#allocation2 + $0x1c8] sm:$0xff]
    %v127 = vld [vmem:[#allocation2 + $0x1d0] sm:$0xff]
    %v128 = vld [vmem:[#allocation2 + $0x1d8] sm:$0xff]
    %v129 = vld [vmem:[#allocation2 + $0x1e0] sm:$0xff]
    %v130 = vld [vmem:[#allocation2 + $0x1e8] sm:$0xff]
    %v131 = vld [vmem:[#allocation2 + $0x1f0] sm:$0xff]
    %v132 = vld [vmem:[#allocation2 + $0x1f8] sm:$0xff]
    %v133 = vld [vmem:[#allocation5] sm:$0xff]
    %v134 = vld [vmem:[#allocation5 + $0x8] sm:$0xff]
    %v135 = vld [vmem:[#allocation5 + $0x10] sm:$0xff]
    %v136 = vld [vmem:[#allocation5 + $0x18] sm:$0xff]
    %v137 = vld [vmem:[#allocation5 + $0x20] sm:$0xff]
    %v138 = vld [vmem:[#allocation5 + $0x28] sm:$0xff]
    %v139 = vld [vmem:[#allocation5 + $0x30] sm:$0xff]
    %v140 = vld [vmem:[#allocation5 + $0x38] sm:$0xff]
    %v141 = vld [vmem:[#allocation5 + $0x40] sm:$0xff]
    %v142 = vld [vmem:[#allocation5 + $0x48] sm:$0xff]
    %v143 = vld [vmem:[#allocation5 + $0x50] sm:$0xff]
    %v144 = vld [vmem:[#allocation5 + $0x58] sm:$0xff]
    %v145 = vld [vmem:[#allocation5 + $0x60] sm:$0xff]
    %v146 = vld [vmem:[#allocation5 + $0x68] sm:$0xff]
    %v147 = vld [vmem:[#allocation5 + $0x70] sm:$0xff]
    %v148 = vld [vmem:[#allocation5 + $0x78] sm:$0xff]
    %v149 = vld [vmem:[#allocation5 + $0x80] sm:$0xff]
    %v150 = vld [vmem:[#allocation5 + $0x88] sm:$0xff]
    %v151 = vld [vmem:[#allocation5 + $0x90] sm:$0xff]
    %v152 = vld [vmem:[#allocation5 + $0x98] sm:$0xff]
    %v153 = vld [vmem:[#allocation5 + $0xa0] sm:$0xff]
    %v154 = vld [vmem:[#allocation5 + $0xa8] sm:$0xff]
    %v155 = vld [vmem:[#allocation5 + $0xb0] sm:$0xff]
    %v156 = vld [vmem:[#allocation5 + $0xb8] sm:$0xff]
    %v157 = vld [vmem:[#allocation5 + $0xc0] sm:$0xff]
    %v158 = vld [vmem:[#allocation5 + $0xc8] sm:$0xff]
    %v159 = vld [vmem:[#allocation5 + $0xd0] sm:$0xff]
    %v160 = vld [vmem:[#allocation5 + $0xd8] sm:$0xff]
    %v161 = vld [vmem:[#allocation5 + $0xe0] sm:$0xff]
    %v162 = vld [vmem:[#allocation5 + $0xe8] sm:$0xff]
    %v163 = vld [vmem:[#allocation5 + $0xf0] sm:$0xff]
    %v164 = vld [vmem:[#allocation5 + $0xf8] sm:$0xff]
    %v165 = vld [vmem:[#allocation5 + $0x100] sm:$0xff]
    %v166 = vld [vmem:[#allocation5 + $0x108] sm:$0xff]
    %v167 = vld [vmem:[#allocation5 + $0x110] sm:$0xff]
    %v168 = vld [vmem:[#allocation5 + $0x118] sm:$0xff]
    %v169 = vld [vmem:[#allocation5 + $0x120] sm:$0xff]
    %v170 = vld [vmem:[#allocation5 + $0x128] sm:$0xff]
    %v171 = vld [vmem:[#allocation5 + $0x130] sm:$0xff]
    %v172 = vld [vmem:[#allocation5 + $0x138] sm:$0xff]
    %v173 = vld [vmem:[#allocation5 + $0x140] sm:$0xff]
    %v174 = vld [vmem:[#allocation5 + $0x148] sm:$0xff]
    %v175 = vld [vmem:[#allocation5 + $0x150] sm:$0xff]
    %v176 = vld [vmem:[#allocation5 + $0x158] sm:$0xff]
    %v177 = vld [vmem:[#allocation5 + $0x160] sm:$0xff]
    %v178 = vld [vmem:[#allocation5 + $0x168] sm:$0xff]
    %v179 = vld [vmem:[#allocation5 + $0x170] sm:$0xff]
    %v180 = vld [vmem:[#allocation5 + $0x178] sm:$0xff]
    %v181 = vld [vmem:[#allocation5 + $0x180] sm:$0xff]
    %v182 = vld [vmem:[#allocation5 + $0x188] sm:$0xff]
    %v183 = vld [vmem:[#allocation5 + $0x190] sm:$0xff]
    %v184 = vld [vmem:[#allocation5 + $0x198] sm:$0xff]
    %v185 = vld [vmem:[#allocation5 + $0x1a0] sm:$0xff]
    %v186 = vld [vmem:[#allocation5 + $0x1a8] sm:$0xff]
    %v187 = vld [vmem:[#allocation5 + $0x1b0] sm:$0xff]
    %v188 = vld [vmem:[#allocation5 + $0x1b8] sm:$0xff]
    %v189 = vld [vmem:[#allocation5 + $0x1c0] sm:$0xff]
    %v190 = vld [vmem:[#allocation5 + $0x1c8] sm:$0xff]
    %v191 = vld [vmem:[#allocation5 + $0x1d0] sm:$0xff]
    %v192 = vld [vmem:[#allocation5 + $0x1d8] sm:$0xff]
    %v193 = vld [vmem:[#allocation5 + $0x1e0] sm:$0xff]
    %v194 = vld [vmem:[#allocation5 + $0x1e8] sm:$0xff]
    %v195 = vld [vmem:[#allocation5 + $0x1f0] sm:$0xff]
    %v196 = vld [vmem:[#allocation5 + $0x1f8] sm:$0xff]
    %v197 = vld [vmem:[#allocation7] sm:$0xff]
    %v198 = vld [vmem:[#allocation7 + $0x8] sm:$0xff]
    %v199 = vand.u32 %v70, 4294901760
    %200 = vmatprep.subr.mxu0 %v199
    %v201 = vand.u32 %v69, 4294901760
    %202 = vmatpush1.msra.mxu0 %v201
    %v203 = vand.u32 %v72, 4294901760
    %204 = vmatprep.subr.mxu0 %v203
    %v205 = vand.u32 %v71, 4294901760
    %206 = vmatpush1.msra.mxu0 %v205
    %v207 = vand.u32 %v74, 4294901760
    %208 = vmatprep.subr.mxu0 %v207
    %v209 = vand.u32 %v73, 4294901760
    %210 = vmatpush1.msra.mxu0 %v209
    %v211 = vand.u32 %v76, 4294901760
    %212 = vmatprep.subr.mxu0 %v211
    %v213 = vand.u32 %v75, 4294901760
    %214 = vmatpush1.msra.mxu0 %v213
    %v215 = vand.u32 %v78, 4294901760
    %216 = vmatprep.subr.mxu0 %v215
    %v217 = vand.u32 %v77, 4294901760
    %218 = vmatpush1.msra.mxu0 %v217
    %v219 = vand.u32 %v80, 4294901760
    %220 = vmatprep.subr.mxu0 %v219
    %v221 = vand.u32 %v79, 4294901760
    %222 = vmatpush1.msra.mxu0 %v221
    %v223 = vand.u32 %v82, 4294901760
    %224 = vmatprep.subr.mxu0 %v223
    %v225 = vand.u32 %v81, 4294901760
    %226 = vmatpush1.msra.mxu0 %v225
    %v227 = vand.u32 %v84, 4294901760
    %228 = vmatprep.subr.mxu0 %v227
    %v229 = vand.u32 %v83, 4294901760
    %230 = vmatpush1.msra.mxu0 %v229
    %v231 = vand.u32 %v86, 4294901760
    %232 = vmatprep.subr.mxu0 %v231
    %v233 = vand.u32 %v85, 4294901760
    %234 = vmatpush1.msra.mxu0 %v233
    %v235 = vand.u32 %v88, 4294901760
    %236 = vmatprep.subr.mxu0 %v235
    %v237 = vand.u32 %v87, 4294901760
    %238 = vmatpush1.msra.mxu0 %v237
    %v239 = vand.u32 %v90, 4294901760
    %240 = vmatprep.subr.mxu0 %v239
    %v241 = vand.u32 %v89, 4294901760
    %242 = vmatpush1.msra.mxu0 %v241
    %v243 = vand.u32 %v92, 4294901760
    %244 = vmatprep.subr.mxu0 %v243
    %v245 = vand.u32 %v91, 4294901760
    %246 = vmatpush1.msra.mxu0 %v245
    %v247 = vand.u32 %v94, 4294901760
    %248 = vmatprep.subr.mxu0 %v247
    %v249 = vand.u32 %v93, 4294901760
    %250 = vmatpush1.msra.mxu0 %v249
    %v251 = vand.u32 %v96, 4294901760
    %252 = vmatprep.subr.mxu0 %v251
    %v253 = vand.u32 %v95, 4294901760
    %254 = vmatpush1.msra.mxu0 %v253
    %v255 = vand.u32 %v98, 4294901760
    %256 = vmatprep.subr.mxu0 %v255
    %v257 = vand.u32 %v97, 4294901760
    %258 = vmatpush1.msra.mxu0 %v257
    %v259 = vand.u32 %v100, 4294901760
    %260 = vmatprep.subr.mxu0 %v259
    %v261 = vand.u32 %v99, 4294901760
    %262 = vmatpush1.msra.mxu0 %v261
    %v263 = vand.u32 %v102, 4294901760
    %264 = vmatprep.subr.mxu0 %v263
    %v265 = vand.u32 %v101, 4294901760
    %266 = vmatpush1.msra.mxu0 %v265
    %v267 = vand.u32 %v104, 4294901760
    %268 = vmatprep.subr.mxu0 %v267
    %v269 = vand.u32 %v103, 4294901760
    %270 = vmatpush1.msra.mxu0 %v269
    %v271 = vand.u32 %v106, 4294901760
    %272 = vmatprep.subr.mxu0 %v271
    %v273 = vand.u32 %v105, 4294901760
    %274 = vmatpush1.msra.mxu0 %v273
    %v275 = vand.u32 %v108, 4294901760
    %276 = vmatprep.subr.mxu0 %v275
    %v277 = vand.u32 %v107, 4294901760
    %278 = vmatpush1.msra.mxu0 %v277
    %v279 = vand.u32 %v110, 4294901760
    %280 = vmatprep.subr.mxu0 %v279
    %v281 = vand.u32 %v109, 4294901760
    %282 = vmatpush1.msra.mxu0 %v281
    %v283 = vand.u32 %v112, 4294901760
    %284 = vmatprep.subr.mxu0 %v283
    %v285 = vand.u32 %v111, 4294901760
    %286 = vmatpush1.msra.mxu0 %v285
    %v287 = vand.u32 %v114, 4294901760
    %288 = vmatprep.subr.mxu0 %v287
    %v289 = vand.u32 %v113, 4294901760
    %290 = vmatpush1.msra.mxu0 %v289
    %v291 = vand.u32 %v116, 4294901760
    %292 = vmatprep.subr.mxu0 %v291
    %v293 = vand.u32 %v115, 4294901760
    %294 = vmatpush1.msra.mxu0 %v293
    %v295 = vand.u32 %v118, 4294901760
    %296 = vmatprep.subr.mxu0 %v295
    %v297 = vand.u32 %v117, 4294901760
    %298 = vmatpush1.msra.mxu0 %v297
    %v299 = vand.u32 %v120, 4294901760
    %300 = vmatprep.subr.mxu0 %v299
    %v301 = vand.u32 %v119, 4294901760
    %302 = vmatpush1.msra.mxu0 %v301
    %v303 = vand.u32 %v122, 4294901760
    %304 = vmatprep.subr.mxu0 %v303
    %v305 = vand.u32 %v121, 4294901760
    %306 = vmatpush1.msra.mxu0 %v305
    %v307 = vand.u32 %v124, 4294901760
    %308 = vmatprep.subr.mxu0 %v307
    %v309 = vand.u32 %v123, 4294901760
    %310 = vmatpush1.msra.mxu0 %v309
    %v311 = vand.u32 %v126, 4294901760
    %312 = vmatprep.subr.mxu0 %v311
    %v313 = vand.u32 %v125, 4294901760
    %314 = vmatpush1.msra.mxu0 %v313
    %v315 = vand.u32 %v128, 4294901760
    %316 = vmatprep.subr.mxu0 %v315
    %v317 = vand.u32 %v127, 4294901760
    %318 = vmatpush1.msra.mxu0 %v317
    %v319 = vand.u32 %v130, 4294901760
    %320 = vmatprep.subr.mxu0 %v319
    %v321 = vand.u32 %v129, 4294901760
    %322 = vmatpush1.msra.mxu0 %v321
    %v323 = vand.u32 %v132, 4294901760
    %324 = vmatprep.subr.mxu0 %v323
    %v325 = vand.u32 %v131, 4294901760
    %326 = vmatpush1.msra.mxu0 %v325
    %v327 = vand.u32 %v198, 4294901760
    %v328 = vsub.f32 %v198, %v327
    %v329 = vand.u32 %v328, 4294901760
    %v330 = vsub.f32 %v328, %v329
    %v331 = vand.u32 %v330, 4294901760
    %332 = vmatprep.mubr.f32.mxu0 %v331
    %v333 = vand.u32 %v197, 4294901760
    %v334 = vsub.f32 %v197, %v333
    %v335 = vand.u32 %v334, 4294901760
    %v336 = vsub.f32 %v334, %v335
    %v337 = vand.u32 %v336, 4294901760
    %338 = vmatmul.mubr.f32.gmra.mrb[0].mxu0 %v337
    %v339 = vpop.f32.mrb[0].mxu0
    %v340 = vadd.f32 0.0, %v339
    %v341 = vpop.f32.mrb[0].mxu0
    %v342 = vadd.f32 0.0, %v341
    %343 = vdwg.mxu0
    %v344 = vand.u32 %v70, 4294901760
    %v345 = vsub.f32 %v70, %v344
    %v346 = vand.u32 %v345, 4294901760
    %v347 = vsub.f32 %v345, %v346
    %v348 = vand.u32 %v347, 4294901760
    %349 = vmatprep.subr.mxu0 %v348
    %v350 = vand.u32 %v69, 4294901760
    %v351 = vsub.f32 %v69, %v350
    %v352 = vand.u32 %v351, 4294901760
    %v353 = vsub.f32 %v351, %v352
    %v354 = vand.u32 %v353, 4294901760
    %355 = vmatpush1.msra.mxu0 %v354
    %v356 = vand.u32 %v72, 4294901760
    %v357 = vsub.f32 %v72, %v356
    %v358 = vand.u32 %v357, 4294901760
    %v359 = vsub.f32 %v357, %v358
    %v360 = vand.u32 %v359, 4294901760
    %361 = vmatprep.subr.mxu0 %v360
    %v362 = vand.u32 %v71, 4294901760
    %v363 = vsub.f32 %v71, %v362
    %v364 = vand.u32 %v363, 4294901760
    %v365 = vsub.f32 %v363, %v364
    %v366 = vand.u32 %v365, 4294901760
    %367 = vmatpush1.msra.mxu0 %v366
    %v368 = vand.u32 %v74, 4294901760
    %v369 = vsub.f32 %v74, %v368
    %v370 = vand.u32 %v369, 4294901760
    %v371 = vsub.f32 %v369, %v370
    %v372 = vand.u32 %v371, 4294901760
    %373 = vmatprep.subr.mxu0 %v372
    %v374 = vand.u32 %v73, 4294901760
    %v375 = vsub.f32 %v73, %v374
    %v376 = vand.u32 %v375, 4294901760
    %v377 = vsub.f32 %v375, %v376
    %v378 = vand.u32 %v377, 4294901760
    %379 = vmatpush1.msra.mxu0 %v378
    %v380 = vand.u32 %v76, 4294901760
    %v381 = vsub.f32 %v76, %v380
    %v382 = vand.u32 %v381, 4294901760
    %v383 = vsub.f32 %v381, %v382
    %v384 = vand.u32 %v383, 4294901760
    %385 = vmatprep.subr.mxu0 %v384
    %v386 = vand.u32 %v75, 4294901760
    %v387 = vsub.f32 %v75, %v386
    %v388 = vand.u32 %v387, 4294901760
    %v389 = vsub.f32 %v387, %v388
    %v390 = vand.u32 %v389, 4294901760
    %391 = vmatpush1.msra.mxu0 %v390
    %v392 = vand.u32 %v78, 4294901760
    %v393 = vsub.f32 %v78, %v392
    %v394 = vand.u32 %v393, 4294901760
    %v395 = vsub.f32 %v393, %v394
    %v396 = vand.u32 %v395, 4294901760
    %397 = vmatprep.subr.mxu0 %v396
    %v398 = vand.u32 %v77, 4294901760
    %v399 = vsub.f32 %v77, %v398
    %v400 = vand.u32 %v399, 4294901760
    %v401 = vsub.f32 %v399, %v400
    %v402 = vand.u32 %v401, 4294901760
    %403 = vmatpush1.msra.mxu0 %v402
    %v404 = vand.u32 %v80, 4294901760
    %v405 = vsub.f32 %v80, %v404
    %v406 = vand.u32 %v405, 4294901760
    %v407 = vsub.f32 %v405, %v406
    %v408 = vand.u32 %v407, 4294901760
    %409 = vmatprep.subr.mxu0 %v408
    %v410 = vand.u32 %v79, 4294901760
    %v411 = vsub.f32 %v79, %v410
    %v412 = vand.u32 %v411, 4294901760
    %v413 = vsub.f32 %v411, %v412
    %v414 = vand.u32 %v413, 4294901760
    %415 = vmatpush1.msra.mxu0 %v414
    %v416 = vand.u32 %v82, 4294901760
    %v417 = vsub.f32 %v82, %v416
    %v418 = vand.u32 %v417, 4294901760
    %v419 = vsub.f32 %v417, %v418
    %v420 = vand.u32 %v419, 4294901760
    %421 = vmatprep.subr.mxu0 %v420
    %v422 = vand.u32 %v81, 4294901760
    %v423 = vsub.f32 %v81, %v422
    %v424 = vand.u32 %v423, 4294901760
    %v425 = vsub.f32 %v423, %v424
    %v426 = vand.u32 %v425, 4294901760
    %427 = vmatpush1.msra.mxu0 %v426
    %v428 = vand.u32 %v84, 4294901760
    %v429 = vsub.f32 %v84, %v428
    %v430 = vand.u32 %v429, 4294901760
    %v431 = vsub.f32 %v429, %v430
    %v432 = vand.u32 %v431, 4294901760
    %433 = vmatprep.subr.mxu0 %v432
    %v434 = vand.u32 %v83, 4294901760
    %v435 = vsub.f32 %v83, %v434
    %v436 = vand.u32 %v435, 4294901760
    %v437 = vsub.f32 %v435, %v436
    %v438 = vand.u32 %v437, 4294901760
    %439 = vmatpush1.msra.mxu0 %v438
    %v440 = vand.u32 %v86, 4294901760
    %v441 = vsub.f32 %v86, %v440
    %v442 = vand.u32 %v441, 4294901760
    %v443 = vsub.f32 %v441, %v442
    %v444 = vand.u32 %v443, 4294901760
    %445 = vmatprep.subr.mxu0 %v444
    %v446 = vand.u32 %v85, 4294901760
    %v447 = vsub.f32 %v85, %v446
    %v448 = vand.u32 %v447, 4294901760
    %v449 = vsub.f32 %v447, %v448
    %v450 = vand.u32 %v449, 4294901760
    %451 = vmatpush1.msra.mxu0 %v450
    %v452 = vand.u32 %v88, 4294901760
    %v453 = vsub.f32 %v88, %v452
    %v454 = vand.u32 %v453, 4294901760
    %v455 = vsub.f32 %v453, %v454
    %v456 = vand.u32 %v455, 4294901760
    %457 = vmatprep.subr.mxu0 %v456
    %v458 = vand.u32 %v87, 4294901760
    %v459 = vsub.f32 %v87, %v458
    %v460 = vand.u32 %v459, 4294901760
    %v461 = vsub.f32 %v459, %v460
    %v462 = vand.u32 %v461, 4294901760
    %463 = vmatpush1.msra.mxu0 %v462
    %v464 = vand.u32 %v90, 4294901760
    %v465 = vsub.f32 %v90, %v464
    %v466 = vand.u32 %v465, 4294901760
    %v467 = vsub.f32 %v465, %v466
    %v468 = vand.u32 %v467, 4294901760
    %469 = vmatprep.subr.mxu0 %v468
    %v470 = vand.u32 %v89, 4294901760
    %v471 = vsub.f32 %v89, %v470
    %v472 = vand.u32 %v471, 4294901760
    %v473 = vsub.f32 %v471, %v472
    %v474 = vand.u32 %v473, 4294901760
    %475 = vmatpush1.msra.mxu0 %v474
    %v476 = vand.u32 %v92, 4294901760
    %v477 = vsub.f32 %v92, %v476
    %v478 = vand.u32 %v477, 4294901760
    %v479 = vsub.f32 %v477, %v478
    %v480 = vand.u32 %v479, 4294901760
    %481 = vmatprep.subr.mxu0 %v480
    %v482 = vand.u32 %v91, 4294901760
    %v483 = vsub.f32 %v91, %v482
    %v484 = vand.u32 %v483, 4294901760
    %v485 = vsub.f32 %v483, %v484
    %v486 = vand.u32 %v485, 4294901760
    %487 = vmatpush1.msra.mxu0 %v486
    %v488 = vand.u32 %v94, 4294901760
    %v489 = vsub.f32 %v94, %v488
    %v490 = vand.u32 %v489, 4294901760
    %v491 = vsub.f32 %v489, %v490
    %v492 = vand.u32 %v491, 4294901760
    %493 = vmatprep.subr.mxu0 %v492
    %v494 = vand.u32 %v93, 4294901760
    %v495 = vsub.f32 %v93, %v494
    %v496 = vand.u32 %v495, 4294901760
    %v497 = vsub.f32 %v495, %v496
    %v498 = vand.u32 %v497, 4294901760
    %499 = vmatpush1.msra.mxu0 %v498
    %v500 = vand.u32 %v96, 4294901760
    %v501 = vsub.f32 %v96, %v500
    %v502 = vand.u32 %v501, 4294901760
    %v503 = vsub.f32 %v501, %v502
    %v504 = vand.u32 %v503, 4294901760
    %505 = vmatprep.subr.mxu0 %v504
    %v506 = vand.u32 %v95, 4294901760
    %v507 = vsub.f32 %v95, %v506
    %v508 = vand.u32 %v507, 4294901760
    %v509 = vsub.f32 %v507, %v508
    %v510 = vand.u32 %v509, 4294901760
    %511 = vmatpush1.msra.mxu0 %v510
    %v512 = vand.u32 %v98, 4294901760
    %v513 = vsub.f32 %v98, %v512
    %v514 = vand.u32 %v513, 4294901760
    %v515 = vsub.f32 %v513, %v514
    %v516 = vand.u32 %v515, 4294901760
    %517 = vmatprep.subr.mxu0 %v516
    %v518 = vand.u32 %v97, 4294901760
    %v519 = vsub.f32 %v97, %v518
    %v520 = vand.u32 %v519, 4294901760
    %v521 = vsub.f32 %v519, %v520
    %v522 = vand.u32 %v521, 4294901760
    %523 = vmatpush1.msra.mxu0 %v522
    %v524 = vand.u32 %v100, 4294901760
    %v525 = vsub.f32 %v100, %v524
    %v526 = vand.u32 %v525, 4294901760
    %v527 = vsub.f32 %v525, %v526
    %v528 = vand.u32 %v527, 4294901760
    %529 = vmatprep.subr.mxu0 %v528
    %v530 = vand.u32 %v99, 4294901760
    %v531 = vsub.f32 %v99, %v530
    %v532 = vand.u32 %v531, 4294901760
    %v533 = vsub.f32 %v531, %v532
    %v534 = vand.u32 %v533, 4294901760
    %535 = vmatpush1.msra.mxu0 %v534
    %v536 = vand.u32 %v102, 4294901760
    %v537 = vsub.f32 %v102, %v536
    %v538 = vand.u32 %v537, 4294901760
    %v539 = vsub.f32 %v537, %v538
    %v540 = vand.u32 %v539, 4294901760
    %541 = vmatprep.subr.mxu0 %v540
    %v542 = vand.u32 %v101, 4294901760
    %v543 = vsub.f32 %v101, %v542
    %v544 = vand.u32 %v543, 4294901760
    %v545 = vsub.f32 %v543, %v544
    %v546 = vand.u32 %v545, 4294901760
    %547 = vmatpush1.msra.mxu0 %v546
    %v548 = vand.u32 %v104, 4294901760
    %v549 = vsub.f32 %v104, %v548
    %v550 = vand.u32 %v549, 4294901760
    %v551 = vsub.f32 %v549, %v550
    %v552 = vand.u32 %v551, 4294901760
    %553 = vmatprep.subr.mxu0 %v552
    %v554 = vand.u32 %v103, 4294901760
    %v555 = vsub.f32 %v103, %v554
    %v556 = vand.u32 %v555, 4294901760
    %v557 = vsub.f32 %v555, %v556
    %v558 = vand.u32 %v557, 4294901760
    %559 = vmatpush1.msra.mxu0 %v558
    %v560 = vand.u32 %v106, 4294901760
    %v561 = vsub.f32 %v106, %v560
    %v562 = vand.u32 %v561, 4294901760
    %v563 = vsub.f32 %v561, %v562
    %v564 = vand.u32 %v563, 4294901760
    %565 = vmatprep.subr.mxu0 %v564
    %v566 = vand.u32 %v105, 4294901760
    %v567 = vsub.f32 %v105, %v566
    %v568 = vand.u32 %v567, 4294901760
    %v569 = vsub.f32 %v567, %v568
    %v570 = vand.u32 %v569, 4294901760
    %571 = vmatpush1.msra.mxu0 %v570
    %v572 = vand.u32 %v108, 4294901760
    %v573 = vsub.f32 %v108, %v572
    %v574 = vand.u32 %v573, 4294901760
    %v575 = vsub.f32 %v573, %v574
    %v576 = vand.u32 %v575, 4294901760
    %577 = vmatprep.subr.mxu0 %v576
    %v578 = vand.u32 %v107, 4294901760
    %v579 = vsub.f32 %v107, %v578
    %v580 = vand.u32 %v579, 4294901760
    %v581 = vsub.f32 %v579, %v580
    %v582 = vand.u32 %v581, 4294901760
    %583 = vmatpush1.msra.mxu0 %v582
    %v584 = vand.u32 %v110, 4294901760
    %v585 = vsub.f32 %v110, %v584
    %v586 = vand.u32 %v585, 4294901760
    %v587 = vsub.f32 %v585, %v586
    %v588 = vand.u32 %v587, 4294901760
    %589 = vmatprep.subr.mxu0 %v588
    %v590 = vand.u32 %v109, 4294901760
    %v591 = vsub.f32 %v109, %v590
    %v592 = vand.u32 %v591, 4294901760
    %v593 = vsub.f32 %v591, %v592
    %v594 = vand.u32 %v593, 4294901760
    %595 = vmatpush1.msra.mxu0 %v594
    %v596 = vand.u32 %v112, 4294901760
    %v597 = vsub.f32 %v112, %v596
    %v598 = vand.u32 %v597, 4294901760
    %v599 = vsub.f32 %v597, %v598
    %v600 = vand.u32 %v599, 4294901760
    %601 = vmatprep.subr.mxu0 %v600
    %v602 = vand.u32 %v111, 4294901760
    %v603 = vsub.f32 %v111, %v602
    %v604 = vand.u32 %v603, 4294901760
    %v605 = vsub.f32 %v603, %v604
    %v606 = vand.u32 %v605, 4294901760
    %607 = vmatpush1.msra.mxu0 %v606
    %v608 = vand.u32 %v114, 4294901760
    %v609 = vsub.f32 %v114, %v608
    %v610 = vand.u32 %v609, 4294901760
    %v611 = vsub.f32 %v609, %v610
    %v612 = vand.u32 %v611, 4294901760
    %613 = vmatprep.subr.mxu0 %v612
    %v614 = vand.u32 %v113, 4294901760
    %v615 = vsub.f32 %v113, %v614
    %v616 = vand.u32 %v615, 4294901760
    %v617 = vsub.f32 %v615, %v616
    %v618 = vand.u32 %v617, 4294901760
    %619 = vmatpush1.msra.mxu0 %v618
    %v620 = vand.u32 %v116, 4294901760
    %v621 = vsub.f32 %v116, %v620
    %v622 = vand.u32 %v621, 4294901760
    %v623 = vsub.f32 %v621, %v622
    %v624 = vand.u32 %v623, 4294901760
    %625 = vmatprep.subr.mxu0 %v624
    %v626 = vand.u32 %v115, 4294901760
    %v627 = vsub.f32 %v115, %v626
    %v628 = vand.u32 %v627, 4294901760
    %v629 = vsub.f32 %v627, %v628
    %v630 = vand.u32 %v629, 4294901760
    %631 = vmatpush1.msra.mxu0 %v630
    %v632 = vand.u32 %v118, 4294901760
    %v633 = vsub.f32 %v118, %v632
    %v634 = vand.u32 %v633, 4294901760
    %v635 = vsub.f32 %v633, %v634
    %v636 = vand.u32 %v635, 4294901760
    %637 = vmatprep.subr.mxu0 %v636
    %v638 = vand.u32 %v117, 4294901760
    %v639 = vsub.f32 %v117, %v638
    %v640 = vand.u32 %v639, 4294901760
    %v641 = vsub.f32 %v639, %v640
    %v642 = vand.u32 %v641, 4294901760
    %643 = vmatpush1.msra.mxu0 %v642
    %v644 = vand.u32 %v120, 4294901760
    %v645 = vsub.f32 %v120, %v644
    %v646 = vand.u32 %v645, 4294901760
    %v647 = vsub.f32 %v645, %v646
    %v648 = vand.u32 %v647, 4294901760
    %649 = vmatprep.subr.mxu0 %v648
    %v650 = vand.u32 %v119, 4294901760
    %v651 = vsub.f32 %v119, %v650
    %v652 = vand.u32 %v651, 4294901760
    %v653 = vsub.f32 %v651, %v652
    %v654 = vand.u32 %v653, 4294901760
    %655 = vmatpush1.msra.mxu0 %v654
    %v656 = vand.u32 %v122, 4294901760
    %v657 = vsub.f32 %v122, %v656
    %v658 = vand.u32 %v657, 4294901760
    %v659 = vsub.f32 %v657, %v658
    %v660 = vand.u32 %v659, 4294901760
    %661 = vmatprep.subr.mxu0 %v660
    %v662 = vand.u32 %v121, 4294901760
    %v663 = vsub.f32 %v121, %v662
    %v664 = vand.u32 %v663, 4294901760
    %v665 = vsub.f32 %v663, %v664
    %v666 = vand.u32 %v665, 4294901760
    %667 = vmatpush1.msra.mxu0 %v666
    %v668 = vand.u32 %v124, 4294901760
    %v669 = vsub.f32 %v124, %v668
    %v670 = vand.u32 %v669, 4294901760
    %v671 = vsub.f32 %v669, %v670
    %v672 = vand.u32 %v671, 4294901760
    %673 = vmatprep.subr.mxu0 %v672
    %v674 = vand.u32 %v123, 4294901760
    %v675 = vsub.f32 %v123, %v674
    %v676 = vand.u32 %v675, 4294901760
    %v677 = vsub.f32 %v675, %v676
    %v678 = vand.u32 %v677, 4294901760
    %679 = vmatpush1.msra.mxu0 %v678
    %v680 = vand.u32 %v126, 4294901760
    %v681 = vsub.f32 %v126, %v680
    %v682 = vand.u32 %v681, 4294901760
    %v683 = vsub.f32 %v681, %v682
    %v684 = vand.u32 %v683, 4294901760
    %685 = vmatprep.subr.mxu0 %v684
    %v686 = vand.u32 %v125, 4294901760
    %v687 = vsub.f32 %v125, %v686
    %v688 = vand.u32 %v687, 4294901760
    %v689 = vsub.f32 %v687, %v688
    %v690 = vand.u32 %v689, 4294901760
    %691 = vmatpush1.msra.mxu0 %v690
    %v692 = vand.u32 %v128, 4294901760
    %v693 = vsub.f32 %v128, %v692
    %v694 = vand.u32 %v693, 4294901760
    %v695 = vsub.f32 %v693, %v694
    %v696 = vand.u32 %v695, 4294901760
    %697 = vmatprep.subr.mxu0 %v696
    %v698 = vand.u32 %v127, 4294901760
    %v699 = vsub.f32 %v127, %v698
    %v700 = vand.u32 %v699, 4294901760
    %v701 = vsub.f32 %v699, %v700
    %v702 = vand.u32 %v701, 4294901760
    %703 = vmatpush1.msra.mxu0 %v702
    %v704 = vand.u32 %v130, 4294901760
    %v705 = vsub.f32 %v130, %v704
    %v706 = vand.u32 %v705, 4294901760
    %v707 = vsub.f32 %v705, %v706
    %v708 = vand.u32 %v707, 4294901760
    %709 = vmatprep.subr.mxu0 %v708
    %v710 = vand.u32 %v129, 4294901760
    %v711 = vsub.f32 %v129, %v710
    %v712 = vand.u32 %v711, 4294901760
    %v713 = vsub.f32 %v711, %v712
    %v714 = vand.u32 %v713, 4294901760
    %715 = vmatpush1.msra.mxu0 %v714
    %v716 = vand.u32 %v132, 4294901760
    %v717 = vsub.f32 %v132, %v716
    %v718 = vand.u32 %v717, 4294901760
    %v719 = vsub.f32 %v717, %v718
    %v720 = vand.u32 %v719, 4294901760
    %721 = vmatprep.subr.mxu0 %v720
    %v722 = vand.u32 %v131, 4294901760
    %v723 = vsub.f32 %v131, %v722
    %v724 = vand.u32 %v723, 4294901760
    %v725 = vsub.f32 %v723, %v724
    %v726 = vand.u32 %v725, 4294901760
    %727 = vmatpush1.msra.mxu0 %v726
    %v728 = vand.u32 %v198, 4294901760
    %729 = vmatprep.mubr.f32.mxu0 %v728
    %v730 = vand.u32 %v197, 4294901760
    %731 = vmatmul.mubr.f32.gmra.mrb[0].mxu0 %v730
    %v732 = vpop.f32.mrb[0].mxu0
    %v733 = vadd.f32 %v340, %v732
    %v734 = vpop.f32.mrb[0].mxu0
    %v735 = vadd.f32 %v342, %v734
    %736 = vdwg.mxu0
    %v737 = vand.u32 %v70, 4294901760
    %v738 = vsub.f32 %v70, %v737
    %739 = vmatprep.subr.mxu0 %v738
    %v740 = vand.u32 %v69, 4294901760
    %v741 = vsub.f32 %v69, %v740
    %742 = vmatpush1.msra.mxu0 %v741
    %v743 = vand.u32 %v72, 4294901760
    %v744 = vsub.f32 %v72, %v743
    %745 = vmatprep.subr.mxu0 %v744
    %v746 = vand.u32 %v71, 4294901760
    %v747 = vsub.f32 %v71, %v746
    %748 = vmatpush1.msra.mxu0 %v747
    %v749 = vand.u32 %v74, 4294901760
    %v750 = vsub.f32 %v74, %v749
    %751 = vmatprep.subr.mxu0 %v750
    %v752 = vand.u32 %v73, 4294901760
    %v753 = vsub.f32 %v73, %v752
    %754 = vmatpush1.msra.mxu0 %v753
    %v755 = vand.u32 %v76, 4294901760
    %v756 = vsub.f32 %v76, %v755
    %757 = vmatprep.subr.mxu0 %v756
    %v758 = vand.u32 %v75, 4294901760
    %v759 = vsub.f32 %v75, %v758
    %760 = vmatpush1.msra.mxu0 %v759
    %v761 = vand.u32 %v78, 4294901760
    %v762 = vsub.f32 %v78, %v761
    %763 = vmatprep.subr.mxu0 %v762
    %v764 = vand.u32 %v77, 4294901760
    %v765 = vsub.f32 %v77, %v764
    %766 = vmatpush1.msra.mxu0 %v765
    %v767 = vand.u32 %v80, 4294901760
    %v768 = vsub.f32 %v80, %v767
    %769 = vmatprep.subr.mxu0 %v768
    %v770 = vand.u32 %v79, 4294901760
    %v771 = vsub.f32 %v79, %v770
    %772 = vmatpush1.msra.mxu0 %v771
    %v773 = vand.u32 %v82, 4294901760
    %v774 = vsub.f32 %v82, %v773
    %775 = vmatprep.subr.mxu0 %v774
    %v776 = vand.u32 %v81, 4294901760
    %v777 = vsub.f32 %v81, %v776
    %778 = vmatpush1.msra.mxu0 %v777
    %v779 = vand.u32 %v84, 4294901760
    %v780 = vsub.f32 %v84, %v779
    %781 = vmatprep.subr.mxu0 %v780
    %v782 = vand.u32 %v83, 4294901760
    %v783 = vsub.f32 %v83, %v782
    %784 = vmatpush1.msra.mxu0 %v783
    %v785 = vand.u32 %v86, 4294901760
    %v786 = vsub.f32 %v86, %v785
    %787 = vmatprep.subr.mxu0 %v786
    %v788 = vand.u32 %v85, 4294901760
    %v789 = vsub.f32 %v85, %v788
    %790 = vmatpush1.msra.mxu0 %v789
    %v791 = vand.u32 %v88, 4294901760
    %v792 = vsub.f32 %v88, %v791
    %793 = vmatprep.subr.mxu0 %v792
    %v794 = vand.u32 %v87, 4294901760
    %v795 = vsub.f32 %v87, %v794
    %796 = vmatpush1.msra.mxu0 %v795
    %v797 = vand.u32 %v90, 4294901760
    %v798 = vsub.f32 %v90, %v797
    %799 = vmatprep.subr.mxu0 %v798
    %v800 = vand.u32 %v89, 4294901760
    %v801 = vsub.f32 %v89, %v800
    %802 = vmatpush1.msra.mxu0 %v801
    %v803 = vand.u32 %v92, 4294901760
    %v804 = vsub.f32 %v92, %v803
    %805 = vmatprep.subr.mxu0 %v804
    %v806 = vand.u32 %v91, 4294901760
    %v807 = vsub.f32 %v91, %v806
    %808 = vmatpush1.msra.mxu0 %v807
    %v809 = vand.u32 %v94, 4294901760
    %v810 = vsub.f32 %v94, %v809
    %811 = vmatprep.subr.mxu0 %v810
    %v812 = vand.u32 %v93, 4294901760
    %v813 = vsub.f32 %v93, %v812
    %814 = vmatpush1.msra.mxu0 %v813
    %v815 = vand.u32 %v96, 4294901760
    %v816 = vsub.f32 %v96, %v815
    %817 = vmatprep.subr.mxu0 %v816
    %v818 = vand.u32 %v95, 4294901760
    %v819 = vsub.f32 %v95, %v818
    %820 = vmatpush1.msra.mxu0 %v819
    %v821 = vand.u32 %v98, 4294901760
    %v822 = vsub.f32 %v98, %v821
    %823 = vmatprep.subr.mxu0 %v822
    %v824 = vand.u32 %v97, 4294901760
    %v825 = vsub.f32 %v97, %v824
    %826 = vmatpush1.msra.mxu0 %v825
    %v827 = vand.u32 %v100, 4294901760
    %v828 = vsub.f32 %v100, %v827
    %829 = vmatprep.subr.mxu0 %v828
    %v830 = vand.u32 %v99, 4294901760
    %v831 = vsub.f32 %v99, %v830
    %832 = vmatpush1.msra.mxu0 %v831
    %v833 = vand.u32 %v102, 4294901760
    %v834 = vsub.f32 %v102, %v833
    %835 = vmatprep.subr.mxu0 %v834
    %v836 = vand.u32 %v101, 4294901760
    %v837 = vsub.f32 %v101, %v836
    %838 = vmatpush1.msra.mxu0 %v837
    %v839 = vand.u32 %v104, 4294901760
    %v840 = vsub.f32 %v104, %v839
    %841 = vmatprep.subr.mxu0 %v840
    %v842 = vand.u32 %v103, 4294901760
    %v843 = vsub.f32 %v103, %v842
    %844 = vmatpush1.msra.mxu0 %v843
    %v845 = vand.u32 %v106, 4294901760
    %v846 = vsub.f32 %v106, %v845
    %847 = vmatprep.subr.mxu0 %v846
    %v848 = vand.u32 %v105, 4294901760
    %v849 = vsub.f32 %v105, %v848
    %850 = vmatpush1.msra.mxu0 %v849
    %v851 = vand.u32 %v108, 4294901760
    %v852 = vsub.f32 %v108, %v851
    %853 = vmatprep.subr.mxu0 %v852
    %v854 = vand.u32 %v107, 4294901760
    %v855 = vsub.f32 %v107, %v854
    %856 = vmatpush1.msra.mxu0 %v855
    %v857 = vand.u32 %v110, 4294901760
    %v858 = vsub.f32 %v110, %v857
    %859 = vmatprep.subr.mxu0 %v858
    %v860 = vand.u32 %v109, 4294901760
    %v861 = vsub.f32 %v109, %v860
    %862 = vmatpush1.msra.mxu0 %v861
    %v863 = vand.u32 %v112, 4294901760
    %v864 = vsub.f32 %v112, %v863
    %865 = vmatprep.subr.mxu0 %v864
    %v866 = vand.u32 %v111, 4294901760
    %v867 = vsub.f32 %v111, %v866
    %868 = vmatpush1.msra.mxu0 %v867
    %v869 = vand.u32 %v114, 4294901760
    %v870 = vsub.f32 %v114, %v869
    %871 = vmatprep.subr.mxu0 %v870
    %v872 = vand.u32 %v113, 4294901760
    %v873 = vsub.f32 %v113, %v872
    %874 = vmatpush1.msra.mxu0 %v873
    %v875 = vand.u32 %v116, 4294901760
    %v876 = vsub.f32 %v116, %v875
    %877 = vmatprep.subr.mxu0 %v876
    %v878 = vand.u32 %v115, 4294901760
    %v879 = vsub.f32 %v115, %v878
    %880 = vmatpush1.msra.mxu0 %v879
    %v881 = vand.u32 %v118, 4294901760
    %v882 = vsub.f32 %v118, %v881
    %883 = vmatprep.subr.mxu0 %v882
    %v884 = vand.u32 %v117, 4294901760
    %v885 = vsub.f32 %v117, %v884
    %886 = vmatpush1.msra.mxu0 %v885
    %v887 = vand.u32 %v120, 4294901760
    %v888 = vsub.f32 %v120, %v887
    %889 = vmatprep.subr.mxu0 %v888
    %v890 = vand.u32 %v119, 4294901760
    %v891 = vsub.f32 %v119, %v890
    %892 = vmatpush1.msra.mxu0 %v891
    %v893 = vand.u32 %v122, 4294901760
    %v894 = vsub.f32 %v122, %v893
    %895 = vmatprep.subr.mxu0 %v894
    %v896 = vand.u32 %v121, 4294901760
    %v897 = vsub.f32 %v121, %v896
    %898 = vmatpush1.msra.mxu0 %v897
    %v899 = vand.u32 %v124, 4294901760
    %v900 = vsub.f32 %v124, %v899
    %901 = vmatprep.subr.mxu0 %v900
    %v902 = vand.u32 %v123, 4294901760
    %v903 = vsub.f32 %v123, %v902
    %904 = vmatpush1.msra.mxu0 %v903
    %v905 = vand.u32 %v126, 4294901760
    %v906 = vsub.f32 %v126, %v905
    %907 = vmatprep.subr.mxu0 %v906
    %v908 = vand.u32 %v125, 4294901760
    %v909 = vsub.f32 %v125, %v908
    %910 = vmatpush1.msra.mxu0 %v909
    %v911 = vand.u32 %v128, 4294901760
    %v912 = vsub.f32 %v128, %v911
    %913 = vmatprep.subr.mxu0 %v912
    %v914 = vand.u32 %v127, 4294901760
    %v915 = vsub.f32 %v127, %v914
    %916 = vmatpush1.msra.mxu0 %v915
    %v917 = vand.u32 %v130, 4294901760
    %v918 = vsub.f32 %v130, %v917
    %919 = vmatprep.subr.mxu0 %v918
    %v920 = vand.u32 %v129, 4294901760
    %v921 = vsub.f32 %v129, %v920
    %922 = vmatpush1.msra.mxu0 %v921
    %v923 = vand.u32 %v132, 4294901760
    %v924 = vsub.f32 %v132, %v923
    %925 = vmatprep.subr.mxu0 %v924
    %v926 = vand.u32 %v131, 4294901760
    %v927 = vsub.f32 %v131, %v926
    %928 = vmatpush1.msra.mxu0 %v927
    %v929 = vand.u32 %v198, 4294901760
    %v930 = vsub.f32 %v198, %v929
    %931 = vmatprep.mubr.f32.mxu0 %v930
    %v932 = vand.u32 %v197, 4294901760
    %v933 = vsub.f32 %v197, %v932
    %934 = vmatmul.mubr.f32.gmra.mrb[0].mxu0 %v933
    %v935 = vpop.f32.mrb[0].mxu0
    %v936 = vadd.f32 %v733, %v935
    %v937 = vpop.f32.mrb[0].mxu0
    %v938 = vadd.f32 %v735, %v937
    %939 = vdwg.mxu0
    %v940 = vand.u32 %v70, 4294901760
    %941 = vmatprep.subr.mxu0 %v940
    %v942 = vand.u32 %v69, 4294901760
    %943 = vmatpush1.msra.mxu0 %v942
    %v944 = vand.u32 %v72, 4294901760
    %945 = vmatprep.subr.mxu0 %v944
    %v946 = vand.u32 %v71, 4294901760
    %947 = vmatpush1.msra.mxu0 %v946
    %v948 = vand.u32 %v74, 4294901760
    %949 = vmatprep.subr.mxu0 %v948
    %v950 = vand.u32 %v73, 4294901760
    %951 = vmatpush1.msra.mxu0 %v950
    %v952 = vand.u32 %v76, 4294901760
    %953 = vmatprep.subr.mxu0 %v952
    %v954 = vand.u32 %v75, 4294901760
    %955 = vmatpush1.msra.mxu0 %v954
    %v956 = vand.u32 %v78, 4294901760
    %957 = vmatprep.subr.mxu0 %v956
    %v958 = vand.u32 %v77, 4294901760
    %959 = vmatpush1.msra.mxu0 %v958
    %v960 = vand.u32 %v80, 4294901760
    %961 = vmatprep.subr.mxu0 %v960
    %v962 = vand.u32 %v79, 4294901760
    %963 = vmatpush1.msra.mxu0 %v962
    %v964 = vand.u32 %v82, 4294901760
    %965 = vmatprep.subr.mxu0 %v964
    %v966 = vand.u32 %v81, 4294901760
    %967 = vmatpush1.msra.mxu0 %v966
    %v968 = vand.u32 %v84, 4294901760
    %969 = vmatprep.subr.mxu0 %v968
    %v970 = vand.u32 %v83, 4294901760
    %971 = vmatpush1.msra.mxu0 %v970
    %v972 = vand.u32 %v86, 4294901760
    %973 = vmatprep.subr.mxu0 %v972
    %v974 = vand.u32 %v85, 4294901760
    %975 = vmatpush1.msra.mxu0 %v974
    %v976 = vand.u32 %v88, 4294901760
    %977 = vmatprep.subr.mxu0 %v976
    %v978 = vand.u32 %v87, 4294901760
    %979 = vmatpush1.msra.mxu0 %v978
    %v980 = vand.u32 %v90, 4294901760
    %981 = vmatprep.subr.mxu0 %v980
    %v982 = vand.u32 %v89, 4294901760
    %983 = vmatpush1.msra.mxu0 %v982
    %v984 = vand.u32 %v92, 4294901760
    %985 = vmatprep.subr.mxu0 %v984
    %v986 = vand.u32 %v91, 4294901760
    %987 = vmatpush1.msra.mxu0 %v986
    %v988 = vand.u32 %v94, 4294901760
    %989 = vmatprep.subr.mxu0 %v988
    %v990 = vand.u32 %v93, 4294901760
    %991 = vmatpush1.msra.mxu0 %v990
    %v992 = vand.u32 %v96, 4294901760
    %993 = vmatprep.subr.mxu0 %v992
    %v994 = vand.u32 %v95, 4294901760
    %995 = vmatpush1.msra.mxu0 %v994
    %v996 = vand.u32 %v98, 4294901760
    %997 = vmatprep.subr.mxu0 %v996
    %v998 = vand.u32 %v97, 4294901760
    %999 = vmatpush1.msra.mxu0 %v998
    %v1000 = vand.u32 %v100, 4294901760
    %1001 = vmatprep.subr.mxu0 %v1000
    %v1002 = vand.u32 %v99, 4294901760
    %1003 = vmatpush1.msra.mxu0 %v1002
    %v1004 = vand.u32 %v102, 4294901760
    %1005 = vmatprep.subr.mxu0 %v1004
    %v1006 = vand.u32 %v101, 4294901760
    %1007 = vmatpush1.msra.mxu0 %v1006
    %v1008 = vand.u32 %v104, 4294901760
    %1009 = vmatprep.subr.mxu0 %v1008
    %v1010 = vand.u32 %v103, 4294901760
    %1011 = vmatpush1.msra.mxu0 %v1010
    %v1012 = vand.u32 %v106, 4294901760
    %1013 = vmatprep.subr.mxu0 %v1012
    %v1014 = vand.u32 %v105, 4294901760
    %1015 = vmatpush1.msra.mxu0 %v1014
    %v1016 = vand.u32 %v108, 4294901760
    %1017 = vmatprep.subr.mxu0 %v1016
    %v1018 = vand.u32 %v107, 4294901760
    %1019 = vmatpush1.msra.mxu0 %v1018
    %v1020 = vand.u32 %v110, 4294901760
    %1021 = vmatprep.subr.mxu0 %v1020
    %v1022 = vand.u32 %v109, 4294901760
    %1023 = vmatpush1.msra.mxu0 %v1022
    %v1024 = vand.u32 %v112, 4294901760
    %1025 = vmatprep.subr.mxu0 %v1024
    %v1026 = vand.u32 %v111, 4294901760
    %1027 = vmatpush1.msra.mxu0 %v1026
    %v1028 = vand.u32 %v114, 4294901760
    %1029 = vmatprep.subr.mxu0 %v1028
    %v1030 = vand.u32 %v113, 4294901760
    %1031 = vmatpush1.msra.mxu0 %v1030
    %v1032 = vand.u32 %v116, 4294901760
    %1033 = vmatprep.subr.mxu0 %v1032
    %v1034 = vand.u32 %v115, 4294901760
    %1035 = vmatpush1.msra.mxu0 %v1034
    %v1036 = vand.u32 %v118, 4294901760
    %1037 = vmatprep.subr.mxu0 %v1036
    %v1038 = vand.u32 %v117, 4294901760
    %1039 = vmatpush1.msra.mxu0 %v1038
    %v1040 = vand.u32 %v120, 4294901760
    %1041 = vmatprep.subr.mxu0 %v1040
    %v1042 = vand.u32 %v119, 4294901760
    %1043 = vmatpush1.msra.mxu0 %v1042
    %v1044 = vand.u32 %v122, 4294901760
    %1045 = vmatprep.subr.mxu0 %v1044
    %v1046 = vand.u32 %v121, 4294901760
    %1047 = vmatpush1.msra.mxu0 %v1046
    %v1048 = vand.u32 %v124, 4294901760
    %1049 = vmatprep.subr.mxu0 %v1048
    %v1050 = vand.u32 %v123, 4294901760
    %1051 = vmatpush1.msra.mxu0 %v1050
    %v1052 = vand.u32 %v126, 4294901760
    %1053 = vmatprep.subr.mxu0 %v1052
    %v1054 = vand.u32 %v125, 4294901760
    %1055 = vmatpush1.msra.mxu0 %v1054
    %v1056 = vand.u32 %v128, 4294901760
    %1057 = vmatprep.subr.mxu0 %v1056
    %v1058 = vand.u32 %v127, 4294901760
    %1059 = vmatpush1.msra.mxu0 %v1058
    %v1060 = vand.u32 %v130, 4294901760
    %1061 = vmatprep.subr.mxu0 %v1060
    %v1062 = vand.u32 %v129, 4294901760
    %1063 = vmatpush1.msra.mxu0 %v1062
    %v1064 = vand.u32 %v132, 4294901760
    %1065 = vmatprep.subr.mxu0 %v1064
    %v1066 = vand.u32 %v131, 4294901760
    %1067 = vmatpush1.msra.mxu0 %v1066
    %v1068 = vand.u32 %v198, 4294901760
    %v1069 = vsub.f32 %v198, %v1068
    %v1070 = vand.u32 %v1069, 4294901760
    %1071 = vmatprep.mubr.f32.mxu0 %v1070
    %v1072 = vand.u32 %v197, 4294901760
    %v1073 = vsub.f32 %v197, %v1072
    %v1074 = vand.u32 %v1073, 4294901760
    %1075 = vmatmul.mubr.f32.gmra.mrb[0].mxu0 %v1074
    %v1076 = vpop.f32.mrb[0].mxu0
    %v1077 = vadd.f32 %v936, %v1076
    %v1078 = vpop.f32.mrb[0].mxu0
    %v1079 = vadd.f32 %v938, %v1078
    %1080 = vdwg.mxu0
    %v1081 = vand.u32 %v70, 4294901760
    %v1082 = vsub.f32 %v70, %v1081
    %v1083 = vand.u32 %v1082, 4294901760
    %1084 = vmatprep.subr.mxu0 %v1083
    %v1085 = vand.u32 %v69, 4294901760
    %v1086 = vsub.f32 %v69, %v1085
    %v1087 = vand.u32 %v1086, 4294901760
    %1088 = vmatpush1.msra.mxu0 %v1087
    %v1089 = vand.u32 %v72, 4294901760
    %v1090 = vsub.f32 %v72, %v1089
    %v1091 = vand.u32 %v1090, 4294901760
    %1092 = vmatprep.subr.mxu0 %v1091
    %v1093 = vand.u32 %v71, 4294901760
    %v1094 = vsub.f32 %v71, %v1093
    %v1095 = vand.u32 %v1094, 4294901760
    %1096 = vmatpush1.msra.mxu0 %v1095
    %v1097 = vand.u32 %v74, 4294901760
    %v1098 = vsub.f32 %v74, %v1097
    %v1099 = vand.u32 %v1098, 4294901760
    %1100 = vmatprep.subr.mxu0 %v1099
    %v1101 = vand.u32 %v73, 4294901760
    %v1102 = vsub.f32 %v73, %v1101
    %v1103 = vand.u32 %v1102, 4294901760
    %1104 = vmatpush1.msra.mxu0 %v1103
    %v1105 = vand.u32 %v76, 4294901760
    %v1106 = vsub.f32 %v76, %v1105
    %v1107 = vand.u32 %v1106, 4294901760
    %1108 = vmatprep.subr.mxu0 %v1107
    %v1109 = vand.u32 %v75, 4294901760
    %v1110 = vsub.f32 %v75, %v1109
    %v1111 = vand.u32 %v1110, 4294901760
    %1112 = vmatpush1.msra.mxu0 %v1111
    %v1113 = vand.u32 %v78, 4294901760
    %v1114 = vsub.f32 %v78, %v1113
    %v1115 = vand.u32 %v1114, 4294901760
    %1116 = vmatprep.subr.mxu0 %v1115
    %v1117 = vand.u32 %v77, 4294901760
    %v1118 = vsub.f32 %v77, %v1117
    %v1119 = vand.u32 %v1118, 4294901760
    %1120 = vmatpush1.msra.mxu0 %v1119
    %v1121 = vand.u32 %v80, 4294901760
    %v1122 = vsub.f32 %v80, %v1121
    %v1123 = vand.u32 %v1122, 4294901760
    %1124 = vmatprep.subr.mxu0 %v1123
    %v1125 = vand.u32 %v79, 4294901760
    %v1126 = vsub.f32 %v79, %v1125
    %v1127 = vand.u32 %v1126, 4294901760
    %1128 = vmatpush1.msra.mxu0 %v1127
    %v1129 = vand.u32 %v82, 4294901760
    %v1130 = vsub.f32 %v82, %v1129
    %v1131 = vand.u32 %v1130, 4294901760
    %1132 = vmatprep.subr.mxu0 %v1131
    %v1133 = vand.u32 %v81, 4294901760
    %v1134 = vsub.f32 %v81, %v1133
    %v1135 = vand.u32 %v1134, 4294901760
    %1136 = vmatpush1.msra.mxu0 %v1135
    %v1137 = vand.u32 %v84, 4294901760
    %v1138 = vsub.f32 %v84, %v1137
    %v1139 = vand.u32 %v1138, 4294901760
    %1140 = vmatprep.subr.mxu0 %v1139
    %v1141 = vand.u32 %v83, 4294901760
    %v1142 = vsub.f32 %v83, %v1141
    %v1143 = vand.u32 %v1142, 4294901760
    %1144 = vmatpush1.msra.mxu0 %v1143
    %v1145 = vand.u32 %v86, 4294901760
    %v1146 = vsub.f32 %v86, %v1145
    %v1147 = vand.u32 %v1146, 4294901760
    %1148 = vmatprep.subr.mxu0 %v1147
    %v1149 = vand.u32 %v85, 4294901760
    %v1150 = vsub.f32 %v85, %v1149
    %v1151 = vand.u32 %v1150, 4294901760
    %1152 = vmatpush1.msra.mxu0 %v1151
    %v1153 = vand.u32 %v88, 4294901760
    %v1154 = vsub.f32 %v88, %v1153
    %v1155 = vand.u32 %v1154, 4294901760
    %1156 = vmatprep.subr.mxu0 %v1155
    %v1157 = vand.u32 %v87, 4294901760
    %v1158 = vsub.f32 %v87, %v1157
    %v1159 = vand.u32 %v1158, 4294901760
    %1160 = vmatpush1.msra.mxu0 %v1159
    %v1161 = vand.u32 %v90, 4294901760
    %v1162 = vsub.f32 %v90, %v1161
    %v1163 = vand.u32 %v1162, 4294901760
    %1164 = vmatprep.subr.mxu0 %v1163
    %v1165 = vand.u32 %v89, 4294901760
    %v1166 = vsub.f32 %v89, %v1165
    %v1167 = vand.u32 %v1166, 4294901760
    %1168 = vmatpush1.msra.mxu0 %v1167
    %v1169 = vand.u32 %v92, 4294901760
    %v1170 = vsub.f32 %v92, %v1169
    %v1171 = vand.u32 %v1170, 4294901760
    %1172 = vmatprep.subr.mxu0 %v1171
    %v1173 = vand.u32 %v91, 4294901760
    %v1174 = vsub.f32 %v91, %v1173
    %v1175 = vand.u32 %v1174, 4294901760
    %1176 = vmatpush1.msra.mxu0 %v1175
    %v1177 = vand.u32 %v94, 4294901760
    %v1178 = vsub.f32 %v94, %v1177
    %v1179 = vand.u32 %v1178, 4294901760
    %1180 = vmatprep.subr.mxu0 %v1179
    %v1181 = vand.u32 %v93, 4294901760
    %v1182 = vsub.f32 %v93, %v1181
    %v1183 = vand.u32 %v1182, 4294901760
    %1184 = vmatpush1.msra.mxu0 %v1183
    %v1185 = vand.u32 %v96, 4294901760
    %v1186 = vsub.f32 %v96, %v1185
    %v1187 = vand.u32 %v1186, 4294901760
    %1188 = vmatprep.subr.mxu0 %v1187
    %v1189 = vand.u32 %v95, 4294901760
    %v1190 = vsub.f32 %v95, %v1189
    %v1191 = vand.u32 %v1190, 4294901760
    %1192 = vmatpush1.msra.mxu0 %v1191
    %v1193 = vand.u32 %v98, 4294901760
    %v1194 = vsub.f32 %v98, %v1193
    %v1195 = vand.u32 %v1194, 4294901760
    %1196 = vmatprep.subr.mxu0 %v1195
    %v1197 = vand.u32 %v97, 4294901760
    %v1198 = vsub.f32 %v97, %v1197
    %v1199 = vand.u32 %v1198, 4294901760
    %1200 = vmatpush1.msra.mxu0 %v1199
    %v1201 = vand.u32 %v100, 4294901760
    %v1202 = vsub.f32 %v100, %v1201
    %v1203 = vand.u32 %v1202, 4294901760
    %1204 = vmatprep.subr.mxu0 %v1203
    %v1205 = vand.u32 %v99, 4294901760
    %v1206 = vsub.f32 %v99, %v1205
    %v1207 = vand.u32 %v1206, 4294901760
    %1208 = vmatpush1.msra.mxu0 %v1207
    %v1209 = vand.u32 %v102, 4294901760
    %v1210 = vsub.f32 %v102, %v1209
    %v1211 = vand.u32 %v1210, 4294901760
    %1212 = vmatprep.subr.mxu0 %v1211
    %v1213 = vand.u32 %v101, 4294901760
    %v1214 = vsub.f32 %v101, %v1213
    %v1215 = vand.u32 %v1214, 4294901760
    %1216 = vmatpush1.msra.mxu0 %v1215
    %v1217 = vand.u32 %v104, 4294901760
    %v1218 = vsub.f32 %v104, %v1217
    %v1219 = vand.u32 %v1218, 4294901760
    %1220 = vmatprep.subr.mxu0 %v1219
    %v1221 = vand.u32 %v103, 4294901760
    %v1222 = vsub.f32 %v103, %v1221
    %v1223 = vand.u32 %v1222, 4294901760
    %1224 = vmatpush1.msra.mxu0 %v1223
    %v1225 = vand.u32 %v106, 4294901760
    %v1226 = vsub.f32 %v106, %v1225
    %v1227 = vand.u32 %v1226, 4294901760
    %1228 = vmatprep.subr.mxu0 %v1227
    %v1229 = vand.u32 %v105, 4294901760
    %v1230 = vsub.f32 %v105, %v1229
    %v1231 = vand.u32 %v1230, 4294901760
    %1232 = vmatpush1.msra.mxu0 %v1231
    %v1233 = vand.u32 %v108, 4294901760
    %v1234 = vsub.f32 %v108, %v1233
    %v1235 = vand.u32 %v1234, 4294901760
    %1236 = vmatprep.subr.mxu0 %v1235
    %v1237 = vand.u32 %v107, 4294901760
    %v1238 = vsub.f32 %v107, %v1237
    %v1239 = vand.u32 %v1238, 4294901760
    %1240 = vmatpush1.msra.mxu0 %v1239
    %v1241 = vand.u32 %v110, 4294901760
    %v1242 = vsub.f32 %v110, %v1241
    %v1243 = vand.u32 %v1242, 4294901760
    %1244 = vmatprep.subr.mxu0 %v1243
    %v1245 = vand.u32 %v109, 4294901760
    %v1246 = vsub.f32 %v109, %v1245
    %v1247 = vand.u32 %v1246, 4294901760
    %1248 = vmatpush1.msra.mxu0 %v1247
    %v1249 = vand.u32 %v112, 4294901760
    %v1250 = vsub.f32 %v112, %v1249
    %v1251 = vand.u32 %v1250, 4294901760
    %1252 = vmatprep.subr.mxu0 %v1251
    %v1253 = vand.u32 %v111, 4294901760
    %v1254 = vsub.f32 %v111, %v1253
    %v1255 = vand.u32 %v1254, 4294901760
    %1256 = vmatpush1.msra.mxu0 %v1255
    %v1257 = vand.u32 %v114, 4294901760
    %v1258 = vsub.f32 %v114, %v1257
    %v1259 = vand.u32 %v1258, 4294901760
    %1260 = vmatprep.subr.mxu0 %v1259
    %v1261 = vand.u32 %v113, 4294901760
    %v1262 = vsub.f32 %v113, %v1261
    %v1263 = vand.u32 %v1262, 4294901760
    %1264 = vmatpush1.msra.mxu0 %v1263
    %v1265 = vand.u32 %v116, 4294901760
    %v1266 = vsub.f32 %v116, %v1265
    %v1267 = vand.u32 %v1266, 4294901760
    %1268 = vmatprep.subr.mxu0 %v1267
    %v1269 = vand.u32 %v115, 4294901760
    %v1270 = vsub.f32 %v115, %v1269
    %v1271 = vand.u32 %v1270, 4294901760
    %1272 = vmatpush1.msra.mxu0 %v1271
    %v1273 = vand.u32 %v118, 4294901760
    %v1274 = vsub.f32 %v118, %v1273
    %v1275 = vand.u32 %v1274, 4294901760
    %1276 = vmatprep.subr.mxu0 %v1275
    %v1277 = vand.u32 %v117, 4294901760
    %v1278 = vsub.f32 %v117, %v1277
    %v1279 = vand.u32 %v1278, 4294901760
    %1280 = vmatpush1.msra.mxu0 %v1279
    %v1281 = vand.u32 %v120, 4294901760
    %v1282 = vsub.f32 %v120, %v1281
    %v1283 = vand.u32 %v1282, 4294901760
    %1284 = vmatprep.subr.mxu0 %v1283
    %v1285 = vand.u32 %v119, 4294901760
    %v1286 = vsub.f32 %v119, %v1285
    %v1287 = vand.u32 %v1286, 4294901760
    %1288 = vmatpush1.msra.mxu0 %v1287
    %v1289 = vand.u32 %v122, 4294901760
    %v1290 = vsub.f32 %v122, %v1289
    %v1291 = vand.u32 %v1290, 4294901760
    %1292 = vmatprep.subr.mxu0 %v1291
    %v1293 = vand.u32 %v121, 4294901760
    %v1294 = vsub.f32 %v121, %v1293
    %v1295 = vand.u32 %v1294, 4294901760
    %1296 = vmatpush1.msra.mxu0 %v1295
    %v1297 = vand.u32 %v124, 4294901760
    %v1298 = vsub.f32 %v124, %v1297
    %v1299 = vand.u32 %v1298, 4294901760
    %1300 = vmatprep.subr.mxu0 %v1299
    %v1301 = vand.u32 %v123, 4294901760
    %v1302 = vsub.f32 %v123, %v1301
    %v1303 = vand.u32 %v1302, 4294901760
    %1304 = vmatpush1.msra.mxu0 %v1303
    %v1305 = vand.u32 %v126, 4294901760
    %v1306 = vsub.f32 %v126, %v1305
    %v1307 = vand.u32 %v1306, 4294901760
    %1308 = vmatprep.subr.mxu0 %v1307
    %v1309 = vand.u32 %v125, 4294901760
    %v1310 = vsub.f32 %v125, %v1309
    %v1311 = vand.u32 %v1310, 4294901760
    %1312 = vmatpush1.msra.mxu0 %v1311
    %v1313 = vand.u32 %v128, 4294901760
    %v1314 = vsub.f32 %v128, %v1313
    %v1315 = vand.u32 %v1314, 4294901760
    %1316 = vmatprep.subr.mxu0 %v1315
    %v1317 = vand.u32 %v127, 4294901760
    %v1318 = vsub.f32 %v127, %v1317
    %v1319 = vand.u32 %v1318, 4294901760
    %1320 = vmatpush1.msra.mxu0 %v1319
    %v1321 = vand.u32 %v130, 4294901760
    %v1322 = vsub.f32 %v130, %v1321
    %v1323 = vand.u32 %v1322, 4294901760
    %1324 = vmatprep.subr.mxu0 %v1323
    %v1325 = vand.u32 %v129, 4294901760
    %v1326 = vsub.f32 %v129, %v1325
    %v1327 = vand.u32 %v1326, 4294901760
    %1328 = vmatpush1.msra.mxu0 %v1327
    %v1329 = vand.u32 %v132, 4294901760
    %v1330 = vsub.f32 %v132, %v1329
    %v1331 = vand.u32 %v1330, 4294901760
    %1332 = vmatprep.subr.mxu0 %v1331
    %v1333 = vand.u32 %v131, 4294901760
    %v1334 = vsub.f32 %v131, %v1333
    %v1335 = vand.u32 %v1334, 4294901760
    %1336 = vmatpush1.msra.mxu0 %v1335
    %v1337 = vand.u32 %v198, 4294901760
    %1338 = vmatprep.mubr.f32.mxu0 %v1337
    %v1339 = vand.u32 %v197, 4294901760
    %1340 = vmatmul.mubr.f32.gmra.mrb[0].mxu0 %v1339
    %v1341 = vpop.f32.mrb[0].mxu0
    %v1342 = vadd.f32 %v1077, %v1341
    %v1343 = vpop.f32.mrb[0].mxu0
    %v1344 = vadd.f32 %v1079, %v1343
    %1345 = vdwg.mxu0
    %v1346 = vand.u32 %v70, 4294901760
    %1347 = vmatprep.subr.mxu0 %v1346
    %v1348 = vand.u32 %v69, 4294901760
    %1349 = vmatpush1.msra.mxu0 %v1348
    %v1350 = vand.u32 %v72, 4294901760
    %1351 = vmatprep.subr.mxu0 %v1350
    %v1352 = vand.u32 %v71, 4294901760
    %1353 = vmatpush1.msra.mxu0 %v1352
    %v1354 = vand.u32 %v74, 4294901760
    %1355 = vmatprep.subr.mxu0 %v1354
    %v1356 = vand.u32 %v73, 4294901760
    %1357 = vmatpush1.msra.mxu0 %v1356
    %v1358 = vand.u32 %v76, 4294901760
    %1359 = vmatprep.subr.mxu0 %v1358
    %v1360 = vand.u32 %v75, 4294901760
    %1361 = vmatpush1.msra.mxu0 %v1360
    %v1362 = vand.u32 %v78, 4294901760
    %1363 = vmatprep.subr.mxu0 %v1362
    %v1364 = vand.u32 %v77, 4294901760
    %1365 = vmatpush1.msra.mxu0 %v1364
    %v1366 = vand.u32 %v80, 4294901760
    %1367 = vmatprep.subr.mxu0 %v1366
    %v1368 = vand.u32 %v79, 4294901760
    %1369 = vmatpush1.msra.mxu0 %v1368
    %v1370 = vand.u32 %v82, 4294901760
    %1371 = vmatprep.subr.mxu0 %v1370
    %v1372 = vand.u32 %v81, 4294901760
    %1373 = vmatpush1.msra.mxu0 %v1372
    %v1374 = vand.u32 %v84, 4294901760
    %1375 = vmatprep.subr.mxu0 %v1374
    %v1376 = vand.u32 %v83, 4294901760
    %1377 = vmatpush1.msra.mxu0 %v1376
    %v1378 = vand.u32 %v86, 4294901760
    %1379 = vmatprep.subr.mxu0 %v1378
    %v1380 = vand.u32 %v85, 4294901760
    %1381 = vmatpush1.msra.mxu0 %v1380
    %v1382 = vand.u32 %v88, 4294901760
    %1383 = vmatprep.subr.mxu0 %v1382
    %v1384 = vand.u32 %v87, 4294901760
    %1385 = vmatpush1.msra.mxu0 %v1384
    %v1386 = vand.u32 %v90, 4294901760
    %1387 = vmatprep.subr.mxu0 %v1386
    %v1388 = vand.u32 %v89, 4294901760
    %1389 = vmatpush1.msra.mxu0 %v1388
    %v1390 = vand.u32 %v92, 4294901760
    %1391 = vmatprep.subr.mxu0 %v1390
    %v1392 = vand.u32 %v91, 4294901760
    %1393 = vmatpush1.msra.mxu0 %v1392
    %v1394 = vand.u32 %v94, 4294901760
    %1395 = vmatprep.subr.mxu0 %v1394
    %v1396 = vand.u32 %v93, 4294901760
    %1397 = vmatpush1.msra.mxu0 %v1396
    %v1398 = vand.u32 %v96, 4294901760
    %1399 = vmatprep.subr.mxu0 %v1398
    %v1400 = vand.u32 %v95, 4294901760
    %1401 = vmatpush1.msra.mxu0 %v1400
    %v1402 = vand.u32 %v98, 4294901760
    %1403 = vmatprep.subr.mxu0 %v1402
    %v1404 = vand.u32 %v97, 4294901760
    %1405 = vmatpush1.msra.mxu0 %v1404
    %v1406 = vand.u32 %v100, 4294901760
    %1407 = vmatprep.subr.mxu0 %v1406
    %v1408 = vand.u32 %v99, 4294901760
    %1409 = vmatpush1.msra.mxu0 %v1408
    %v1410 = vand.u32 %v102, 4294901760
    %1411 = vmatprep.subr.mxu0 %v1410
    %v1412 = vand.u32 %v101, 4294901760
    %1413 = vmatpush1.msra.mxu0 %v1412
    %v1414 = vand.u32 %v104, 4294901760
    %1415 = vmatprep.subr.mxu0 %v1414
    %v1416 = vand.u32 %v103, 4294901760
    %1417 = vmatpush1.msra.mxu0 %v1416
    %v1418 = vand.u32 %v106, 4294901760
    %1419 = vmatprep.subr.mxu0 %v1418
    %v1420 = vand.u32 %v105, 4294901760
    %1421 = vmatpush1.msra.mxu0 %v1420
    %v1422 = vand.u32 %v108, 4294901760
    %1423 = vmatprep.subr.mxu0 %v1422
    %v1424 = vand.u32 %v107, 4294901760
    %1425 = vmatpush1.msra.mxu0 %v1424
    %v1426 = vand.u32 %v110, 4294901760
    %1427 = vmatprep.subr.mxu0 %v1426
    %v1428 = vand.u32 %v109, 4294901760
    %1429 = vmatpush1.msra.mxu0 %v1428
    %v1430 = vand.u32 %v112, 4294901760
    %1431 = vmatprep.subr.mxu0 %v1430
    %v1432 = vand.u32 %v111, 4294901760
    %1433 = vmatpush1.msra.mxu0 %v1432
    %v1434 = vand.u32 %v114, 4294901760
    %1435 = vmatprep.subr.mxu0 %v1434
    %v1436 = vand.u32 %v113, 4294901760
    %1437 = vmatpush1.msra.mxu0 %v1436
    %v1438 = vand.u32 %v116, 4294901760
    %1439 = vmatprep.subr.mxu0 %v1438
    %v1440 = vand.u32 %v115, 4294901760
    %1441 = vmatpush1.msra.mxu0 %v1440
    %v1442 = vand.u32 %v118, 4294901760
    %1443 = vmatprep.subr.mxu0 %v1442
    %v1444 = vand.u32 %v117, 4294901760
    %1445 = vmatpush1.msra.mxu0 %v1444
    %v1446 = vand.u32 %v120, 4294901760
    %1447 = vmatprep.subr.mxu0 %v1446
    %v1448 = vand.u32 %v119, 4294901760
    %1449 = vmatpush1.msra.mxu0 %v1448
    %v1450 = vand.u32 %v122, 4294901760
    %1451 = vmatprep.subr.mxu0 %v1450
    %v1452 = vand.u32 %v121, 4294901760
    %1453 = vmatpush1.msra.mxu0 %v1452
    %v1454 = vand.u32 %v124, 4294901760
    %1455 = vmatprep.subr.mxu0 %v1454
    %v1456 = vand.u32 %v123, 4294901760
    %1457 = vmatpush1.msra.mxu0 %v1456
    %v1458 = vand.u32 %v126, 4294901760
    %1459 = vmatprep.subr.mxu0 %v1458
    %v1460 = vand.u32 %v125, 4294901760
    %1461 = vmatpush1.msra.mxu0 %v1460
    %v1462 = vand.u32 %v128, 4294901760
    %1463 = vmatprep.subr.mxu0 %v1462
    %v1464 = vand.u32 %v127, 4294901760
    %1465 = vmatpush1.msra.mxu0 %v1464
    %v1466 = vand.u32 %v130, 4294901760
    %1467 = vmatprep.subr.mxu0 %v1466
    %v1468 = vand.u32 %v129, 4294901760
    %1469 = vmatpush1.msra.mxu0 %v1468
    %v1470 = vand.u32 %v132, 4294901760
    %1471 = vmatprep.subr.mxu0 %v1470
    %v1472 = vand.u32 %v131, 4294901760
    %1473 = vmatpush1.msra.mxu0 %v1472
    %v1474 = vand.u32 %v198, 4294901760
    %1475 = vmatprep.mubr.f32.mxu0 %v1474
    %v1476 = vand.u32 %v197, 4294901760
    %1477 = vmatmul.mubr.f32.gmra.mrb[0].mxu0 %v1476
    %v1478 = vpop.f32.mrb[0].mxu0
    %v1479 = vadd.f32 %v1342, %v1478
    %v1480 = vpop.f32.mrb[0].mxu0
    %v1481 = vadd.f32 %v1344, %v1480
    %1482 = vdwg.mxu0
    %v1483 = vand.u32 %v134, 4294901760
    %1484 = vmatprep.subr.mxu0 %v1483
    %v1485 = vand.u32 %v133, 4294901760
    %1486 = vmatpush1.msra.mxu0 %v1485
    %v1487 = vand.u32 %v136, 4294901760
    %1488 = vmatprep.subr.mxu0 %v1487
    %v1489 = vand.u32 %v135, 4294901760
    %1490 = vmatpush1.msra.mxu0 %v1489
    %v1491 = vand.u32 %v138, 4294901760
    %1492 = vmatprep.subr.mxu0 %v1491
    %v1493 = vand.u32 %v137, 4294901760
    %1494 = vmatpush1.msra.mxu0 %v1493
    %v1495 = vand.u32 %v140, 4294901760
    %1496 = vmatprep.subr.mxu0 %v1495
    %v1497 = vand.u32 %v139, 4294901760
    %1498 = vmatpush1.msra.mxu0 %v1497
    %v1499 = vand.u32 %v142, 4294901760
    %1500 = vmatprep.subr.mxu0 %v1499
    %v1501 = vand.u32 %v141, 4294901760
    %1502 = vmatpush1.msra.mxu0 %v1501
    %v1503 = vand.u32 %v144, 4294901760
    %1504 = vmatprep.subr.mxu0 %v1503
    %v1505 = vand.u32 %v143, 4294901760
    %1506 = vmatpush1.msra.mxu0 %v1505
    %v1507 = vand.u32 %v146, 4294901760
    %1508 = vmatprep.subr.mxu0 %v1507
    %v1509 = vand.u32 %v145, 4294901760
    %1510 = vmatpush1.msra.mxu0 %v1509
    %v1511 = vand.u32 %v148, 4294901760
    %1512 = vmatprep.subr.mxu0 %v1511
    %v1513 = vand.u32 %v147, 4294901760
    %1514 = vmatpush1.msra.mxu0 %v1513
    %v1515 = vand.u32 %v150, 4294901760
    %1516 = vmatprep.subr.mxu0 %v1515
    %v1517 = vand.u32 %v149, 4294901760
    %1518 = vmatpush1.msra.mxu0 %v1517
    %v1519 = vand.u32 %v152, 4294901760
    %1520 = vmatprep.subr.mxu0 %v1519
    %v1521 = vand.u32 %v151, 4294901760
    %1522 = vmatpush1.msra.mxu0 %v1521
    %v1523 = vand.u32 %v154, 4294901760
    %1524 = vmatprep.subr.mxu0 %v1523
    %v1525 = vand.u32 %v153, 4294901760
    %1526 = vmatpush1.msra.mxu0 %v1525
    %v1527 = vand.u32 %v156, 4294901760
    %1528 = vmatprep.subr.mxu0 %v1527
    %v1529 = vand.u32 %v155, 4294901760
    %1530 = vmatpush1.msra.mxu0 %v1529
    %v1531 = vand.u32 %v158, 4294901760
    %1532 = vmatprep.subr.mxu0 %v1531
    %v1533 = vand.u32 %v157, 4294901760
    %1534 = vmatpush1.msra.mxu0 %v1533
    %v1535 = vand.u32 %v160, 4294901760
    %1536 = vmatprep.subr.mxu0 %v1535
    %v1537 = vand.u32 %v159, 4294901760
    %1538 = vmatpush1.msra.mxu0 %v1537
    %v1539 = vand.u32 %v162, 4294901760
    %1540 = vmatprep.subr.mxu0 %v1539
    %v1541 = vand.u32 %v161, 4294901760
    %1542 = vmatpush1.msra.mxu0 %v1541
    %v1543 = vand.u32 %v164, 4294901760
    %1544 = vmatprep.subr.mxu0 %v1543
    %v1545 = vand.u32 %v163, 4294901760
    %1546 = vmatpush1.msra.mxu0 %v1545
    %v1547 = vand.u32 %v166, 4294901760
    %1548 = vmatprep.subr.mxu0 %v1547
    %v1549 = vand.u32 %v165, 4294901760
    %1550 = vmatpush1.msra.mxu0 %v1549
    %v1551 = vand.u32 %v168, 4294901760
    %1552 = vmatprep.subr.mxu0 %v1551
    %v1553 = vand.u32 %v167, 4294901760
    %1554 = vmatpush1.msra.mxu0 %v1553
    %v1555 = vand.u32 %v170, 4294901760
    %1556 = vmatprep.subr.mxu0 %v1555
    %v1557 = vand.u32 %v169, 4294901760
    %1558 = vmatpush1.msra.mxu0 %v1557
    %v1559 = vand.u32 %v172, 4294901760
    %1560 = vmatprep.subr.mxu0 %v1559
    %v1561 = vand.u32 %v171, 4294901760
    %1562 = vmatpush1.msra.mxu0 %v1561
    %v1563 = vand.u32 %v174, 4294901760
    %1564 = vmatprep.subr.mxu0 %v1563
    %v1565 = vand.u32 %v173, 4294901760
    %1566 = vmatpush1.msra.mxu0 %v1565
    %v1567 = vand.u32 %v176, 4294901760
    %1568 = vmatprep.subr.mxu0 %v1567
    %v1569 = vand.u32 %v175, 4294901760
    %1570 = vmatpush1.msra.mxu0 %v1569
    %v1571 = vand.u32 %v178, 4294901760
    %1572 = vmatprep.subr.mxu0 %v1571
    %v1573 = vand.u32 %v177, 4294901760
    %1574 = vmatpush1.msra.mxu0 %v1573
    %v1575 = vand.u32 %v180, 4294901760
    %1576 = vmatprep.subr.mxu0 %v1575
    %v1577 = vand.u32 %v179, 4294901760
    %1578 = vmatpush1.msra.mxu0 %v1577
    %v1579 = vand.u32 %v182, 4294901760
    %1580 = vmatprep.subr.mxu0 %v1579
    %v1581 = vand.u32 %v181, 4294901760
    %1582 = vmatpush1.msra.mxu0 %v1581
    %v1583 = vand.u32 %v184, 4294901760
    %1584 = vmatprep.subr.mxu0 %v1583
    %v1585 = vand.u32 %v183, 4294901760
    %1586 = vmatpush1.msra.mxu0 %v1585
    %v1587 = vand.u32 %v186, 4294901760
    %1588 = vmatprep.subr.mxu0 %v1587
    %v1589 = vand.u32 %v185, 4294901760
    %1590 = vmatpush1.msra.mxu0 %v1589
    %v1591 = vand.u32 %v188, 4294901760
    %1592 = vmatprep.subr.mxu0 %v1591
    %v1593 = vand.u32 %v187, 4294901760
    %1594 = vmatpush1.msra.mxu0 %v1593
    %v1595 = vand.u32 %v190, 4294901760
    %1596 = vmatprep.subr.mxu0 %v1595
    %v1597 = vand.u32 %v189, 4294901760
    %1598 = vmatpush1.msra.mxu0 %v1597
    %v1599 = vand.u32 %v192, 4294901760
    %1600 = vmatprep.subr.mxu0 %v1599
    %v1601 = vand.u32 %v191, 4294901760
    %1602 = vmatpush1.msra.mxu0 %v1601
    %v1603 = vand.u32 %v194, 4294901760
    %1604 = vmatprep.subr.mxu0 %v1603
    %v1605 = vand.u32 %v193, 4294901760
    %1606 = vmatpush1.msra.mxu0 %v1605
    %v1607 = vand.u32 %v196, 4294901760
    %1608 = vmatprep.subr.mxu0 %v1607
    %v1609 = vand.u32 %v195, 4294901760
    %1610 = vmatpush1.msra.mxu0 %v1609
    %v1611 = vand.u32 %v198, 4294901760
    %v1612 = vsub.f32 %v198, %v1611
    %v1613 = vand.u32 %v1612, 4294901760
    %v1614 = vsub.f32 %v1612, %v1613
    %v1615 = vand.u32 %v1614, 4294901760
    %1616 = vmatprep.mubr.f32.mxu0 %v1615
    %v1617 = vand.u32 %v197, 4294901760
    %v1618 = vsub.f32 %v197, %v1617
    %v1619 = vand.u32 %v1618, 4294901760
    %v1620 = vsub.f32 %v1618, %v1619
    %v1621 = vand.u32 %v1620, 4294901760
    %1622 = vmatmul.mubr.f32.gmra.mrb[0].mxu0 %v1621
    %v1623 = vpop.f32.mrb[0].mxu0
    %v1624 = vadd.f32 0.0, %v1623
    %v1625 = vpop.f32.mrb[0].mxu0
    %v1626 = vadd.f32 0.0, %v1625
    %1627 = vdwg.mxu0
    %v1628 = vand.u32 %v134, 4294901760
    %v1629 = vsub.f32 %v134, %v1628
    %v1630 = vand.u32 %v1629, 4294901760
    %v1631 = vsub.f32 %v1629, %v1630
    %v1632 = vand.u32 %v1631, 4294901760
    %1633 = vmatprep.subr.mxu0 %v1632
    %v1634 = vand.u32 %v133, 4294901760
    %v1635 = vsub.f32 %v133, %v1634
    %v1636 = vand.u32 %v1635, 4294901760
    %v1637 = vsub.f32 %v1635, %v1636
    %v1638 = vand.u32 %v1637, 4294901760
    %1639 = vmatpush1.msra.mxu0 %v1638
    %v1640 = vand.u32 %v136, 4294901760
    %v1641 = vsub.f32 %v136, %v1640
    %v1642 = vand.u32 %v1641, 4294901760
    %v1643 = vsub.f32 %v1641, %v1642
    %v1644 = vand.u32 %v1643, 4294901760
    %1645 = vmatprep.subr.mxu0 %v1644
    %v1646 = vand.u32 %v135, 4294901760
    %v1647 = vsub.f32 %v135, %v1646
    %v1648 = vand.u32 %v1647, 4294901760
    %v1649 = vsub.f32 %v1647, %v1648
    %v1650 = vand.u32 %v1649, 4294901760
    %1651 = vmatpush1.msra.mxu0 %v1650
    %v1652 = vand.u32 %v138, 4294901760
    %v1653 = vsub.f32 %v138, %v1652
    %v1654 = vand.u32 %v1653, 4294901760
    %v1655 = vsub.f32 %v1653, %v1654
    %v1656 = vand.u32 %v1655, 4294901760
    %1657 = vmatprep.subr.mxu0 %v1656
    %v1658 = vand.u32 %v137, 4294901760
    %v1659 = vsub.f32 %v137, %v1658
    %v1660 = vand.u32 %v1659, 4294901760
    %v1661 = vsub.f32 %v1659, %v1660
    %v1662 = vand.u32 %v1661, 4294901760
    %1663 = vmatpush1.msra.mxu0 %v1662
    %v1664 = vand.u32 %v140, 4294901760
    %v1665 = vsub.f32 %v140, %v1664
    %v1666 = vand.u32 %v1665, 4294901760
    %v1667 = vsub.f32 %v1665, %v1666
    %v1668 = vand.u32 %v1667, 4294901760
    %1669 = vmatprep.subr.mxu0 %v1668
    %v1670 = vand.u32 %v139, 4294901760
    %v1671 = vsub.f32 %v139, %v1670
    %v1672 = vand.u32 %v1671, 4294901760
    %v1673 = vsub.f32 %v1671, %v1672
    %v1674 = vand.u32 %v1673, 4294901760
    %1675 = vmatpush1.msra.mxu0 %v1674
    %v1676 = vand.u32 %v142, 4294901760
    %v1677 = vsub.f32 %v142, %v1676
    %v1678 = vand.u32 %v1677, 4294901760
    %v1679 = vsub.f32 %v1677, %v1678
    %v1680 = vand.u32 %v1679, 4294901760
    %1681 = vmatprep.subr.mxu0 %v1680
    %v1682 = vand.u32 %v141, 4294901760
    %v1683 = vsub.f32 %v141, %v1682
    %v1684 = vand.u32 %v1683, 4294901760
    %v1685 = vsub.f32 %v1683, %v1684
    %v1686 = vand.u32 %v1685, 4294901760
    %1687 = vmatpush1.msra.mxu0 %v1686
    %v1688 = vand.u32 %v144, 4294901760
    %v1689 = vsub.f32 %v144, %v1688
    %v1690 = vand.u32 %v1689, 4294901760
    %v1691 = vsub.f32 %v1689, %v1690
    %v1692 = vand.u32 %v1691, 4294901760
    %1693 = vmatprep.subr.mxu0 %v1692
    %v1694 = vand.u32 %v143, 4294901760
    %v1695 = vsub.f32 %v143, %v1694
    %v1696 = vand.u32 %v1695, 4294901760
    %v1697 = vsub.f32 %v1695, %v1696
    %v1698 = vand.u32 %v1697, 4294901760
    %1699 = vmatpush1.msra.mxu0 %v1698
    %v1700 = vand.u32 %v146, 4294901760
    %v1701 = vsub.f32 %v146, %v1700
    %v1702 = vand.u32 %v1701, 4294901760
    %v1703 = vsub.f32 %v1701, %v1702
    %v1704 = vand.u32 %v1703, 4294901760
    %1705 = vmatprep.subr.mxu0 %v1704
    %v1706 = vand.u32 %v145, 4294901760
    %v1707 = vsub.f32 %v145, %v1706
    %v1708 = vand.u32 %v1707, 4294901760
    %v1709 = vsub.f32 %v1707, %v1708
    %v1710 = vand.u32 %v1709, 4294901760
    %1711 = vmatpush1.msra.mxu0 %v1710
    %v1712 = vand.u32 %v148, 4294901760
    %v1713 = vsub.f32 %v148, %v1712
    %v1714 = vand.u32 %v1713, 4294901760
    %v1715 = vsub.f32 %v1713, %v1714
    %v1716 = vand.u32 %v1715, 4294901760
    %1717 = vmatprep.subr.mxu0 %v1716
    %v1718 = vand.u32 %v147, 4294901760
    %v1719 = vsub.f32 %v147, %v1718
    %v1720 = vand.u32 %v1719, 4294901760
    %v1721 = vsub.f32 %v1719, %v1720
    %v1722 = vand.u32 %v1721, 4294901760
    %1723 = vmatpush1.msra.mxu0 %v1722
    %v1724 = vand.u32 %v150, 4294901760
    %v1725 = vsub.f32 %v150, %v1724
    %v1726 = vand.u32 %v1725, 4294901760
    %v1727 = vsub.f32 %v1725, %v1726
    %v1728 = vand.u32 %v1727, 4294901760
    %1729 = vmatprep.subr.mxu0 %v1728
    %v1730 = vand.u32 %v149, 4294901760
    %v1731 = vsub.f32 %v149, %v1730
    %v1732 = vand.u32 %v1731, 4294901760
    %v1733 = vsub.f32 %v1731, %v1732
    %v1734 = vand.u32 %v1733, 4294901760
    %1735 = vmatpush1.msra.mxu0 %v1734
    %v1736 = vand.u32 %v152, 4294901760
    %v1737 = vsub.f32 %v152, %v1736
    %v1738 = vand.u32 %v1737, 4294901760
    %v1739 = vsub.f32 %v1737, %v1738
    %v1740 = vand.u32 %v1739, 4294901760
    %1741 = vmatprep.subr.mxu0 %v1740
    %v1742 = vand.u32 %v151, 4294901760
    %v1743 = vsub.f32 %v151, %v1742
    %v1744 = vand.u32 %v1743, 4294901760
    %v1745 = vsub.f32 %v1743, %v1744
    %v1746 = vand.u32 %v1745, 4294901760
    %1747 = vmatpush1.msra.mxu0 %v1746
    %v1748 = vand.u32 %v154, 4294901760
    %v1749 = vsub.f32 %v154, %v1748
    %v1750 = vand.u32 %v1749, 4294901760
    %v1751 = vsub.f32 %v1749, %v1750
    %v1752 = vand.u32 %v1751, 4294901760
    %1753 = vmatprep.subr.mxu0 %v1752
    %v1754 = vand.u32 %v153, 4294901760
    %v1755 = vsub.f32 %v153, %v1754
    %v1756 = vand.u32 %v1755, 4294901760
    %v1757 = vsub.f32 %v1755, %v1756
    %v1758 = vand.u32 %v1757, 4294901760
    %1759 = vmatpush1.msra.mxu0 %v1758
    %v1760 = vand.u32 %v156, 4294901760
    %v1761 = vsub.f32 %v156, %v1760
    %v1762 = vand.u32 %v1761, 4294901760
    %v1763 = vsub.f32 %v1761, %v1762
    %v1764 = vand.u32 %v1763, 4294901760
    %1765 = vmatprep.subr.mxu0 %v1764
    %v1766 = vand.u32 %v155, 4294901760
    %v1767 = vsub.f32 %v155, %v1766
    %v1768 = vand.u32 %v1767, 4294901760
    %v1769 = vsub.f32 %v1767, %v1768
    %v1770 = vand.u32 %v1769, 4294901760
    %1771 = vmatpush1.msra.mxu0 %v1770
    %v1772 = vand.u32 %v158, 4294901760
    %v1773 = vsub.f32 %v158, %v1772
    %v1774 = vand.u32 %v1773, 4294901760
    %v1775 = vsub.f32 %v1773, %v1774
    %v1776 = vand.u32 %v1775, 4294901760
    %1777 = vmatprep.subr.mxu0 %v1776
    %v1778 = vand.u32 %v157, 4294901760
    %v1779 = vsub.f32 %v157, %v1778
    %v1780 = vand.u32 %v1779, 4294901760
    %v1781 = vsub.f32 %v1779, %v1780
    %v1782 = vand.u32 %v1781, 4294901760
    %1783 = vmatpush1.msra.mxu0 %v1782
    %v1784 = vand.u32 %v160, 4294901760
    %v1785 = vsub.f32 %v160, %v1784
    %v1786 = vand.u32 %v1785, 4294901760
    %v1787 = vsub.f32 %v1785, %v1786
    %v1788 = vand.u32 %v1787, 4294901760
    %1789 = vmatprep.subr.mxu0 %v1788
    %v1790 = vand.u32 %v159, 4294901760
    %v1791 = vsub.f32 %v159, %v1790
    %v1792 = vand.u32 %v1791, 4294901760
    %v1793 = vsub.f32 %v1791, %v1792
    %v1794 = vand.u32 %v1793, 4294901760
    %1795 = vmatpush1.msra.mxu0 %v1794
    %v1796 = vand.u32 %v162, 4294901760
    %v1797 = vsub.f32 %v162, %v1796
    %v1798 = vand.u32 %v1797, 4294901760
    %v1799 = vsub.f32 %v1797, %v1798
    %v1800 = vand.u32 %v1799, 4294901760
    %1801 = vmatprep.subr.mxu0 %v1800
    %v1802 = vand.u32 %v161, 4294901760
    %v1803 = vsub.f32 %v161, %v1802
    %v1804 = vand.u32 %v1803, 4294901760
    %v1805 = vsub.f32 %v1803, %v1804
    %v1806 = vand.u32 %v1805, 4294901760
    %1807 = vmatpush1.msra.mxu0 %v1806
    %v1808 = vand.u32 %v164, 4294901760
    %v1809 = vsub.f32 %v164, %v1808
    %v1810 = vand.u32 %v1809, 4294901760
    %v1811 = vsub.f32 %v1809, %v1810
    %v1812 = vand.u32 %v1811, 4294901760
    %1813 = vmatprep.subr.mxu0 %v1812
    %v1814 = vand.u32 %v163, 4294901760
    %v1815 = vsub.f32 %v163, %v1814
    %v1816 = vand.u32 %v1815, 4294901760
    %v1817 = vsub.f32 %v1815, %v1816
    %v1818 = vand.u32 %v1817, 4294901760
    %1819 = vmatpush1.msra.mxu0 %v1818
    %v1820 = vand.u32 %v166, 4294901760
    %v1821 = vsub.f32 %v166, %v1820
    %v1822 = vand.u32 %v1821, 4294901760
    %v1823 = vsub.f32 %v1821, %v1822
    %v1824 = vand.u32 %v1823, 4294901760
    %1825 = vmatprep.subr.mxu0 %v1824
    %v1826 = vand.u32 %v165, 4294901760
    %v1827 = vsub.f32 %v165, %v1826
    %v1828 = vand.u32 %v1827, 4294901760
    %v1829 = vsub.f32 %v1827, %v1828
    %v1830 = vand.u32 %v1829, 4294901760
    %1831 = vmatpush1.msra.mxu0 %v1830
    %v1832 = vand.u32 %v168, 4294901760
    %v1833 = vsub.f32 %v168, %v1832
    %v1834 = vand.u32 %v1833, 4294901760
    %v1835 = vsub.f32 %v1833, %v1834
    %v1836 = vand.u32 %v1835, 4294901760
    %1837 = vmatprep.subr.mxu0 %v1836
    %v1838 = vand.u32 %v167, 4294901760
    %v1839 = vsub.f32 %v167, %v1838
    %v1840 = vand.u32 %v1839, 4294901760
    %v1841 = vsub.f32 %v1839, %v1840
    %v1842 = vand.u32 %v1841, 4294901760
    %1843 = vmatpush1.msra.mxu0 %v1842
    %v1844 = vand.u32 %v170, 4294901760
    %v1845 = vsub.f32 %v170, %v1844
    %v1846 = vand.u32 %v1845, 4294901760
    %v1847 = vsub.f32 %v1845, %v1846
    %v1848 = vand.u32 %v1847, 4294901760
    %1849 = vmatprep.subr.mxu0 %v1848
    %v1850 = vand.u32 %v169, 4294901760
    %v1851 = vsub.f32 %v169, %v1850
    %v1852 = vand.u32 %v1851, 4294901760
    %v1853 = vsub.f32 %v1851, %v1852
    %v1854 = vand.u32 %v1853, 4294901760
    %1855 = vmatpush1.msra.mxu0 %v1854
    %v1856 = vand.u32 %v172, 4294901760
    %v1857 = vsub.f32 %v172, %v1856
    %v1858 = vand.u32 %v1857, 4294901760
    %v1859 = vsub.f32 %v1857, %v1858
    %v1860 = vand.u32 %v1859, 4294901760
    %1861 = vmatprep.subr.mxu0 %v1860
    %v1862 = vand.u32 %v171, 4294901760
    %v1863 = vsub.f32 %v171, %v1862
    %v1864 = vand.u32 %v1863, 4294901760
    %v1865 = vsub.f32 %v1863, %v1864
    %v1866 = vand.u32 %v1865, 4294901760
    %1867 = vmatpush1.msra.mxu0 %v1866
    %v1868 = vand.u32 %v174, 4294901760
    %v1869 = vsub.f32 %v174, %v1868
    %v1870 = vand.u32 %v1869, 4294901760
    %v1871 = vsub.f32 %v1869, %v1870
    %v1872 = vand.u32 %v1871, 4294901760
    %1873 = vmatprep.subr.mxu0 %v1872
    %v1874 = vand.u32 %v173, 4294901760
    %v1875 = vsub.f32 %v173, %v1874
    %v1876 = vand.u32 %v1875, 4294901760
    %v1877 = vsub.f32 %v1875, %v1876
    %v1878 = vand.u32 %v1877, 4294901760
    %1879 = vmatpush1.msra.mxu0 %v1878
    %v1880 = vand.u32 %v176, 4294901760
    %v1881 = vsub.f32 %v176, %v1880
    %v1882 = vand.u32 %v1881, 4294901760
    %v1883 = vsub.f32 %v1881, %v1882
    %v1884 = vand.u32 %v1883, 4294901760
    %1885 = vmatprep.subr.mxu0 %v1884
    %v1886 = vand.u32 %v175, 4294901760
    %v1887 = vsub.f32 %v175, %v1886
    %v1888 = vand.u32 %v1887, 4294901760
    %v1889 = vsub.f32 %v1887, %v1888
    %v1890 = vand.u32 %v1889, 4294901760
    %1891 = vmatpush1.msra.mxu0 %v1890
    %v1892 = vand.u32 %v178, 4294901760
    %v1893 = vsub.f32 %v178, %v1892
    %v1894 = vand.u32 %v1893, 4294901760
    %v1895 = vsub.f32 %v1893, %v1894
    %v1896 = vand.u32 %v1895, 4294901760
    %1897 = vmatprep.subr.mxu0 %v1896
    %v1898 = vand.u32 %v177, 4294901760
    %v1899 = vsub.f32 %v177, %v1898
    %v1900 = vand.u32 %v1899, 4294901760
    %v1901 = vsub.f32 %v1899, %v1900
    %v1902 = vand.u32 %v1901, 4294901760
    %1903 = vmatpush1.msra.mxu0 %v1902
    %v1904 = vand.u32 %v180, 4294901760
    %v1905 = vsub.f32 %v180, %v1904
    %v1906 = vand.u32 %v1905, 4294901760
    %v1907 = vsub.f32 %v1905, %v1906
    %v1908 = vand.u32 %v1907, 4294901760
    %1909 = vmatprep.subr.mxu0 %v1908
    %v1910 = vand.u32 %v179, 4294901760
    %v1911 = vsub.f32 %v179, %v1910
    %v1912 = vand.u32 %v1911, 4294901760
    %v1913 = vsub.f32 %v1911, %v1912
    %v1914 = vand.u32 %v1913, 4294901760
    %1915 = vmatpush1.msra.mxu0 %v1914
    %v1916 = vand.u32 %v182, 4294901760
    %v1917 = vsub.f32 %v182, %v1916
    %v1918 = vand.u32 %v1917, 4294901760
    %v1919 = vsub.f32 %v1917, %v1918
    %v1920 = vand.u32 %v1919, 4294901760
    %1921 = vmatprep.subr.mxu0 %v1920
    %v1922 = vand.u32 %v181, 4294901760
    %v1923 = vsub.f32 %v181, %v1922
    %v1924 = vand.u32 %v1923, 4294901760
    %v1925 = vsub.f32 %v1923, %v1924
    %v1926 = vand.u32 %v1925, 4294901760
    %1927 = vmatpush1.msra.mxu0 %v1926
    %v1928 = vand.u32 %v184, 4294901760
    %v1929 = vsub.f32 %v184, %v1928
    %v1930 = vand.u32 %v1929, 4294901760
    %v1931 = vsub.f32 %v1929, %v1930
    %v1932 = vand.u32 %v1931, 4294901760
    %1933 = vmatprep.subr.mxu0 %v1932
    %v1934 = vand.u32 %v183, 4294901760
    %v1935 = vsub.f32 %v183, %v1934
    %v1936 = vand.u32 %v1935, 4294901760
    %v1937 = vsub.f32 %v1935, %v1936
    %v1938 = vand.u32 %v1937, 4294901760
    %1939 = vmatpush1.msra.mxu0 %v1938
    %v1940 = vand.u32 %v186, 4294901760
    %v1941 = vsub.f32 %v186, %v1940
    %v1942 = vand.u32 %v1941, 4294901760
    %v1943 = vsub.f32 %v1941, %v1942
    %v1944 = vand.u32 %v1943, 4294901760
    %1945 = vmatprep.subr.mxu0 %v1944
    %v1946 = vand.u32 %v185, 4294901760
    %v1947 = vsub.f32 %v185, %v1946
    %v1948 = vand.u32 %v1947, 4294901760
    %v1949 = vsub.f32 %v1947, %v1948
    %v1950 = vand.u32 %v1949, 4294901760
    %1951 = vmatpush1.msra.mxu0 %v1950
    %v1952 = vand.u32 %v188, 4294901760
    %v1953 = vsub.f32 %v188, %v1952
    %v1954 = vand.u32 %v1953, 4294901760
    %v1955 = vsub.f32 %v1953, %v1954
    %v1956 = vand.u32 %v1955, 4294901760
    %1957 = vmatprep.subr.mxu0 %v1956
    %v1958 = vand.u32 %v187, 4294901760
    %v1959 = vsub.f32 %v187, %v1958
    %v1960 = vand.u32 %v1959, 4294901760
    %v1961 = vsub.f32 %v1959, %v1960
    %v1962 = vand.u32 %v1961, 4294901760
    %1963 = vmatpush1.msra.mxu0 %v1962
    %v1964 = vand.u32 %v190, 4294901760
    %v1965 = vsub.f32 %v190, %v1964
    %v1966 = vand.u32 %v1965, 4294901760
    %v1967 = vsub.f32 %v1965, %v1966
    %v1968 = vand.u32 %v1967, 4294901760
    %1969 = vmatprep.subr.mxu0 %v1968
    %v1970 = vand.u32 %v189, 4294901760
    %v1971 = vsub.f32 %v189, %v1970
    %v1972 = vand.u32 %v1971, 4294901760
    %v1973 = vsub.f32 %v1971, %v1972
    %v1974 = vand.u32 %v1973, 4294901760
    %1975 = vmatpush1.msra.mxu0 %v1974
    %v1976 = vand.u32 %v192, 4294901760
    %v1977 = vsub.f32 %v192, %v1976
    %v1978 = vand.u32 %v1977, 4294901760
    %v1979 = vsub.f32 %v1977, %v1978
    %v1980 = vand.u32 %v1979, 4294901760
    %1981 = vmatprep.subr.mxu0 %v1980
    %v1982 = vand.u32 %v191, 4294901760
    %v1983 = vsub.f32 %v191, %v1982
    %v1984 = vand.u32 %v1983, 4294901760
    %v1985 = vsub.f32 %v1983, %v1984
    %v1986 = vand.u32 %v1985, 4294901760
    %1987 = vmatpush1.msra.mxu0 %v1986
    %v1988 = vand.u32 %v194, 4294901760
    %v1989 = vsub.f32 %v194, %v1988
    %v1990 = vand.u32 %v1989, 4294901760
    %v1991 = vsub.f32 %v1989, %v1990
    %v1992 = vand.u32 %v1991, 4294901760
    %1993 = vmatprep.subr.mxu0 %v1992
    %v1994 = vand.u32 %v193, 4294901760
    %v1995 = vsub.f32 %v193, %v1994
    %v1996 = vand.u32 %v1995, 4294901760
    %v1997 = vsub.f32 %v1995, %v1996
    %v1998 = vand.u32 %v1997, 4294901760
    %1999 = vmatpush1.msra.mxu0 %v1998
    %v2000 = vand.u32 %v196, 4294901760
    %v2001 = vsub.f32 %v196, %v2000
    %v2002 = vand.u32 %v2001, 4294901760
    %v2003 = vsub.f32 %v2001, %v2002
    %v2004 = vand.u32 %v2003, 4294901760
    %2005 = vmatprep.subr.mxu0 %v2004
    %v2006 = vand.u32 %v195, 4294901760
    %v2007 = vsub.f32 %v195, %v2006
    %v2008 = vand.u32 %v2007, 4294901760
    %v2009 = vsub.f32 %v2007, %v2008
    %v2010 = vand.u32 %v2009, 4294901760
    %2011 = vmatpush1.msra.mxu0 %v2010
    %v2012 = vand.u32 %v198, 4294901760
    %2013 = vmatprep.mubr.f32.mxu0 %v2012
    %v2014 = vand.u32 %v197, 4294901760
    %2015 = vmatmul.mubr.f32.gmra.mrb[0].mxu0 %v2014
    %v2016 = vpop.f32.mrb[0].mxu0
    %v2017 = vadd.f32 %v1624, %v2016
    %v2018 = vpop.f32.mrb[0].mxu0
    %v2019 = vadd.f32 %v1626, %v2018
    %2020 = vdwg.mxu0
    %v2021 = vand.u32 %v134, 4294901760
    %v2022 = vsub.f32 %v134, %v2021
    %2023 = vmatprep.subr.mxu0 %v2022
    %v2024 = vand.u32 %v133, 4294901760
    %v2025 = vsub.f32 %v133, %v2024
    %2026 = vmatpush1.msra.mxu0 %v2025
    %v2027 = vand.u32 %v136, 4294901760
    %v2028 = vsub.f32 %v136, %v2027
    %2029 = vmatprep.subr.mxu0 %v2028
    %v2030 = vand.u32 %v135, 4294901760
    %v2031 = vsub.f32 %v135, %v2030
    %2032 = vmatpush1.msra.mxu0 %v2031
    %v2033 = vand.u32 %v138, 4294901760
    %v2034 = vsub.f32 %v138, %v2033
    %2035 = vmatprep.subr.mxu0 %v2034
    %v2036 = vand.u32 %v137, 4294901760
    %v2037 = vsub.f32 %v137, %v2036
    %2038 = vmatpush1.msra.mxu0 %v2037
    %v2039 = vand.u32 %v140, 4294901760
    %v2040 = vsub.f32 %v140, %v2039
    %2041 = vmatprep.subr.mxu0 %v2040
    %v2042 = vand.u32 %v139, 4294901760
    %v2043 = vsub.f32 %v139, %v2042
    %2044 = vmatpush1.msra.mxu0 %v2043
    %v2045 = vand.u32 %v142, 4294901760
    %v2046 = vsub.f32 %v142, %v2045
    %2047 = vmatprep.subr.mxu0 %v2046
    %v2048 = vand.u32 %v141, 4294901760
    %v2049 = vsub.f32 %v141, %v2048
    %2050 = vmatpush1.msra.mxu0 %v2049
    %v2051 = vand.u32 %v144, 4294901760
    %v2052 = vsub.f32 %v144, %v2051
    %2053 = vmatprep.subr.mxu0 %v2052
    %v2054 = vand.u32 %v143, 4294901760
    %v2055 = vsub.f32 %v143, %v2054
    %2056 = vmatpush1.msra.mxu0 %v2055
    %v2057 = vand.u32 %v146, 4294901760
    %v2058 = vsub.f32 %v146, %v2057
    %2059 = vmatprep.subr.mxu0 %v2058
    %v2060 = vand.u32 %v145, 4294901760
    %v2061 = vsub.f32 %v145, %v2060
    %2062 = vmatpush1.msra.mxu0 %v2061
    %v2063 = vand.u32 %v148, 4294901760
    %v2064 = vsub.f32 %v148, %v2063
    %2065 = vmatprep.subr.mxu0 %v2064
    %v2066 = vand.u32 %v147, 4294901760
    %v2067 = vsub.f32 %v147, %v2066
    %2068 = vmatpush1.msra.mxu0 %v2067
    %v2069 = vand.u32 %v150, 4294901760
    %v2070 = vsub.f32 %v150, %v2069
    %2071 = vmatprep.subr.mxu0 %v2070
    %v2072 = vand.u32 %v149, 4294901760
    %v2073 = vsub.f32 %v149, %v2072
    %2074 = vmatpush1.msra.mxu0 %v2073
    %v2075 = vand.u32 %v152, 4294901760
    %v2076 = vsub.f32 %v152, %v2075
    %2077 = vmatprep.subr.mxu0 %v2076
    %v2078 = vand.u32 %v151, 4294901760
    %v2079 = vsub.f32 %v151, %v2078
    %2080 = vmatpush1.msra.mxu0 %v2079
    %v2081 = vand.u32 %v154, 4294901760
    %v2082 = vsub.f32 %v154, %v2081
    %2083 = vmatprep.subr.mxu0 %v2082
    %v2084 = vand.u32 %v153, 4294901760
    %v2085 = vsub.f32 %v153, %v2084
    %2086 = vmatpush1.msra.mxu0 %v2085
    %v2087 = vand.u32 %v156, 4294901760
    %v2088 = vsub.f32 %v156, %v2087
    %2089 = vmatprep.subr.mxu0 %v2088
    %v2090 = vand.u32 %v155, 4294901760
    %v2091 = vsub.f32 %v155, %v2090
    %2092 = vmatpush1.msra.mxu0 %v2091
    %v2093 = vand.u32 %v158, 4294901760
    %v2094 = vsub.f32 %v158, %v2093
    %2095 = vmatprep.subr.mxu0 %v2094
    %v2096 = vand.u32 %v157, 4294901760
    %v2097 = vsub.f32 %v157, %v2096
    %2098 = vmatpush1.msra.mxu0 %v2097
    %v2099 = vand.u32 %v160, 4294901760
    %v2100 = vsub.f32 %v160, %v2099
    %2101 = vmatprep.subr.mxu0 %v2100
    %v2102 = vand.u32 %v159, 4294901760
    %v2103 = vsub.f32 %v159, %v2102
    %2104 = vmatpush1.msra.mxu0 %v2103
    %v2105 = vand.u32 %v162, 4294901760
    %v2106 = vsub.f32 %v162, %v2105
    %2107 = vmatprep.subr.mxu0 %v2106
    %v2108 = vand.u32 %v161, 4294901760
    %v2109 = vsub.f32 %v161, %v2108
    %2110 = vmatpush1.msra.mxu0 %v2109
    %v2111 = vand.u32 %v164, 4294901760
    %v2112 = vsub.f32 %v164, %v2111
    %2113 = vmatprep.subr.mxu0 %v2112
    %v2114 = vand.u32 %v163, 4294901760
    %v2115 = vsub.f32 %v163, %v2114
    %2116 = vmatpush1.msra.mxu0 %v2115
    %v2117 = vand.u32 %v166, 4294901760
    %v2118 = vsub.f32 %v166, %v2117
    %2119 = vmatprep.subr.mxu0 %v2118
    %v2120 = vand.u32 %v165, 4294901760
    %v2121 = vsub.f32 %v165, %v2120
    %2122 = vmatpush1.msra.mxu0 %v2121
    %v2123 = vand.u32 %v168, 4294901760
    %v2124 = vsub.f32 %v168, %v2123
    %2125 = vmatprep.subr.mxu0 %v2124
    %v2126 = vand.u32 %v167, 4294901760
    %v2127 = vsub.f32 %v167, %v2126
    %2128 = vmatpush1.msra.mxu0 %v2127
    %v2129 = vand.u32 %v170, 4294901760
    %v2130 = vsub.f32 %v170, %v2129
    %2131 = vmatprep.subr.mxu0 %v2130
    %v2132 = vand.u32 %v169, 4294901760
    %v2133 = vsub.f32 %v169, %v2132
    %2134 = vmatpush1.msra.mxu0 %v2133
    %v2135 = vand.u32 %v172, 4294901760
    %v2136 = vsub.f32 %v172, %v2135
    %2137 = vmatprep.subr.mxu0 %v2136
    %v2138 = vand.u32 %v171, 4294901760
    %v2139 = vsub.f32 %v171, %v2138
    %2140 = vmatpush1.msra.mxu0 %v2139
    %v2141 = vand.u32 %v174, 4294901760
    %v2142 = vsub.f32 %v174, %v2141
    %2143 = vmatprep.subr.mxu0 %v2142
    %v2144 = vand.u32 %v173, 4294901760
    %v2145 = vsub.f32 %v173, %v2144
    %2146 = vmatpush1.msra.mxu0 %v2145
    %v2147 = vand.u32 %v176, 4294901760
    %v2148 = vsub.f32 %v176, %v2147
    %2149 = vmatprep.subr.mxu0 %v2148
    %v2150 = vand.u32 %v175, 4294901760
    %v2151 = vsub.f32 %v175, %v2150
    %2152 = vmatpush1.msra.mxu0 %v2151
    %v2153 = vand.u32 %v178, 4294901760
    %v2154 = vsub.f32 %v178, %v2153
    %2155 = vmatprep.subr.mxu0 %v2154
    %v2156 = vand.u32 %v177, 4294901760
    %v2157 = vsub.f32 %v177, %v2156
    %2158 = vmatpush1.msra.mxu0 %v2157
    %v2159 = vand.u32 %v180, 4294901760
    %v2160 = vsub.f32 %v180, %v2159
    %2161 = vmatprep.subr.mxu0 %v2160
    %v2162 = vand.u32 %v179, 4294901760
    %v2163 = vsub.f32 %v179, %v2162
    %2164 = vmatpush1.msra.mxu0 %v2163
    %v2165 = vand.u32 %v182, 4294901760
    %v2166 = vsub.f32 %v182, %v2165
    %2167 = vmatprep.subr.mxu0 %v2166
    %v2168 = vand.u32 %v181, 4294901760
    %v2169 = vsub.f32 %v181, %v2168
    %2170 = vmatpush1.msra.mxu0 %v2169
    %v2171 = vand.u32 %v184, 4294901760
    %v2172 = vsub.f32 %v184, %v2171
    %2173 = vmatprep.subr.mxu0 %v2172
    %v2174 = vand.u32 %v183, 4294901760
    %v2175 = vsub.f32 %v183, %v2174
    %2176 = vmatpush1.msra.mxu0 %v2175
    %v2177 = vand.u32 %v186, 4294901760
    %v2178 = vsub.f32 %v186, %v2177
    %2179 = vmatprep.subr.mxu0 %v2178
    %v2180 = vand.u32 %v185, 4294901760
    %v2181 = vsub.f32 %v185, %v2180
    %2182 = vmatpush1.msra.mxu0 %v2181
    %v2183 = vand.u32 %v188, 4294901760
    %v2184 = vsub.f32 %v188, %v2183
    %2185 = vmatprep.subr.mxu0 %v2184
    %v2186 = vand.u32 %v187, 4294901760
    %v2187 = vsub.f32 %v187, %v2186
    %2188 = vmatpush1.msra.mxu0 %v2187
    %v2189 = vand.u32 %v190, 4294901760
    %v2190 = vsub.f32 %v190, %v2189
    %2191 = vmatprep.subr.mxu0 %v2190
    %v2192 = vand.u32 %v189, 4294901760
    %v2193 = vsub.f32 %v189, %v2192
    %2194 = vmatpush1.msra.mxu0 %v2193
    %v2195 = vand.u32 %v192, 4294901760
    %v2196 = vsub.f32 %v192, %v2195
    %2197 = vmatprep.subr.mxu0 %v2196
    %v2198 = vand.u32 %v191, 4294901760
    %v2199 = vsub.f32 %v191, %v2198
    %2200 = vmatpush1.msra.mxu0 %v2199
    %v2201 = vand.u32 %v194, 4294901760
    %v2202 = vsub.f32 %v194, %v2201
    %2203 = vmatprep.subr.mxu0 %v2202
    %v2204 = vand.u32 %v193, 4294901760
    %v2205 = vsub.f32 %v193, %v2204
    %2206 = vmatpush1.msra.mxu0 %v2205
    %v2207 = vand.u32 %v196, 4294901760
    %v2208 = vsub.f32 %v196, %v2207
    %2209 = vmatprep.subr.mxu0 %v2208
    %v2210 = vand.u32 %v195, 4294901760
    %v2211 = vsub.f32 %v195, %v2210
    %2212 = vmatpush1.msra.mxu0 %v2211
    %v2213 = vand.u32 %v198, 4294901760
    %v2214 = vsub.f32 %v198, %v2213
    %2215 = vmatprep.mubr.f32.mxu0 %v2214
    %v2216 = vand.u32 %v197, 4294901760
    %v2217 = vsub.f32 %v197, %v2216
    %2218 = vmatmul.mubr.f32.gmra.mrb[0].mxu0 %v2217
    %v2219 = vpop.f32.mrb[0].mxu0
    %v2220 = vadd.f32 %v2017, %v2219
    %v2221 = vpop.f32.mrb[0].mxu0
    %v2222 = vadd.f32 %v2019, %v2221
    %2223 = vdwg.mxu0
    %v2224 = vand.u32 %v134, 4294901760
    %2225 = vmatprep.subr.mxu0 %v2224
    %v2226 = vand.u32 %v133, 4294901760
    %2227 = vmatpush1.msra.mxu0 %v2226
    %v2228 = vand.u32 %v136, 4294901760
    %2229 = vmatprep.subr.mxu0 %v2228
    %v2230 = vand.u32 %v135, 4294901760
    %2231 = vmatpush1.msra.mxu0 %v2230
    %v2232 = vand.u32 %v138, 4294901760
    %2233 = vmatprep.subr.mxu0 %v2232
    %v2234 = vand.u32 %v137, 4294901760
    %2235 = vmatpush1.msra.mxu0 %v2234
    %v2236 = vand.u32 %v140, 4294901760
    %2237 = vmatprep.subr.mxu0 %v2236
    %v2238 = vand.u32 %v139, 4294901760
    %2239 = vmatpush1.msra.mxu0 %v2238
    %v2240 = vand.u32 %v142, 4294901760
    %2241 = vmatprep.subr.mxu0 %v2240
    %v2242 = vand.u32 %v141, 4294901760
    %2243 = vmatpush1.msra.mxu0 %v2242
    %v2244 = vand.u32 %v144, 4294901760
    %2245 = vmatprep.subr.mxu0 %v2244
    %v2246 = vand.u32 %v143, 4294901760
    %2247 = vmatpush1.msra.mxu0 %v2246
    %v2248 = vand.u32 %v146, 4294901760
    %2249 = vmatprep.subr.mxu0 %v2248
    %v2250 = vand.u32 %v145, 4294901760
    %2251 = vmatpush1.msra.mxu0 %v2250
    %v2252 = vand.u32 %v148, 4294901760
    %2253 = vmatprep.subr.mxu0 %v2252
    %v2254 = vand.u32 %v147, 4294901760
    %2255 = vmatpush1.msra.mxu0 %v2254
    %v2256 = vand.u32 %v150, 4294901760
    %2257 = vmatprep.subr.mxu0 %v2256
    %v2258 = vand.u32 %v149, 4294901760
    %2259 = vmatpush1.msra.mxu0 %v2258
    %v2260 = vand.u32 %v152, 4294901760
    %2261 = vmatprep.subr.mxu0 %v2260
    %v2262 = vand.u32 %v151, 4294901760
    %2263 = vmatpush1.msra.mxu0 %v2262
    %v2264 = vand.u32 %v154, 4294901760
    %2265 = vmatprep.subr.mxu0 %v2264
    %v2266 = vand.u32 %v153, 4294901760
    %2267 = vmatpush1.msra.mxu0 %v2266
    %v2268 = vand.u32 %v156, 4294901760
    %2269 = vmatprep.subr.mxu0 %v2268
    %v2270 = vand.u32 %v155, 4294901760
    %2271 = vmatpush1.msra.mxu0 %v2270
    %v2272 = vand.u32 %v158, 4294901760
    %2273 = vmatprep.subr.mxu0 %v2272
    %v2274 = vand.u32 %v157, 4294901760
    %2275 = vmatpush1.msra.mxu0 %v2274
    %v2276 = vand.u32 %v160, 4294901760
    %2277 = vmatprep.subr.mxu0 %v2276
    %v2278 = vand.u32 %v159, 4294901760
    %2279 = vmatpush1.msra.mxu0 %v2278
    %v2280 = vand.u32 %v162, 4294901760
    %2281 = vmatprep.subr.mxu0 %v2280
    %v2282 = vand.u32 %v161, 4294901760
    %2283 = vmatpush1.msra.mxu0 %v2282
    %v2284 = vand.u32 %v164, 4294901760
    %2285 = vmatprep.subr.mxu0 %v2284
    %v2286 = vand.u32 %v163, 4294901760
    %2287 = vmatpush1.msra.mxu0 %v2286
    %v2288 = vand.u32 %v166, 4294901760
    %2289 = vmatprep.subr.mxu0 %v2288
    %v2290 = vand.u32 %v165, 4294901760
    %2291 = vmatpush1.msra.mxu0 %v2290
    %v2292 = vand.u32 %v168, 4294901760
    %2293 = vmatprep.subr.mxu0 %v2292
    %v2294 = vand.u32 %v167, 4294901760
    %2295 = vmatpush1.msra.mxu0 %v2294
    %v2296 = vand.u32 %v170, 4294901760
    %2297 = vmatprep.subr.mxu0 %v2296
    %v2298 = vand.u32 %v169, 4294901760
    %2299 = vmatpush1.msra.mxu0 %v2298
    %v2300 = vand.u32 %v172, 4294901760
    %2301 = vmatprep.subr.mxu0 %v2300
    %v2302 = vand.u32 %v171, 4294901760
    %2303 = vmatpush1.msra.mxu0 %v2302
    %v2304 = vand.u32 %v174, 4294901760
    %2305 = vmatprep.subr.mxu0 %v2304
    %v2306 = vand.u32 %v173, 4294901760
    %2307 = vmatpush1.msra.mxu0 %v2306
    %v2308 = vand.u32 %v176, 4294901760
    %2309 = vmatprep.subr.mxu0 %v2308
    %v2310 = vand.u32 %v175, 4294901760
    %2311 = vmatpush1.msra.mxu0 %v2310
    %v2312 = vand.u32 %v178, 4294901760
    %2313 = vmatprep.subr.mxu0 %v2312
    %v2314 = vand.u32 %v177, 4294901760
    %2315 = vmatpush1.msra.mxu0 %v2314
    %v2316 = vand.u32 %v180, 4294901760
    %2317 = vmatprep.subr.mxu0 %v2316
    %v2318 = vand.u32 %v179, 4294901760
    %2319 = vmatpush1.msra.mxu0 %v2318
    %v2320 = vand.u32 %v182, 4294901760
    %2321 = vmatprep.subr.mxu0 %v2320
    %v2322 = vand.u32 %v181, 4294901760
    %2323 = vmatpush1.msra.mxu0 %v2322
    %v2324 = vand.u32 %v184, 4294901760
    %2325 = vmatprep.subr.mxu0 %v2324
    %v2326 = vand.u32 %v183, 4294901760
    %2327 = vmatpush1.msra.mxu0 %v2326
    %v2328 = vand.u32 %v186, 4294901760
    %2329 = vmatprep.subr.mxu0 %v2328
    %v2330 = vand.u32 %v185, 4294901760
    %2331 = vmatpush1.msra.mxu0 %v2330
    %v2332 = vand.u32 %v188, 4294901760
    %2333 = vmatprep.subr.mxu0 %v2332
    %v2334 = vand.u32 %v187, 4294901760
    %2335 = vmatpush1.msra.mxu0 %v2334
    %v2336 = vand.u32 %v190, 4294901760
    %2337 = vmatprep.subr.mxu0 %v2336
    %v2338 = vand.u32 %v189, 4294901760
    %2339 = vmatpush1.msra.mxu0 %v2338
    %v2340 = vand.u32 %v192, 4294901760
    %2341 = vmatprep.subr.mxu0 %v2340
    %v2342 = vand.u32 %v191, 4294901760
    %2343 = vmatpush1.msra.mxu0 %v2342
    %v2344 = vand.u32 %v194, 4294901760
    %2345 = vmatprep.subr.mxu0 %v2344
    %v2346 = vand.u32 %v193, 4294901760
    %2347 = vmatpush1.msra.mxu0 %v2346
    %v2348 = vand.u32 %v196, 4294901760
    %2349 = vmatprep.subr.mxu0 %v2348
    %v2350 = vand.u32 %v195, 4294901760
    %2351 = vmatpush1.msra.mxu0 %v2350
    %v2352 = vand.u32 %v198, 4294901760
    %v2353 = vsub.f32 %v198, %v2352
    %v2354 = vand.u32 %v2353, 4294901760
    %2355 = vmatprep.mubr.f32.mxu0 %v2354
    %v2356 = vand.u32 %v197, 4294901760
    %v2357 = vsub.f32 %v197, %v2356
    %v2358 = vand.u32 %v2357, 4294901760
    %2359 = vmatmul.mubr.f32.gmra.mrb[0].mxu0 %v2358
    %v2360 = vpop.f32.mrb[0].mxu0
    %v2361 = vadd.f32 %v2220, %v2360
    %v2362 = vpop.f32.mrb[0].mxu0
    %v2363 = vadd.f32 %v2222, %v2362
    %2364 = vdwg.mxu0
    %v2365 = vand.u32 %v134, 4294901760
    %v2366 = vsub.f32 %v134, %v2365
    %v2367 = vand.u32 %v2366, 4294901760
    %2368 = vmatprep.subr.mxu0 %v2367
    %v2369 = vand.u32 %v133, 4294901760
    %v2370 = vsub.f32 %v133, %v2369
    %v2371 = vand.u32 %v2370, 4294901760
    %2372 = vmatpush1.msra.mxu0 %v2371
    %v2373 = vand.u32 %v136, 4294901760
    %v2374 = vsub.f32 %v136, %v2373
    %v2375 = vand.u32 %v2374, 4294901760
    %2376 = vmatprep.subr.mxu0 %v2375
    %v2377 = vand.u32 %v135, 4294901760
    %v2378 = vsub.f32 %v135, %v2377
    %v2379 = vand.u32 %v2378, 4294901760
    %2380 = vmatpush1.msra.mxu0 %v2379
    %v2381 = vand.u32 %v138, 4294901760
    %v2382 = vsub.f32 %v138, %v2381
    %v2383 = vand.u32 %v2382, 4294901760
    %2384 = vmatprep.subr.mxu0 %v2383
    %v2385 = vand.u32 %v137, 4294901760
    %v2386 = vsub.f32 %v137, %v2385
    %v2387 = vand.u32 %v2386, 4294901760
    %2388 = vmatpush1.msra.mxu0 %v2387
    %v2389 = vand.u32 %v140, 4294901760
    %v2390 = vsub.f32 %v140, %v2389
    %v2391 = vand.u32 %v2390, 4294901760
    %2392 = vmatprep.subr.mxu0 %v2391
    %v2393 = vand.u32 %v139, 4294901760
    %v2394 = vsub.f32 %v139, %v2393
    %v2395 = vand.u32 %v2394, 4294901760
    %2396 = vmatpush1.msra.mxu0 %v2395
    %v2397 = vand.u32 %v142, 4294901760
    %v2398 = vsub.f32 %v142, %v2397
    %v2399 = vand.u32 %v2398, 4294901760
    %2400 = vmatprep.subr.mxu0 %v2399
    %v2401 = vand.u32 %v141, 4294901760
    %v2402 = vsub.f32 %v141, %v2401
    %v2403 = vand.u32 %v2402, 4294901760
    %2404 = vmatpush1.msra.mxu0 %v2403
    %v2405 = vand.u32 %v144, 4294901760
    %v2406 = vsub.f32 %v144, %v2405
    %v2407 = vand.u32 %v2406, 4294901760
    %2408 = vmatprep.subr.mxu0 %v2407
    %v2409 = vand.u32 %v143, 4294901760
    %v2410 = vsub.f32 %v143, %v2409
    %v2411 = vand.u32 %v2410, 4294901760
    %2412 = vmatpush1.msra.mxu0 %v2411
    %v2413 = vand.u32 %v146, 4294901760
    %v2414 = vsub.f32 %v146, %v2413
    %v2415 = vand.u32 %v2414, 4294901760
    %2416 = vmatprep.subr.mxu0 %v2415
    %v2417 = vand.u32 %v145, 4294901760
    %v2418 = vsub.f32 %v145, %v2417
    %v2419 = vand.u32 %v2418, 4294901760
    %2420 = vmatpush1.msra.mxu0 %v2419
    %v2421 = vand.u32 %v148, 4294901760
    %v2422 = vsub.f32 %v148, %v2421
    %v2423 = vand.u32 %v2422, 4294901760
    %2424 = vmatprep.subr.mxu0 %v2423
    %v2425 = vand.u32 %v147, 4294901760
    %v2426 = vsub.f32 %v147, %v2425
    %v2427 = vand.u32 %v2426, 4294901760
    %2428 = vmatpush1.msra.mxu0 %v2427
    %v2429 = vand.u32 %v150, 4294901760
    %v2430 = vsub.f32 %v150, %v2429
    %v2431 = vand.u32 %v2430, 4294901760
    %2432 = vmatprep.subr.mxu0 %v2431
    %v2433 = vand.u32 %v149, 4294901760
    %v2434 = vsub.f32 %v149, %v2433
    %v2435 = vand.u32 %v2434, 4294901760
    %2436 = vmatpush1.msra.mxu0 %v2435
    %v2437 = vand.u32 %v152, 4294901760
    %v2438 = vsub.f32 %v152, %v2437
    %v2439 = vand.u32 %v2438, 4294901760
    %2440 = vmatprep.subr.mxu0 %v2439
    %v2441 = vand.u32 %v151, 4294901760
    %v2442 = vsub.f32 %v151, %v2441
    %v2443 = vand.u32 %v2442, 4294901760
    %2444 = vmatpush1.msra.mxu0 %v2443
    %v2445 = vand.u32 %v154, 4294901760
    %v2446 = vsub.f32 %v154, %v2445
    %v2447 = vand.u32 %v2446, 4294901760
    %2448 = vmatprep.subr.mxu0 %v2447
    %v2449 = vand.u32 %v153, 4294901760
    %v2450 = vsub.f32 %v153, %v2449
    %v2451 = vand.u32 %v2450, 4294901760
    %2452 = vmatpush1.msra.mxu0 %v2451
    %v2453 = vand.u32 %v156, 4294901760
    %v2454 = vsub.f32 %v156, %v2453
    %v2455 = vand.u32 %v2454, 4294901760
    %2456 = vmatprep.subr.mxu0 %v2455
    %v2457 = vand.u32 %v155, 4294901760
    %v2458 = vsub.f32 %v155, %v2457
    %v2459 = vand.u32 %v2458, 4294901760
    %2460 = vmatpush1.msra.mxu0 %v2459
    %v2461 = vand.u32 %v158, 4294901760
    %v2462 = vsub.f32 %v158, %v2461
    %v2463 = vand.u32 %v2462, 4294901760
    %2464 = vmatprep.subr.mxu0 %v2463
    %v2465 = vand.u32 %v157, 4294901760
    %v2466 = vsub.f32 %v157, %v2465
    %v2467 = vand.u32 %v2466, 4294901760
    %2468 = vmatpush1.msra.mxu0 %v2467
    %v2469 = vand.u32 %v160, 4294901760
    %v2470 = vsub.f32 %v160, %v2469
    %v2471 = vand.u32 %v2470, 4294901760
    %2472 = vmatprep.subr.mxu0 %v2471
    %v2473 = vand.u32 %v159, 4294901760
    %v2474 = vsub.f32 %v159, %v2473
    %v2475 = vand.u32 %v2474, 4294901760
    %2476 = vmatpush1.msra.mxu0 %v2475
    %v2477 = vand.u32 %v162, 4294901760
    %v2478 = vsub.f32 %v162, %v2477
    %v2479 = vand.u32 %v2478, 4294901760
    %2480 = vmatprep.subr.mxu0 %v2479
    %v2481 = vand.u32 %v161, 4294901760
    %v2482 = vsub.f32 %v161, %v2481
    %v2483 = vand.u32 %v2482, 4294901760
    %2484 = vmatpush1.msra.mxu0 %v2483
    %v2485 = vand.u32 %v164, 4294901760
    %v2486 = vsub.f32 %v164, %v2485
    %v2487 = vand.u32 %v2486, 4294901760
    %2488 = vmatprep.subr.mxu0 %v2487
    %v2489 = vand.u32 %v163, 4294901760
    %v2490 = vsub.f32 %v163, %v2489
    %v2491 = vand.u32 %v2490, 4294901760
    %2492 = vmatpush1.msra.mxu0 %v2491
    %v2493 = vand.u32 %v166, 4294901760
    %v2494 = vsub.f32 %v166, %v2493
    %v2495 = vand.u32 %v2494, 4294901760
    %2496 = vmatprep.subr.mxu0 %v2495
    %v2497 = vand.u32 %v165, 4294901760
    %v2498 = vsub.f32 %v165, %v2497
    %v2499 = vand.u32 %v2498, 4294901760
    %2500 = vmatpush1.msra.mxu0 %v2499
    %v2501 = vand.u32 %v168, 4294901760
    %v2502 = vsub.f32 %v168, %v2501
    %v2503 = vand.u32 %v2502, 4294901760
    %2504 = vmatprep.subr.mxu0 %v2503
    %v2505 = vand.u32 %v167, 4294901760
    %v2506 = vsub.f32 %v167, %v2505
    %v2507 = vand.u32 %v2506, 4294901760
    %2508 = vmatpush1.msra.mxu0 %v2507
    %v2509 = vand.u32 %v170, 4294901760
    %v2510 = vsub.f32 %v170, %v2509
    %v2511 = vand.u32 %v2510, 4294901760
    %2512 = vmatprep.subr.mxu0 %v2511
    %v2513 = vand.u32 %v169, 4294901760
    %v2514 = vsub.f32 %v169, %v2513
    %v2515 = vand.u32 %v2514, 4294901760
    %2516 = vmatpush1.msra.mxu0 %v2515
    %v2517 = vand.u32 %v172, 4294901760
    %v2518 = vsub.f32 %v172, %v2517
    %v2519 = vand.u32 %v2518, 4294901760
    %2520 = vmatprep.subr.mxu0 %v2519
    %v2521 = vand.u32 %v171, 4294901760
    %v2522 = vsub.f32 %v171, %v2521
    %v2523 = vand.u32 %v2522, 4294901760
    %2524 = vmatpush1.msra.mxu0 %v2523
    %v2525 = vand.u32 %v174, 4294901760
    %v2526 = vsub.f32 %v174, %v2525
    %v2527 = vand.u32 %v2526, 4294901760
    %2528 = vmatprep.subr.mxu0 %v2527
    %v2529 = vand.u32 %v173, 4294901760
    %v2530 = vsub.f32 %v173, %v2529
    %v2531 = vand.u32 %v2530, 4294901760
    %2532 = vmatpush1.msra.mxu0 %v2531
    %v2533 = vand.u32 %v176, 4294901760
    %v2534 = vsub.f32 %v176, %v2533
    %v2535 = vand.u32 %v2534, 4294901760
    %2536 = vmatprep.subr.mxu0 %v2535
    %v2537 = vand.u32 %v175, 4294901760
    %v2538 = vsub.f32 %v175, %v2537
    %v2539 = vand.u32 %v2538, 4294901760
    %2540 = vmatpush1.msra.mxu0 %v2539
    %v2541 = vand.u32 %v178, 4294901760
    %v2542 = vsub.f32 %v178, %v2541
    %v2543 = vand.u32 %v2542, 4294901760
    %2544 = vmatprep.subr.mxu0 %v2543
    %v2545 = vand.u32 %v177, 4294901760
    %v2546 = vsub.f32 %v177, %v2545
    %v2547 = vand.u32 %v2546, 4294901760
    %2548 = vmatpush1.msra.mxu0 %v2547
    %v2549 = vand.u32 %v180, 4294901760
    %v2550 = vsub.f32 %v180, %v2549
    %v2551 = vand.u32 %v2550, 4294901760
    %2552 = vmatprep.subr.mxu0 %v2551
    %v2553 = vand.u32 %v179, 4294901760
    %v2554 = vsub.f32 %v179, %v2553
    %v2555 = vand.u32 %v2554, 4294901760
    %2556 = vmatpush1.msra.mxu0 %v2555
    %v2557 = vand.u32 %v182, 4294901760
    %v2558 = vsub.f32 %v182, %v2557
    %v2559 = vand.u32 %v2558, 4294901760
    %2560 = vmatprep.subr.mxu0 %v2559
    %v2561 = vand.u32 %v181, 4294901760
    %v2562 = vsub.f32 %v181, %v2561
    %v2563 = vand.u32 %v2562, 4294901760
    %2564 = vmatpush1.msra.mxu0 %v2563
    %v2565 = vand.u32 %v184, 4294901760
    %v2566 = vsub.f32 %v184, %v2565
    %v2567 = vand.u32 %v2566, 4294901760
    %2568 = vmatprep.subr.mxu0 %v2567
    %v2569 = vand.u32 %v183, 4294901760
    %v2570 = vsub.f32 %v183, %v2569
    %v2571 = vand.u32 %v2570, 4294901760
    %2572 = vmatpush1.msra.mxu0 %v2571
    %v2573 = vand.u32 %v186, 4294901760
    %v2574 = vsub.f32 %v186, %v2573
    %v2575 = vand.u32 %v2574, 4294901760
    %2576 = vmatprep.subr.mxu0 %v2575
    %v2577 = vand.u32 %v185, 4294901760
    %v2578 = vsub.f32 %v185, %v2577
    %v2579 = vand.u32 %v2578, 4294901760
    %2580 = vmatpush1.msra.mxu0 %v2579
    %v2581 = vand.u32 %v188, 4294901760
    %v2582 = vsub.f32 %v188, %v2581
    %v2583 = vand.u32 %v2582, 4294901760
    %2584 = vmatprep.subr.mxu0 %v2583
    %v2585 = vand.u32 %v187, 4294901760
    %v2586 = vsub.f32 %v187, %v2585
    %v2587 = vand.u32 %v2586, 4294901760
    %2588 = vmatpush1.msra.mxu0 %v2587
    %v2589 = vand.u32 %v190, 4294901760
    %v2590 = vsub.f32 %v190, %v2589
    %v2591 = vand.u32 %v2590, 4294901760
    %2592 = vmatprep.subr.mxu0 %v2591
    %v2593 = vand.u32 %v189, 4294901760
    %v2594 = vsub.f32 %v189, %v2593
    %v2595 = vand.u32 %v2594, 4294901760
    %2596 = vmatpush1.msra.mxu0 %v2595
    %v2597 = vand.u32 %v192, 4294901760
    %v2598 = vsub.f32 %v192, %v2597
    %v2599 = vand.u32 %v2598, 4294901760
    %2600 = vmatprep.subr.mxu0 %v2599
    %v2601 = vand.u32 %v191, 4294901760
    %v2602 = vsub.f32 %v191, %v2601
    %v2603 = vand.u32 %v2602, 4294901760
    %2604 = vmatpush1.msra.mxu0 %v2603
    %v2605 = vand.u32 %v194, 4294901760
    %v2606 = vsub.f32 %v194, %v2605
    %v2607 = vand.u32 %v2606, 4294901760
    %2608 = vmatprep.subr.mxu0 %v2607
    %v2609 = vand.u32 %v193, 4294901760
    %v2610 = vsub.f32 %v193, %v2609
    %v2611 = vand.u32 %v2610, 4294901760
    %2612 = vmatpush1.msra.mxu0 %v2611
    %v2613 = vand.u32 %v196, 4294901760
    %v2614 = vsub.f32 %v196, %v2613
    %v2615 = vand.u32 %v2614, 4294901760
    %2616 = vmatprep.subr.mxu0 %v2615
    %v2617 = vand.u32 %v195, 4294901760
    %v2618 = vsub.f32 %v195, %v2617
    %v2619 = vand.u32 %v2618, 4294901760
    %2620 = vmatpush1.msra.mxu0 %v2619
    %v2621 = vand.u32 %v198, 4294901760
    %2622 = vmatprep.mubr.f32.mxu0 %v2621
    %v2623 = vand.u32 %v197, 4294901760
    %2624 = vmatmul.mubr.f32.gmra.mrb[0].mxu0 %v2623
    %v2625 = vpop.f32.mrb[0].mxu0
    %v2626 = vadd.f32 %v2361, %v2625
    %v2627 = vpop.f32.mrb[0].mxu0
    %v2628 = vadd.f32 %v2363, %v2627
    %2629 = vdwg.mxu0
    %v2630 = vand.u32 %v134, 4294901760
    %2631 = vmatprep.subr.mxu0 %v2630
    %v2632 = vand.u32 %v133, 4294901760
    %2633 = vmatpush1.msra.mxu0 %v2632
    %v2634 = vand.u32 %v136, 4294901760
    %2635 = vmatprep.subr.mxu0 %v2634
    %v2636 = vand.u32 %v135, 4294901760
    %2637 = vmatpush1.msra.mxu0 %v2636
    %v2638 = vand.u32 %v138, 4294901760
    %2639 = vmatprep.subr.mxu0 %v2638
    %v2640 = vand.u32 %v137, 4294901760
    %2641 = vmatpush1.msra.mxu0 %v2640
    %v2642 = vand.u32 %v140, 4294901760
    %2643 = vmatprep.subr.mxu0 %v2642
    %v2644 = vand.u32 %v139, 4294901760
    %2645 = vmatpush1.msra.mxu0 %v2644
    %v2646 = vand.u32 %v142, 4294901760
    %2647 = vmatprep.subr.mxu0 %v2646
    %v2648 = vand.u32 %v141, 4294901760
    %2649 = vmatpush1.msra.mxu0 %v2648
    %v2650 = vand.u32 %v144, 4294901760
    %2651 = vmatprep.subr.mxu0 %v2650
    %v2652 = vand.u32 %v143, 4294901760
    %2653 = vmatpush1.msra.mxu0 %v2652
    %v2654 = vand.u32 %v146, 4294901760
    %2655 = vmatprep.subr.mxu0 %v2654
    %v2656 = vand.u32 %v145, 4294901760
    %2657 = vmatpush1.msra.mxu0 %v2656
    %v2658 = vand.u32 %v148, 4294901760
    %2659 = vmatprep.subr.mxu0 %v2658
    %v2660 = vand.u32 %v147, 4294901760
    %2661 = vmatpush1.msra.mxu0 %v2660
    %v2662 = vand.u32 %v150, 4294901760
    %2663 = vmatprep.subr.mxu0 %v2662
    %v2664 = vand.u32 %v149, 4294901760
    %2665 = vmatpush1.msra.mxu0 %v2664
    %v2666 = vand.u32 %v152, 4294901760
    %2667 = vmatprep.subr.mxu0 %v2666
    %v2668 = vand.u32 %v151, 4294901760
    %2669 = vmatpush1.msra.mxu0 %v2668
    %v2670 = vand.u32 %v154, 4294901760
    %2671 = vmatprep.subr.mxu0 %v2670
    %v2672 = vand.u32 %v153, 4294901760
    %2673 = vmatpush1.msra.mxu0 %v2672
    %v2674 = vand.u32 %v156, 4294901760
    %2675 = vmatprep.subr.mxu0 %v2674
    %v2676 = vand.u32 %v155, 4294901760
    %2677 = vmatpush1.msra.mxu0 %v2676
    %v2678 = vand.u32 %v158, 4294901760
    %2679 = vmatprep.subr.mxu0 %v2678
    %v2680 = vand.u32 %v157, 4294901760
    %2681 = vmatpush1.msra.mxu0 %v2680
    %v2682 = vand.u32 %v160, 4294901760
    %2683 = vmatprep.subr.mxu0 %v2682
    %v2684 = vand.u32 %v159, 4294901760
    %2685 = vmatpush1.msra.mxu0 %v2684
    %v2686 = vand.u32 %v162, 4294901760
    %2687 = vmatprep.subr.mxu0 %v2686
    %v2688 = vand.u32 %v161, 4294901760
    %2689 = vmatpush1.msra.mxu0 %v2688
    %v2690 = vand.u32 %v164, 4294901760
    %2691 = vmatprep.subr.mxu0 %v2690
    %v2692 = vand.u32 %v163, 4294901760
    %2693 = vmatpush1.msra.mxu0 %v2692
    %v2694 = vand.u32 %v166, 4294901760
    %2695 = vmatprep.subr.mxu0 %v2694
    %v2696 = vand.u32 %v165, 4294901760
    %2697 = vmatpush1.msra.mxu0 %v2696
    %v2698 = vand.u32 %v168, 4294901760
    %2699 = vmatprep.subr.mxu0 %v2698
    %v2700 = vand.u32 %v167, 4294901760
    %2701 = vmatpush1.msra.mxu0 %v2700
    %v2702 = vand.u32 %v170, 4294901760
    %2703 = vmatprep.subr.mxu0 %v2702
    %v2704 = vand.u32 %v169, 4294901760
    %2705 = vmatpush1.msra.mxu0 %v2704
    %v2706 = vand.u32 %v172, 4294901760
    %2707 = vmatprep.subr.mxu0 %v2706
    %v2708 = vand.u32 %v171, 4294901760
    %2709 = vmatpush1.msra.mxu0 %v2708
    %v2710 = vand.u32 %v174, 4294901760
    %2711 = vmatprep.subr.mxu0 %v2710
    %v2712 = vand.u32 %v173, 4294901760
    %2713 = vmatpush1.msra.mxu0 %v2712
    %v2714 = vand.u32 %v176, 4294901760
    %2715 = vmatprep.subr.mxu0 %v2714
    %v2716 = vand.u32 %v175, 4294901760
    %2717 = vmatpush1.msra.mxu0 %v2716
    %v2718 = vand.u32 %v178, 4294901760
    %2719 = vmatprep.subr.mxu0 %v2718
    %v2720 = vand.u32 %v177, 4294901760
    %2721 = vmatpush1.msra.mxu0 %v2720
    %v2722 = vand.u32 %v180, 4294901760
    %2723 = vmatprep.subr.mxu0 %v2722
    %v2724 = vand.u32 %v179, 4294901760
    %2725 = vmatpush1.msra.mxu0 %v2724
    %v2726 = vand.u32 %v182, 4294901760
    %2727 = vmatprep.subr.mxu0 %v2726
    %v2728 = vand.u32 %v181, 4294901760
    %2729 = vmatpush1.msra.mxu0 %v2728
    %v2730 = vand.u32 %v184, 4294901760
    %2731 = vmatprep.subr.mxu0 %v2730
    %v2732 = vand.u32 %v183, 4294901760
    %2733 = vmatpush1.msra.mxu0 %v2732
    %v2734 = vand.u32 %v186, 4294901760
    %2735 = vmatprep.subr.mxu0 %v2734
    %v2736 = vand.u32 %v185, 4294901760
    %2737 = vmatpush1.msra.mxu0 %v2736
    %v2738 = vand.u32 %v188, 4294901760
    %2739 = vmatprep.subr.mxu0 %v2738
    %v2740 = vand.u32 %v187, 4294901760
    %2741 = vmatpush1.msra.mxu0 %v2740
    %v2742 = vand.u32 %v190, 4294901760
    %2743 = vmatprep.subr.mxu0 %v2742
    %v2744 = vand.u32 %v189, 4294901760
    %2745 = vmatpush1.msra.mxu0 %v2744
    %v2746 = vand.u32 %v192, 4294901760
    %2747 = vmatprep.subr.mxu0 %v2746
    %v2748 = vand.u32 %v191, 4294901760
    %2749 = vmatpush1.msra.mxu0 %v2748
    %v2750 = vand.u32 %v194, 4294901760
    %2751 = vmatprep.subr.mxu0 %v2750
    %v2752 = vand.u32 %v193, 4294901760
    %2753 = vmatpush1.msra.mxu0 %v2752
    %v2754 = vand.u32 %v196, 4294901760
    %2755 = vmatprep.subr.mxu0 %v2754
    %v2756 = vand.u32 %v195, 4294901760
    %2757 = vmatpush1.msra.mxu0 %v2756
    %v2758 = vand.u32 %v198, 4294901760
    %2759 = vmatprep.mubr.f32.mxu0 %v2758
    %v2760 = vand.u32 %v197, 4294901760
    %2761 = vmatmul.mubr.f32.gmra.mrb[0].mxu0 %v2760
    %v2762 = vpop.f32.mrb[0].mxu0
    %v2763 = vadd.f32 %v2626, %v2762
    %v2764 = vpop.f32.mrb[0].mxu0
    %v2765 = vadd.f32 %v2628, %v2764
    %2766 = vdwg.mxu0
    %v2767 = vmul.f32 %v1479, %v1479
    %v2768 = vmul.f32 %v1481, %v1481
    %v2769 = vmul.f32 %v2763, %v2763
    %v2770 = vmul.f32 %v2765, %v2765
    %v2771 = vadd.f32 %v2767, %v2769
    %v2772 = vadd.f32 %v2768, %v2770
    %v2773 = vrsqrt.pop %v2771
    %v2774 = vmul.f32 %v2771, %v2773
    %vm2775 = vcmp.eq.f32.partialorder %v2771, inf
    %v2776 = vsel %vm2775, %v2771, %v2774
    %vm2777 = vcmp.eq.f32.partialorder %v2771, 0.0
    %v2778 = vand.u32 %v2771, 2147483648
    %v2779 = vsel %vm2777, %v2778, %v2776
    %v2780 = vrsqrt.pop %v2772
    %v2781 = vmul.f32 %v2772, %v2780
    %vm2782 = vcmp.eq.f32.partialorder %v2772, inf
    %v2783 = vsel %vm2782, %v2772, %v2781
    %vm2784 = vcmp.eq.f32.partialorder %v2772, 0.0
    %v2785 = vand.u32 %v2772, 2147483648
    %v2786 = vsel %vm2784, %v2785, %v2783
    %v2787 = vand.u32 2147483647, %v2763
    %v2788 = vand.u32 2147483647, %v2765
    %v2789 = vand.u32 2147483647, %v1479
    %v2790 = vand.u32 2147483647, %v1481
    %v2791 = vmax.f32 %v2789, %v2787
    %v2792 = vmax.f32 %v2790, %v2788
    %v2793 = vmin.f32 %v2789, %v2787
    %v2794 = vmin.f32 %v2790, %v2788
    %v2795 = vmax.f32 %v2791, 1e-30
    %v2796 = vmax.f32 %v2792, 1e-30
    %v2797 = vrcp.pop %v2795
    %v2798 = vmul.f32 %v2793, %v2797
    %v2799 = vrcp.pop %v2796
    %v2800 = vmul.f32 %v2794, %v2799
    %vm2801 = vcmp.gt.f32.partialorder %v2798, 0.41421357
    %vm2802 = vcmp.gt.f32.partialorder %v2800, 0.41421357
    %v2803 = vsub.f32 %v2798, 1.0
    %v2804 = vsub.f32 %v2800, 1.0
    %v2805 = vadd.f32 %v2798, 1.0
    %v2806 = vadd.f32 %v2800, 1.0
    %v2807 = vrcp.pop %v2805
    %v2808 = vmul.f32 %v2803, %v2807
    %v2809 = vrcp.pop %v2806
    %v2810 = vmul.f32 %v2804, %v2809
    %v2811 = vsel %vm2801, %v2808, %v2798
    %v2812 = vsel %vm2802, %v2810, %v2800
    %v2813 = vsel %vm2801, 0.7853982, 0.0
    %v2814 = vsel %vm2802, 0.7853982, 0.0
    %v2815 = vmul.f32 %v2811, %v2811
    %v2816 = vmul.f32 %v2812, %v2812
    %v2817 = vmul.f32 %v2815, 0.080537446
    %v2818 = vmul.f32 %v2816, 0.080537446
    %v2819 = vsub.f32 %v2817, 0.13877685
    %v2820 = vsub.f32 %v2818, 0.13877685
    %v2821 = vmul.f32 %v2819, %v2815
    %v2822 = vmul.f32 %v2820, %v2816
    %v2823 = vadd.f32 %v2821, 0.19977711
    %v2824 = vadd.f32 %v2822, 0.19977711
    %v2825 = vmul.f32 %v2823, %v2815
    %v2826 = vmul.f32 %v2824, %v2816
    %v2827 = vsub.f32 %v2825, 0.3333295
    %v2828 = vsub.f32 %v2826, 0.3333295
    %v2829 = vmul.f32 %v2827, %v2815
    %v2830 = vmul.f32 %v2828, %v2816
    %v2831 = vmul.f32 %v2829, %v2811
    %v2832 = vmul.f32 %v2830, %v2812
    %v2833 = vadd.f32 %v2831, %v2811
    %v2834 = vadd.f32 %v2832, %v2812
    %v2835 = vadd.f32 %v2813, %v2833
    %v2836 = vadd.f32 %v2814, %v2834
    %vm2837 = vcmp.gt.f32.partialorder %v2787, %v2789
    %vm2838 = vcmp.gt.f32.partialorder %v2788, %v2790
    %v2839 = vsub.f32 1.5707964, %v2835
    %v2840 = vsub.f32 1.5707964, %v2836
    %v2841 = vsel %vm2837, %v2839, %v2835
    %v2842 = vsel %vm2838, %v2840, %v2836
    %vm2843 = vcmp.lt.f32.partialorder %v1479, 0.0
    %vm2844 = vcmp.lt.f32.partialorder %v1481, 0.0
    %v2845 = vsub.f32 3.1415927, %v2841
    %v2846 = vsub.f32 3.1415927, %v2842
    %v2847 = vsel %vm2843, %v2845, %v2841
    %v2848 = vsel %vm2844, %v2846, %v2842
    %vm2849 = vcmp.lt.f32.partialorder %v2763, 0.0
    %vm2850 = vcmp.lt.f32.partialorder %v2765, 0.0
    %v2851 = vsub.f32 0.0, %v2847
    %v2852 = vsub.f32 0.0, %v2848
    %v2853 = vsel %vm2849, %v2851, %v2847
    %v2854 = vsel %vm2850, %v2852, %v2848
    %v2855 = vsub.f32 %v2779, %v2853
    %v2856 = vsub.f32 %v2786, %v2854
    %v2857 = vld [vmem:[#allocation8] sm:$0xff]
    %v2858 = vld [vmem:[#allocation8 + $0x8] sm:$0xff]
    %v2859 = vand.u32 %v70, 4294901760
    %2860 = vmatprep.subr.mxu0 %v2859
    %v2861 = vand.u32 %v69, 4294901760
    %2862 = vmatpush1.msra.mxu0 %v2861
    %v2863 = vand.u32 %v72, 4294901760
    %2864 = vmatprep.subr.mxu0 %v2863
    %v2865 = vand.u32 %v71, 4294901760
    %2866 = vmatpush1.msra.mxu0 %v2865
    %v2867 = vand.u32 %v74, 4294901760
    %2868 = vmatprep.subr.mxu0 %v2867
    %v2869 = vand.u32 %v73, 4294901760
    %2870 = vmatpush1.msra.mxu0 %v2869
    %v2871 = vand.u32 %v76, 4294901760
    %2872 = vmatprep.subr.mxu0 %v2871
    %v2873 = vand.u32 %v75, 4294901760
    %2874 = vmatpush1.msra.mxu0 %v2873
    %v2875 = vand.u32 %v78, 4294901760
    %2876 = vmatprep.subr.mxu0 %v2875
    %v2877 = vand.u32 %v77, 4294901760
    %2878 = vmatpush1.msra.mxu0 %v2877
    %v2879 = vand.u32 %v80, 4294901760
    %2880 = vmatprep.subr.mxu0 %v2879
    %v2881 = vand.u32 %v79, 4294901760
    %2882 = vmatpush1.msra.mxu0 %v2881
    %v2883 = vand.u32 %v82, 4294901760
    %2884 = vmatprep.subr.mxu0 %v2883
    %v2885 = vand.u32 %v81, 4294901760
    %2886 = vmatpush1.msra.mxu0 %v2885
    %v2887 = vand.u32 %v84, 4294901760
    %2888 = vmatprep.subr.mxu0 %v2887
    %v2889 = vand.u32 %v83, 4294901760
    %2890 = vmatpush1.msra.mxu0 %v2889
    %v2891 = vand.u32 %v86, 4294901760
    %2892 = vmatprep.subr.mxu0 %v2891
    %v2893 = vand.u32 %v85, 4294901760
    %2894 = vmatpush1.msra.mxu0 %v2893
    %v2895 = vand.u32 %v88, 4294901760
    %2896 = vmatprep.subr.mxu0 %v2895
    %v2897 = vand.u32 %v87, 4294901760
    %2898 = vmatpush1.msra.mxu0 %v2897
    %v2899 = vand.u32 %v90, 4294901760
    %2900 = vmatprep.subr.mxu0 %v2899
    %v2901 = vand.u32 %v89, 4294901760
    %2902 = vmatpush1.msra.mxu0 %v2901
    %v2903 = vand.u32 %v92, 4294901760
    %2904 = vmatprep.subr.mxu0 %v2903
    %v2905 = vand.u32 %v91, 4294901760
    %2906 = vmatpush1.msra.mxu0 %v2905
    %v2907 = vand.u32 %v94, 4294901760
    %2908 = vmatprep.subr.mxu0 %v2907
    %v2909 = vand.u32 %v93, 4294901760
    %2910 = vmatpush1.msra.mxu0 %v2909
    %v2911 = vand.u32 %v96, 4294901760
    %2912 = vmatprep.subr.mxu0 %v2911
    %v2913 = vand.u32 %v95, 4294901760
    %2914 = vmatpush1.msra.mxu0 %v2913
    %v2915 = vand.u32 %v98, 4294901760
    %2916 = vmatprep.subr.mxu0 %v2915
    %v2917 = vand.u32 %v97, 4294901760
    %2918 = vmatpush1.msra.mxu0 %v2917
    %v2919 = vand.u32 %v100, 4294901760
    %2920 = vmatprep.subr.mxu0 %v2919
    %v2921 = vand.u32 %v99, 4294901760
    %2922 = vmatpush1.msra.mxu0 %v2921
    %v2923 = vand.u32 %v102, 4294901760
    %2924 = vmatprep.subr.mxu0 %v2923
    %v2925 = vand.u32 %v101, 4294901760
    %2926 = vmatpush1.msra.mxu0 %v2925
    %v2927 = vand.u32 %v104, 4294901760
    %2928 = vmatprep.subr.mxu0 %v2927
    %v2929 = vand.u32 %v103, 4294901760
    %2930 = vmatpush1.msra.mxu0 %v2929
    %v2931 = vand.u32 %v106, 4294901760
    %2932 = vmatprep.subr.mxu0 %v2931
    %v2933 = vand.u32 %v105, 4294901760
    %2934 = vmatpush1.msra.mxu0 %v2933
    %v2935 = vand.u32 %v108, 4294901760
    %2936 = vmatprep.subr.mxu0 %v2935
    %v2937 = vand.u32 %v107, 4294901760
    %2938 = vmatpush1.msra.mxu0 %v2937
    %v2939 = vand.u32 %v110, 4294901760
    %2940 = vmatprep.subr.mxu0 %v2939
    %v2941 = vand.u32 %v109, 4294901760
    %2942 = vmatpush1.msra.mxu0 %v2941
    %v2943 = vand.u32 %v112, 4294901760
    %2944 = vmatprep.subr.mxu0 %v2943
    %v2945 = vand.u32 %v111, 4294901760
    %2946 = vmatpush1.msra.mxu0 %v2945
    %v2947 = vand.u32 %v114, 4294901760
    %2948 = vmatprep.subr.mxu0 %v2947
    %v2949 = vand.u32 %v113, 4294901760
    %2950 = vmatpush1.msra.mxu0 %v2949
    %v2951 = vand.u32 %v116, 4294901760
    %2952 = vmatprep.subr.mxu0 %v2951
    %v2953 = vand.u32 %v115, 4294901760
    %2954 = vmatpush1.msra.mxu0 %v2953
    %v2955 = vand.u32 %v118, 4294901760
    %2956 = vmatprep.subr.mxu0 %v2955
    %v2957 = vand.u32 %v117, 4294901760
    %2958 = vmatpush1.msra.mxu0 %v2957
    %v2959 = vand.u32 %v120, 4294901760
    %2960 = vmatprep.subr.mxu0 %v2959
    %v2961 = vand.u32 %v119, 4294901760
    %2962 = vmatpush1.msra.mxu0 %v2961
    %v2963 = vand.u32 %v122, 4294901760
    %2964 = vmatprep.subr.mxu0 %v2963
    %v2965 = vand.u32 %v121, 4294901760
    %2966 = vmatpush1.msra.mxu0 %v2965
    %v2967 = vand.u32 %v124, 4294901760
    %2968 = vmatprep.subr.mxu0 %v2967
    %v2969 = vand.u32 %v123, 4294901760
    %2970 = vmatpush1.msra.mxu0 %v2969
    %v2971 = vand.u32 %v126, 4294901760
    %2972 = vmatprep.subr.mxu0 %v2971
    %v2973 = vand.u32 %v125, 4294901760
    %2974 = vmatpush1.msra.mxu0 %v2973
    %v2975 = vand.u32 %v128, 4294901760
    %2976 = vmatprep.subr.mxu0 %v2975
    %v2977 = vand.u32 %v127, 4294901760
    %2978 = vmatpush1.msra.mxu0 %v2977
    %v2979 = vand.u32 %v130, 4294901760
    %2980 = vmatprep.subr.mxu0 %v2979
    %v2981 = vand.u32 %v129, 4294901760
    %2982 = vmatpush1.msra.mxu0 %v2981
    %v2983 = vand.u32 %v132, 4294901760
    %2984 = vmatprep.subr.mxu0 %v2983
    %v2985 = vand.u32 %v131, 4294901760
    %2986 = vmatpush1.msra.mxu0 %v2985
    %v2987 = vand.u32 %v2858, 4294901760
    %v2988 = vsub.f32 %v2858, %v2987
    %v2989 = vand.u32 %v2988, 4294901760
    %v2990 = vsub.f32 %v2988, %v2989
    %v2991 = vand.u32 %v2990, 4294901760
    %2992 = vmatprep.mubr.f32.mxu0 %v2991
    %v2993 = vand.u32 %v2857, 4294901760
    %v2994 = vsub.f32 %v2857, %v2993
    %v2995 = vand.u32 %v2994, 4294901760
    %v2996 = vsub.f32 %v2994, %v2995
    %v2997 = vand.u32 %v2996, 4294901760
    %2998 = vmatmul.mubr.f32.gmra.mrb[0].mxu0 %v2997
    %v2999 = vpop.f32.mrb[0].mxu0
    %v3000 = vadd.f32 0.0, %v2999
    %v3001 = vpop.f32.mrb[0].mxu0
    %v3002 = vadd.f32 0.0, %v3001
    %3003 = vdwg.mxu0
    %v3004 = vand.u32 %v70, 4294901760
    %v3005 = vsub.f32 %v70, %v3004
    %v3006 = vand.u32 %v3005, 4294901760
    %v3007 = vsub.f32 %v3005, %v3006
    %v3008 = vand.u32 %v3007, 4294901760
    %3009 = vmatprep.subr.mxu0 %v3008
    %v3010 = vand.u32 %v69, 4294901760
    %v3011 = vsub.f32 %v69, %v3010
    %v3012 = vand.u32 %v3011, 4294901760
    %v3013 = vsub.f32 %v3011, %v3012
    %v3014 = vand.u32 %v3013, 4294901760
    %3015 = vmatpush1.msra.mxu0 %v3014
    %v3016 = vand.u32 %v72, 4294901760
    %v3017 = vsub.f32 %v72, %v3016
    %v3018 = vand.u32 %v3017, 4294901760
    %v3019 = vsub.f32 %v3017, %v3018
    %v3020 = vand.u32 %v3019, 4294901760
    %3021 = vmatprep.subr.mxu0 %v3020
    %v3022 = vand.u32 %v71, 4294901760
    %v3023 = vsub.f32 %v71, %v3022
    %v3024 = vand.u32 %v3023, 4294901760
    %v3025 = vsub.f32 %v3023, %v3024
    %v3026 = vand.u32 %v3025, 4294901760
    %3027 = vmatpush1.msra.mxu0 %v3026
    %v3028 = vand.u32 %v74, 4294901760
    %v3029 = vsub.f32 %v74, %v3028
    %v3030 = vand.u32 %v3029, 4294901760
    %v3031 = vsub.f32 %v3029, %v3030
    %v3032 = vand.u32 %v3031, 4294901760
    %3033 = vmatprep.subr.mxu0 %v3032
    %v3034 = vand.u32 %v73, 4294901760
    %v3035 = vsub.f32 %v73, %v3034
    %v3036 = vand.u32 %v3035, 4294901760
    %v3037 = vsub.f32 %v3035, %v3036
    %v3038 = vand.u32 %v3037, 4294901760
    %3039 = vmatpush1.msra.mxu0 %v3038
    %v3040 = vand.u32 %v76, 4294901760
    %v3041 = vsub.f32 %v76, %v3040
    %v3042 = vand.u32 %v3041, 4294901760
    %v3043 = vsub.f32 %v3041, %v3042
    %v3044 = vand.u32 %v3043, 4294901760
    %3045 = vmatprep.subr.mxu0 %v3044
    %v3046 = vand.u32 %v75, 4294901760
    %v3047 = vsub.f32 %v75, %v3046
    %v3048 = vand.u32 %v3047, 4294901760
    %v3049 = vsub.f32 %v3047, %v3048
    %v3050 = vand.u32 %v3049, 4294901760
    %3051 = vmatpush1.msra.mxu0 %v3050
    %v3052 = vand.u32 %v78, 4294901760
    %v3053 = vsub.f32 %v78, %v3052
    %v3054 = vand.u32 %v3053, 4294901760
    %v3055 = vsub.f32 %v3053, %v3054
    %v3056 = vand.u32 %v3055, 4294901760
    %3057 = vmatprep.subr.mxu0 %v3056
    %v3058 = vand.u32 %v77, 4294901760
    %v3059 = vsub.f32 %v77, %v3058
    %v3060 = vand.u32 %v3059, 4294901760
    %v3061 = vsub.f32 %v3059, %v3060
    %v3062 = vand.u32 %v3061, 4294901760
    %3063 = vmatpush1.msra.mxu0 %v3062
    %v3064 = vand.u32 %v80, 4294901760
    %v3065 = vsub.f32 %v80, %v3064
    %v3066 = vand.u32 %v3065, 4294901760
    %v3067 = vsub.f32 %v3065, %v3066
    %v3068 = vand.u32 %v3067, 4294901760
    %3069 = vmatprep.subr.mxu0 %v3068
    %v3070 = vand.u32 %v79, 4294901760
    %v3071 = vsub.f32 %v79, %v3070
    %v3072 = vand.u32 %v3071, 4294901760
    %v3073 = vsub.f32 %v3071, %v3072
    %v3074 = vand.u32 %v3073, 4294901760
    %3075 = vmatpush1.msra.mxu0 %v3074
    %v3076 = vand.u32 %v82, 4294901760
    %v3077 = vsub.f32 %v82, %v3076
    %v3078 = vand.u32 %v3077, 4294901760
    %v3079 = vsub.f32 %v3077, %v3078
    %v3080 = vand.u32 %v3079, 4294901760
    %3081 = vmatprep.subr.mxu0 %v3080
    %v3082 = vand.u32 %v81, 4294901760
    %v3083 = vsub.f32 %v81, %v3082
    %v3084 = vand.u32 %v3083, 4294901760
    %v3085 = vsub.f32 %v3083, %v3084
    %v3086 = vand.u32 %v3085, 4294901760
    %3087 = vmatpush1.msra.mxu0 %v3086
    %v3088 = vand.u32 %v84, 4294901760
    %v3089 = vsub.f32 %v84, %v3088
    %v3090 = vand.u32 %v3089, 4294901760
    %v3091 = vsub.f32 %v3089, %v3090
    %v3092 = vand.u32 %v3091, 4294901760
    %3093 = vmatprep.subr.mxu0 %v3092
    %v3094 = vand.u32 %v83, 4294901760
    %v3095 = vsub.f32 %v83, %v3094
    %v3096 = vand.u32 %v3095, 4294901760
    %v3097 = vsub.f32 %v3095, %v3096
    %v3098 = vand.u32 %v3097, 4294901760
    %3099 = vmatpush1.msra.mxu0 %v3098
    %v3100 = vand.u32 %v86, 4294901760
    %v3101 = vsub.f32 %v86, %v3100
    %v3102 = vand.u32 %v3101, 4294901760
    %v3103 = vsub.f32 %v3101, %v3102
    %v3104 = vand.u32 %v3103, 4294901760
    %3105 = vmatprep.subr.mxu0 %v3104
    %v3106 = vand.u32 %v85, 4294901760
    %v3107 = vsub.f32 %v85, %v3106
    %v3108 = vand.u32 %v3107, 4294901760
    %v3109 = vsub.f32 %v3107, %v3108
    %v3110 = vand.u32 %v3109, 4294901760
    %3111 = vmatpush1.msra.mxu0 %v3110
    %v3112 = vand.u32 %v88, 4294901760
    %v3113 = vsub.f32 %v88, %v3112
    %v3114 = vand.u32 %v3113, 4294901760
    %v3115 = vsub.f32 %v3113, %v3114
    %v3116 = vand.u32 %v3115, 4294901760
    %3117 = vmatprep.subr.mxu0 %v3116
    %v3118 = vand.u32 %v87, 4294901760
    %v3119 = vsub.f32 %v87, %v3118
    %v3120 = vand.u32 %v3119, 4294901760
    %v3121 = vsub.f32 %v3119, %v3120
    %v3122 = vand.u32 %v3121, 4294901760
    %3123 = vmatpush1.msra.mxu0 %v3122
    %v3124 = vand.u32 %v90, 4294901760
    %v3125 = vsub.f32 %v90, %v3124
    %v3126 = vand.u32 %v3125, 4294901760
    %v3127 = vsub.f32 %v3125, %v3126
    %v3128 = vand.u32 %v3127, 4294901760
    %3129 = vmatprep.subr.mxu0 %v3128
    %v3130 = vand.u32 %v89, 4294901760
    %v3131 = vsub.f32 %v89, %v3130
    %v3132 = vand.u32 %v3131, 4294901760
    %v3133 = vsub.f32 %v3131, %v3132
    %v3134 = vand.u32 %v3133, 4294901760
    %3135 = vmatpush1.msra.mxu0 %v3134
    %v3136 = vand.u32 %v92, 4294901760
    %v3137 = vsub.f32 %v92, %v3136
    %v3138 = vand.u32 %v3137, 4294901760
    %v3139 = vsub.f32 %v3137, %v3138
    %v3140 = vand.u32 %v3139, 4294901760
    %3141 = vmatprep.subr.mxu0 %v3140
    %v3142 = vand.u32 %v91, 4294901760
    %v3143 = vsub.f32 %v91, %v3142
    %v3144 = vand.u32 %v3143, 4294901760
    %v3145 = vsub.f32 %v3143, %v3144
    %v3146 = vand.u32 %v3145, 4294901760
    %3147 = vmatpush1.msra.mxu0 %v3146
    %v3148 = vand.u32 %v94, 4294901760
    %v3149 = vsub.f32 %v94, %v3148
    %v3150 = vand.u32 %v3149, 4294901760
    %v3151 = vsub.f32 %v3149, %v3150
    %v3152 = vand.u32 %v3151, 4294901760
    %3153 = vmatprep.subr.mxu0 %v3152
    %v3154 = vand.u32 %v93, 4294901760
    %v3155 = vsub.f32 %v93, %v3154
    %v3156 = vand.u32 %v3155, 4294901760
    %v3157 = vsub.f32 %v3155, %v3156
    %v3158 = vand.u32 %v3157, 4294901760
    %3159 = vmatpush1.msra.mxu0 %v3158
    %v3160 = vand.u32 %v96, 4294901760
    %v3161 = vsub.f32 %v96, %v3160
    %v3162 = vand.u32 %v3161, 4294901760
    %v3163 = vsub.f32 %v3161, %v3162
    %v3164 = vand.u32 %v3163, 4294901760
    %3165 = vmatprep.subr.mxu0 %v3164
    %v3166 = vand.u32 %v95, 4294901760
    %v3167 = vsub.f32 %v95, %v3166
    %v3168 = vand.u32 %v3167, 4294901760
    %v3169 = vsub.f32 %v3167, %v3168
    %v3170 = vand.u32 %v3169, 4294901760
    %3171 = vmatpush1.msra.mxu0 %v3170
    %v3172 = vand.u32 %v98, 4294901760
    %v3173 = vsub.f32 %v98, %v3172
    %v3174 = vand.u32 %v3173, 4294901760
    %v3175 = vsub.f32 %v3173, %v3174
    %v3176 = vand.u32 %v3175, 4294901760
    %3177 = vmatprep.subr.mxu0 %v3176
    %v3178 = vand.u32 %v97, 4294901760
    %v3179 = vsub.f32 %v97, %v3178
    %v3180 = vand.u32 %v3179, 4294901760
    %v3181 = vsub.f32 %v3179, %v3180
    %v3182 = vand.u32 %v3181, 4294901760
    %3183 = vmatpush1.msra.mxu0 %v3182
    %v3184 = vand.u32 %v100, 4294901760
    %v3185 = vsub.f32 %v100, %v3184
    %v3186 = vand.u32 %v3185, 4294901760
    %v3187 = vsub.f32 %v3185, %v3186
    %v3188 = vand.u32 %v3187, 4294901760
    %3189 = vmatprep.subr.mxu0 %v3188
    %v3190 = vand.u32 %v99, 4294901760
    %v3191 = vsub.f32 %v99, %v3190
    %v3192 = vand.u32 %v3191, 4294901760
    %v3193 = vsub.f32 %v3191, %v3192
    %v3194 = vand.u32 %v3193, 4294901760
    %3195 = vmatpush1.msra.mxu0 %v3194
    %v3196 = vand.u32 %v102, 4294901760
    %v3197 = vsub.f32 %v102, %v3196
    %v3198 = vand.u32 %v3197, 4294901760
    %v3199 = vsub.f32 %v3197, %v3198
    %v3200 = vand.u32 %v3199, 4294901760
    %3201 = vmatprep.subr.mxu0 %v3200
    %v3202 = vand.u32 %v101, 4294901760
    %v3203 = vsub.f32 %v101, %v3202
    %v3204 = vand.u32 %v3203, 4294901760
    %v3205 = vsub.f32 %v3203, %v3204
    %v3206 = vand.u32 %v3205, 4294901760
    %3207 = vmatpush1.msra.mxu0 %v3206
    %v3208 = vand.u32 %v104, 4294901760
    %v3209 = vsub.f32 %v104, %v3208
    %v3210 = vand.u32 %v3209, 4294901760
    %v3211 = vsub.f32 %v3209, %v3210
    %v3212 = vand.u32 %v3211, 4294901760
    %3213 = vmatprep.subr.mxu0 %v3212
    %v3214 = vand.u32 %v103, 4294901760
    %v3215 = vsub.f32 %v103, %v3214
    %v3216 = vand.u32 %v3215, 4294901760
    %v3217 = vsub.f32 %v3215, %v3216
    %v3218 = vand.u32 %v3217, 4294901760
    %3219 = vmatpush1.msra.mxu0 %v3218
    %v3220 = vand.u32 %v106, 4294901760
    %v3221 = vsub.f32 %v106, %v3220
    %v3222 = vand.u32 %v3221, 4294901760
    %v3223 = vsub.f32 %v3221, %v3222
    %v3224 = vand.u32 %v3223, 4294901760
    %3225 = vmatprep.subr.mxu0 %v3224
    %v3226 = vand.u32 %v105, 4294901760
    %v3227 = vsub.f32 %v105, %v3226
    %v3228 = vand.u32 %v3227, 4294901760
    %v3229 = vsub.f32 %v3227, %v3228
    %v3230 = vand.u32 %v3229, 4294901760
    %3231 = vmatpush1.msra.mxu0 %v3230
    %v3232 = vand.u32 %v108, 4294901760
    %v3233 = vsub.f32 %v108, %v3232
    %v3234 = vand.u32 %v3233, 4294901760
    %v3235 = vsub.f32 %v3233, %v3234
    %v3236 = vand.u32 %v3235, 4294901760
    %3237 = vmatprep.subr.mxu0 %v3236
    %v3238 = vand.u32 %v107, 4294901760
    %v3239 = vsub.f32 %v107, %v3238
    %v3240 = vand.u32 %v3239, 4294901760
    %v3241 = vsub.f32 %v3239, %v3240
    %v3242 = vand.u32 %v3241, 4294901760
    %3243 = vmatpush1.msra.mxu0 %v3242
    %v3244 = vand.u32 %v110, 4294901760
    %v3245 = vsub.f32 %v110, %v3244
    %v3246 = vand.u32 %v3245, 4294901760
    %v3247 = vsub.f32 %v3245, %v3246
    %v3248 = vand.u32 %v3247, 4294901760
    %3249 = vmatprep.subr.mxu0 %v3248
    %v3250 = vand.u32 %v109, 4294901760
    %v3251 = vsub.f32 %v109, %v3250
    %v3252 = vand.u32 %v3251, 4294901760
    %v3253 = vsub.f32 %v3251, %v3252
    %v3254 = vand.u32 %v3253, 4294901760
    %3255 = vmatpush1.msra.mxu0 %v3254
    %v3256 = vand.u32 %v112, 4294901760
    %v3257 = vsub.f32 %v112, %v3256
    %v3258 = vand.u32 %v3257, 4294901760
    %v3259 = vsub.f32 %v3257, %v3258
    %v3260 = vand.u32 %v3259, 4294901760
    %3261 = vmatprep.subr.mxu0 %v3260
    %v3262 = vand.u32 %v111, 4294901760
    %v3263 = vsub.f32 %v111, %v3262
    %v3264 = vand.u32 %v3263, 4294901760
    %v3265 = vsub.f32 %v3263, %v3264
    %v3266 = vand.u32 %v3265, 4294901760
    %3267 = vmatpush1.msra.mxu0 %v3266
    %v3268 = vand.u32 %v114, 4294901760
    %v3269 = vsub.f32 %v114, %v3268
    %v3270 = vand.u32 %v3269, 4294901760
    %v3271 = vsub.f32 %v3269, %v3270
    %v3272 = vand.u32 %v3271, 4294901760
    %3273 = vmatprep.subr.mxu0 %v3272
    %v3274 = vand.u32 %v113, 4294901760
    %v3275 = vsub.f32 %v113, %v3274
    %v3276 = vand.u32 %v3275, 4294901760
    %v3277 = vsub.f32 %v3275, %v3276
    %v3278 = vand.u32 %v3277, 4294901760
    %3279 = vmatpush1.msra.mxu0 %v3278
    %v3280 = vand.u32 %v116, 4294901760
    %v3281 = vsub.f32 %v116, %v3280
    %v3282 = vand.u32 %v3281, 4294901760
    %v3283 = vsub.f32 %v3281, %v3282
    %v3284 = vand.u32 %v3283, 4294901760
    %3285 = vmatprep.subr.mxu0 %v3284
    %v3286 = vand.u32 %v115, 4294901760
    %v3287 = vsub.f32 %v115, %v3286
    %v3288 = vand.u32 %v3287, 4294901760
    %v3289 = vsub.f32 %v3287, %v3288
    %v3290 = vand.u32 %v3289, 4294901760
    %3291 = vmatpush1.msra.mxu0 %v3290
    %v3292 = vand.u32 %v118, 4294901760
    %v3293 = vsub.f32 %v118, %v3292
    %v3294 = vand.u32 %v3293, 4294901760
    %v3295 = vsub.f32 %v3293, %v3294
    %v3296 = vand.u32 %v3295, 4294901760
    %3297 = vmatprep.subr.mxu0 %v3296
    %v3298 = vand.u32 %v117, 4294901760
    %v3299 = vsub.f32 %v117, %v3298
    %v3300 = vand.u32 %v3299, 4294901760
    %v3301 = vsub.f32 %v3299, %v3300
    %v3302 = vand.u32 %v3301, 4294901760
    %3303 = vmatpush1.msra.mxu0 %v3302
    %v3304 = vand.u32 %v120, 4294901760
    %v3305 = vsub.f32 %v120, %v3304
    %v3306 = vand.u32 %v3305, 4294901760
    %v3307 = vsub.f32 %v3305, %v3306
    %v3308 = vand.u32 %v3307, 4294901760
    %3309 = vmatprep.subr.mxu0 %v3308
    %v3310 = vand.u32 %v119, 4294901760
    %v3311 = vsub.f32 %v119, %v3310
    %v3312 = vand.u32 %v3311, 4294901760
    %v3313 = vsub.f32 %v3311, %v3312
    %v3314 = vand.u32 %v3313, 4294901760
    %3315 = vmatpush1.msra.mxu0 %v3314
    %v3316 = vand.u32 %v122, 4294901760
    %v3317 = vsub.f32 %v122, %v3316
    %v3318 = vand.u32 %v3317, 4294901760
    %v3319 = vsub.f32 %v3317, %v3318
    %v3320 = vand.u32 %v3319, 4294901760
    %3321 = vmatprep.subr.mxu0 %v3320
    %v3322 = vand.u32 %v121, 4294901760
    %v3323 = vsub.f32 %v121, %v3322
    %v3324 = vand.u32 %v3323, 4294901760
    %v3325 = vsub.f32 %v3323, %v3324
    %v3326 = vand.u32 %v3325, 4294901760
    %3327 = vmatpush1.msra.mxu0 %v3326
    %v3328 = vand.u32 %v124, 4294901760
    %v3329 = vsub.f32 %v124, %v3328
    %v3330 = vand.u32 %v3329, 4294901760
    %v3331 = vsub.f32 %v3329, %v3330
    %v3332 = vand.u32 %v3331, 4294901760
    %3333 = vmatprep.subr.mxu0 %v3332
    %v3334 = vand.u32 %v123, 4294901760
    %v3335 = vsub.f32 %v123, %v3334
    %v3336 = vand.u32 %v3335, 4294901760
    %v3337 = vsub.f32 %v3335, %v3336
    %v3338 = vand.u32 %v3337, 4294901760
    %3339 = vmatpush1.msra.mxu0 %v3338
    %v3340 = vand.u32 %v126, 4294901760
    %v3341 = vsub.f32 %v126, %v3340
    %v3342 = vand.u32 %v3341, 4294901760
    %v3343 = vsub.f32 %v3341, %v3342
    %v3344 = vand.u32 %v3343, 4294901760
    %3345 = vmatprep.subr.mxu0 %v3344
    %v3346 = vand.u32 %v125, 4294901760
    %v3347 = vsub.f32 %v125, %v3346
    %v3348 = vand.u32 %v3347, 4294901760
    %v3349 = vsub.f32 %v3347, %v3348
    %v3350 = vand.u32 %v3349, 4294901760
    %3351 = vmatpush1.msra.mxu0 %v3350
    %v3352 = vand.u32 %v128, 4294901760
    %v3353 = vsub.f32 %v128, %v3352
    %v3354 = vand.u32 %v3353, 4294901760
    %v3355 = vsub.f32 %v3353, %v3354
    %v3356 = vand.u32 %v3355, 4294901760
    %3357 = vmatprep.subr.mxu0 %v3356
    %v3358 = vand.u32 %v127, 4294901760
    %v3359 = vsub.f32 %v127, %v3358
    %v3360 = vand.u32 %v3359, 4294901760
    %v3361 = vsub.f32 %v3359, %v3360
    %v3362 = vand.u32 %v3361, 4294901760
    %3363 = vmatpush1.msra.mxu0 %v3362
    %v3364 = vand.u32 %v130, 4294901760
    %v3365 = vsub.f32 %v130, %v3364
    %v3366 = vand.u32 %v3365, 4294901760
    %v3367 = vsub.f32 %v3365, %v3366
    %v3368 = vand.u32 %v3367, 4294901760
    %3369 = vmatprep.subr.mxu0 %v3368
    %v3370 = vand.u32 %v129, 4294901760
    %v3371 = vsub.f32 %v129, %v3370
    %v3372 = vand.u32 %v3371, 4294901760
    %v3373 = vsub.f32 %v3371, %v3372
    %v3374 = vand.u32 %v3373, 4294901760
    %3375 = vmatpush1.msra.mxu0 %v3374
    %v3376 = vand.u32 %v132, 4294901760
    %v3377 = vsub.f32 %v132, %v3376
    %v3378 = vand.u32 %v3377, 4294901760
    %v3379 = vsub.f32 %v3377, %v3378
    %v3380 = vand.u32 %v3379, 4294901760
    %3381 = vmatprep.subr.mxu0 %v3380
    %v3382 = vand.u32 %v131, 4294901760
    %v3383 = vsub.f32 %v131, %v3382
    %v3384 = vand.u32 %v3383, 4294901760
    %v3385 = vsub.f32 %v3383, %v3384
    %v3386 = vand.u32 %v3385, 4294901760
    %3387 = vmatpush1.msra.mxu0 %v3386
    %v3388 = vand.u32 %v2858, 4294901760
    %3389 = vmatprep.mubr.f32.mxu0 %v3388
    %v3390 = vand.u32 %v2857, 4294901760
    %3391 = vmatmul.mubr.f32.gmra.mrb[0].mxu0 %v3390
    %v3392 = vpop.f32.mrb[0].mxu0
    %v3393 = vadd.f32 %v3000, %v3392
    %v3394 = vpop.f32.mrb[0].mxu0
    %v3395 = vadd.f32 %v3002, %v3394
    %3396 = vdwg.mxu0
    %v3397 = vand.u32 %v70, 4294901760
    %v3398 = vsub.f32 %v70, %v3397
    %3399 = vmatprep.subr.mxu0 %v3398
    %v3400 = vand.u32 %v69, 4294901760
    %v3401 = vsub.f32 %v69, %v3400
    %3402 = vmatpush1.msra.mxu0 %v3401
    %v3403 = vand.u32 %v72, 4294901760
    %v3404 = vsub.f32 %v72, %v3403
    %3405 = vmatprep.subr.mxu0 %v3404
    %v3406 = vand.u32 %v71, 4294901760
    %v3407 = vsub.f32 %v71, %v3406
    %3408 = vmatpush1.msra.mxu0 %v3407
    %v3409 = vand.u32 %v74, 4294901760
    %v3410 = vsub.f32 %v74, %v3409
    %3411 = vmatprep.subr.mxu0 %v3410
    %v3412 = vand.u32 %v73, 4294901760
    %v3413 = vsub.f32 %v73, %v3412
    %3414 = vmatpush1.msra.mxu0 %v3413
    %v3415 = vand.u32 %v76, 4294901760
    %v3416 = vsub.f32 %v76, %v3415
    %3417 = vmatprep.subr.mxu0 %v3416
    %v3418 = vand.u32 %v75, 4294901760
    %v3419 = vsub.f32 %v75, %v3418
    %3420 = vmatpush1.msra.mxu0 %v3419
    %v3421 = vand.u32 %v78, 4294901760
    %v3422 = vsub.f32 %v78, %v3421
    %3423 = vmatprep.subr.mxu0 %v3422
    %v3424 = vand.u32 %v77, 4294901760
    %v3425 = vsub.f32 %v77, %v3424
    %3426 = vmatpush1.msra.mxu0 %v3425
    %v3427 = vand.u32 %v80, 4294901760
    %v3428 = vsub.f32 %v80, %v3427
    %3429 = vmatprep.subr.mxu0 %v3428
    %v3430 = vand.u32 %v79, 4294901760
    %v3431 = vsub.f32 %v79, %v3430
    %3432 = vmatpush1.msra.mxu0 %v3431
    %v3433 = vand.u32 %v82, 4294901760
    %v3434 = vsub.f32 %v82, %v3433
    %3435 = vmatprep.subr.mxu0 %v3434
    %v3436 = vand.u32 %v81, 4294901760
    %v3437 = vsub.f32 %v81, %v3436
    %3438 = vmatpush1.msra.mxu0 %v3437
    %v3439 = vand.u32 %v84, 4294901760
    %v3440 = vsub.f32 %v84, %v3439
    %3441 = vmatprep.subr.mxu0 %v3440
    %v3442 = vand.u32 %v83, 4294901760
    %v3443 = vsub.f32 %v83, %v3442
    %3444 = vmatpush1.msra.mxu0 %v3443
    %v3445 = vand.u32 %v86, 4294901760
    %v3446 = vsub.f32 %v86, %v3445
    %3447 = vmatprep.subr.mxu0 %v3446
    %v3448 = vand.u32 %v85, 4294901760
    %v3449 = vsub.f32 %v85, %v3448
    %3450 = vmatpush1.msra.mxu0 %v3449
    %v3451 = vand.u32 %v88, 4294901760
    %v3452 = vsub.f32 %v88, %v3451
    %3453 = vmatprep.subr.mxu0 %v3452
    %v3454 = vand.u32 %v87, 4294901760
    %v3455 = vsub.f32 %v87, %v3454
    %3456 = vmatpush1.msra.mxu0 %v3455
    %v3457 = vand.u32 %v90, 4294901760
    %v3458 = vsub.f32 %v90, %v3457
    %3459 = vmatprep.subr.mxu0 %v3458
    %v3460 = vand.u32 %v89, 4294901760
    %v3461 = vsub.f32 %v89, %v3460
    %3462 = vmatpush1.msra.mxu0 %v3461
    %v3463 = vand.u32 %v92, 4294901760
    %v3464 = vsub.f32 %v92, %v3463
    %3465 = vmatprep.subr.mxu0 %v3464
    %v3466 = vand.u32 %v91, 4294901760
    %v3467 = vsub.f32 %v91, %v3466
    %3468 = vmatpush1.msra.mxu0 %v3467
    %v3469 = vand.u32 %v94, 4294901760
    %v3470 = vsub.f32 %v94, %v3469
    %3471 = vmatprep.subr.mxu0 %v3470
    %v3472 = vand.u32 %v93, 4294901760
    %v3473 = vsub.f32 %v93, %v3472
    %3474 = vmatpush1.msra.mxu0 %v3473
    %v3475 = vand.u32 %v96, 4294901760
    %v3476 = vsub.f32 %v96, %v3475
    %3477 = vmatprep.subr.mxu0 %v3476
    %v3478 = vand.u32 %v95, 4294901760
    %v3479 = vsub.f32 %v95, %v3478
    %3480 = vmatpush1.msra.mxu0 %v3479
    %v3481 = vand.u32 %v98, 4294901760
    %v3482 = vsub.f32 %v98, %v3481
    %3483 = vmatprep.subr.mxu0 %v3482
    %v3484 = vand.u32 %v97, 4294901760
    %v3485 = vsub.f32 %v97, %v3484
    %3486 = vmatpush1.msra.mxu0 %v3485
    %v3487 = vand.u32 %v100, 4294901760
    %v3488 = vsub.f32 %v100, %v3487
    %3489 = vmatprep.subr.mxu0 %v3488
    %v3490 = vand.u32 %v99, 4294901760
    %v3491 = vsub.f32 %v99, %v3490
    %3492 = vmatpush1.msra.mxu0 %v3491
    %v3493 = vand.u32 %v102, 4294901760
    %v3494 = vsub.f32 %v102, %v3493
    %3495 = vmatprep.subr.mxu0 %v3494
    %v3496 = vand.u32 %v101, 4294901760
    %v3497 = vsub.f32 %v101, %v3496
    %3498 = vmatpush1.msra.mxu0 %v3497
    %v3499 = vand.u32 %v104, 4294901760
    %v3500 = vsub.f32 %v104, %v3499
    %3501 = vmatprep.subr.mxu0 %v3500
    %v3502 = vand.u32 %v103, 4294901760
    %v3503 = vsub.f32 %v103, %v3502
    %3504 = vmatpush1.msra.mxu0 %v3503
    %v3505 = vand.u32 %v106, 4294901760
    %v3506 = vsub.f32 %v106, %v3505
    %3507 = vmatprep.subr.mxu0 %v3506
    %v3508 = vand.u32 %v105, 4294901760
    %v3509 = vsub.f32 %v105, %v3508
    %3510 = vmatpush1.msra.mxu0 %v3509
    %v3511 = vand.u32 %v108, 4294901760
    %v3512 = vsub.f32 %v108, %v3511
    %3513 = vmatprep.subr.mxu0 %v3512
    %v3514 = vand.u32 %v107, 4294901760
    %v3515 = vsub.f32 %v107, %v3514
    %3516 = vmatpush1.msra.mxu0 %v3515
    %v3517 = vand.u32 %v110, 4294901760
    %v3518 = vsub.f32 %v110, %v3517
    %3519 = vmatprep.subr.mxu0 %v3518
    %v3520 = vand.u32 %v109, 4294901760
    %v3521 = vsub.f32 %v109, %v3520
    %3522 = vmatpush1.msra.mxu0 %v3521
    %v3523 = vand.u32 %v112, 4294901760
    %v3524 = vsub.f32 %v112, %v3523
    %3525 = vmatprep.subr.mxu0 %v3524
    %v3526 = vand.u32 %v111, 4294901760
    %v3527 = vsub.f32 %v111, %v3526
    %3528 = vmatpush1.msra.mxu0 %v3527
    %v3529 = vand.u32 %v114, 4294901760
    %v3530 = vsub.f32 %v114, %v3529
    %3531 = vmatprep.subr.mxu0 %v3530
    %v3532 = vand.u32 %v113, 4294901760
    %v3533 = vsub.f32 %v113, %v3532
    %3534 = vmatpush1.msra.mxu0 %v3533
    %v3535 = vand.u32 %v116, 4294901760
    %v3536 = vsub.f32 %v116, %v3535
    %3537 = vmatprep.subr.mxu0 %v3536
    %v3538 = vand.u32 %v115, 4294901760
    %v3539 = vsub.f32 %v115, %v3538
    %3540 = vmatpush1.msra.mxu0 %v3539
    %v3541 = vand.u32 %v118, 4294901760
    %v3542 = vsub.f32 %v118, %v3541
    %3543 = vmatprep.subr.mxu0 %v3542
    %v3544 = vand.u32 %v117, 4294901760
    %v3545 = vsub.f32 %v117, %v3544
    %3546 = vmatpush1.msra.mxu0 %v3545
    %v3547 = vand.u32 %v120, 4294901760
    %v3548 = vsub.f32 %v120, %v3547
    %3549 = vmatprep.subr.mxu0 %v3548
    %v3550 = vand.u32 %v119, 4294901760
    %v3551 = vsub.f32 %v119, %v3550
    %3552 = vmatpush1.msra.mxu0 %v3551
    %v3553 = vand.u32 %v122, 4294901760
    %v3554 = vsub.f32 %v122, %v3553
    %3555 = vmatprep.subr.mxu0 %v3554
    %v3556 = vand.u32 %v121, 4294901760
    %v3557 = vsub.f32 %v121, %v3556
    %3558 = vmatpush1.msra.mxu0 %v3557
    %v3559 = vand.u32 %v124, 4294901760
    %v3560 = vsub.f32 %v124, %v3559
    %3561 = vmatprep.subr.mxu0 %v3560
    %v3562 = vand.u32 %v123, 4294901760
    %v3563 = vsub.f32 %v123, %v3562
    %3564 = vmatpush1.msra.mxu0 %v3563
    %v3565 = vand.u32 %v126, 4294901760
    %v3566 = vsub.f32 %v126, %v3565
    %3567 = vmatprep.subr.mxu0 %v3566
    %v3568 = vand.u32 %v125, 4294901760
    %v3569 = vsub.f32 %v125, %v3568
    %3570 = vmatpush1.msra.mxu0 %v3569
    %v3571 = vand.u32 %v128, 4294901760
    %v3572 = vsub.f32 %v128, %v3571
    %3573 = vmatprep.subr.mxu0 %v3572
    %v3574 = vand.u32 %v127, 4294901760
    %v3575 = vsub.f32 %v127, %v3574
    %3576 = vmatpush1.msra.mxu0 %v3575
    %v3577 = vand.u32 %v130, 4294901760
    %v3578 = vsub.f32 %v130, %v3577
    %3579 = vmatprep.subr.mxu0 %v3578
    %v3580 = vand.u32 %v129, 4294901760
    %v3581 = vsub.f32 %v129, %v3580
    %3582 = vmatpush1.msra.mxu0 %v3581
    %v3583 = vand.u32 %v132, 4294901760
    %v3584 = vsub.f32 %v132, %v3583
    %3585 = vmatprep.subr.mxu0 %v3584
    %v3586 = vand.u32 %v131, 4294901760
    %v3587 = vsub.f32 %v131, %v3586
    %3588 = vmatpush1.msra.mxu0 %v3587
    %v3589 = vand.u32 %v2858, 4294901760
    %v3590 = vsub.f32 %v2858, %v3589
    %3591 = vmatprep.mubr.f32.mxu0 %v3590
    %v3592 = vand.u32 %v2857, 4294901760
    %v3593 = vsub.f32 %v2857, %v3592
    %3594 = vmatmul.mubr.f32.gmra.mrb[0].mxu0 %v3593
    %v3595 = vpop.f32.mrb[0].mxu0
    %v3596 = vadd.f32 %v3393, %v3595
    %v3597 = vpop.f32.mrb[0].mxu0
    %v3598 = vadd.f32 %v3395, %v3597
    %3599 = vdwg.mxu0
    %v3600 = vand.u32 %v70, 4294901760
    %3601 = vmatprep.subr.mxu0 %v3600
    %v3602 = vand.u32 %v69, 4294901760
    %3603 = vmatpush1.msra.mxu0 %v3602
    %v3604 = vand.u32 %v72, 4294901760
    %3605 = vmatprep.subr.mxu0 %v3604
    %v3606 = vand.u32 %v71, 4294901760
    %3607 = vmatpush1.msra.mxu0 %v3606
    %v3608 = vand.u32 %v74, 4294901760
    %3609 = vmatprep.subr.mxu0 %v3608
    %v3610 = vand.u32 %v73, 4294901760
    %3611 = vmatpush1.msra.mxu0 %v3610
    %v3612 = vand.u32 %v76, 4294901760
    %3613 = vmatprep.subr.mxu0 %v3612
    %v3614 = vand.u32 %v75, 4294901760
    %3615 = vmatpush1.msra.mxu0 %v3614
    %v3616 = vand.u32 %v78, 4294901760
    %3617 = vmatprep.subr.mxu0 %v3616
    %v3618 = vand.u32 %v77, 4294901760
    %3619 = vmatpush1.msra.mxu0 %v3618
    %v3620 = vand.u32 %v80, 4294901760
    %3621 = vmatprep.subr.mxu0 %v3620
    %v3622 = vand.u32 %v79, 4294901760
    %3623 = vmatpush1.msra.mxu0 %v3622
    %v3624 = vand.u32 %v82, 4294901760
    %3625 = vmatprep.subr.mxu0 %v3624
    %v3626 = vand.u32 %v81, 4294901760
    %3627 = vmatpush1.msra.mxu0 %v3626
    %v3628 = vand.u32 %v84, 4294901760
    %3629 = vmatprep.subr.mxu0 %v3628
    %v3630 = vand.u32 %v83, 4294901760
    %3631 = vmatpush1.msra.mxu0 %v3630
    %v3632 = vand.u32 %v86, 4294901760
    %3633 = vmatprep.subr.mxu0 %v3632
    %v3634 = vand.u32 %v85, 4294901760
    %3635 = vmatpush1.msra.mxu0 %v3634
    %v3636 = vand.u32 %v88, 4294901760
    %3637 = vmatprep.subr.mxu0 %v3636
    %v3638 = vand.u32 %v87, 4294901760
    %3639 = vmatpush1.msra.mxu0 %v3638
    %v3640 = vand.u32 %v90, 4294901760
    %3641 = vmatprep.subr.mxu0 %v3640
    %v3642 = vand.u32 %v89, 4294901760
    %3643 = vmatpush1.msra.mxu0 %v3642
    %v3644 = vand.u32 %v92, 4294901760
    %3645 = vmatprep.subr.mxu0 %v3644
    %v3646 = vand.u32 %v91, 4294901760
    %3647 = vmatpush1.msra.mxu0 %v3646
    %v3648 = vand.u32 %v94, 4294901760
    %3649 = vmatprep.subr.mxu0 %v3648
    %v3650 = vand.u32 %v93, 4294901760
    %3651 = vmatpush1.msra.mxu0 %v3650
    %v3652 = vand.u32 %v96, 4294901760
    %3653 = vmatprep.subr.mxu0 %v3652
    %v3654 = vand.u32 %v95, 4294901760
    %3655 = vmatpush1.msra.mxu0 %v3654
    %v3656 = vand.u32 %v98, 4294901760
    %3657 = vmatprep.subr.mxu0 %v3656
    %v3658 = vand.u32 %v97, 4294901760
    %3659 = vmatpush1.msra.mxu0 %v3658
    %v3660 = vand.u32 %v100, 4294901760
    %3661 = vmatprep.subr.mxu0 %v3660
    %v3662 = vand.u32 %v99, 4294901760
    %3663 = vmatpush1.msra.mxu0 %v3662
    %v3664 = vand.u32 %v102, 4294901760
    %3665 = vmatprep.subr.mxu0 %v3664
    %v3666 = vand.u32 %v101, 4294901760
    %3667 = vmatpush1.msra.mxu0 %v3666
    %v3668 = vand.u32 %v104, 4294901760
    %3669 = vmatprep.subr.mxu0 %v3668
    %v3670 = vand.u32 %v103, 4294901760
    %3671 = vmatpush1.msra.mxu0 %v3670
    %v3672 = vand.u32 %v106, 4294901760
    %3673 = vmatprep.subr.mxu0 %v3672
    %v3674 = vand.u32 %v105, 4294901760
    %3675 = vmatpush1.msra.mxu0 %v3674
    %v3676 = vand.u32 %v108, 4294901760
    %3677 = vmatprep.subr.mxu0 %v3676
    %v3678 = vand.u32 %v107, 4294901760
    %3679 = vmatpush1.msra.mxu0 %v3678
    %v3680 = vand.u32 %v110, 4294901760
    %3681 = vmatprep.subr.mxu0 %v3680
    %v3682 = vand.u32 %v109, 4294901760
    %3683 = vmatpush1.msra.mxu0 %v3682
    %v3684 = vand.u32 %v112, 4294901760
    %3685 = vmatprep.subr.mxu0 %v3684
    %v3686 = vand.u32 %v111, 4294901760
    %3687 = vmatpush1.msra.mxu0 %v3686
    %v3688 = vand.u32 %v114, 4294901760
    %3689 = vmatprep.subr.mxu0 %v3688
    %v3690 = vand.u32 %v113, 4294901760
    %3691 = vmatpush1.msra.mxu0 %v3690
    %v3692 = vand.u32 %v116, 4294901760
    %3693 = vmatprep.subr.mxu0 %v3692
    %v3694 = vand.u32 %v115, 4294901760
    %3695 = vmatpush1.msra.mxu0 %v3694
    %v3696 = vand.u32 %v118, 4294901760
    %3697 = vmatprep.subr.mxu0 %v3696
    %v3698 = vand.u32 %v117, 4294901760
    %3699 = vmatpush1.msra.mxu0 %v3698
    %v3700 = vand.u32 %v120, 4294901760
    %3701 = vmatprep.subr.mxu0 %v3700
    %v3702 = vand.u32 %v119, 4294901760
    %3703 = vmatpush1.msra.mxu0 %v3702
    %v3704 = vand.u32 %v122, 4294901760
    %3705 = vmatprep.subr.mxu0 %v3704
    %v3706 = vand.u32 %v121, 4294901760
    %3707 = vmatpush1.msra.mxu0 %v3706
    %v3708 = vand.u32 %v124, 4294901760
    %3709 = vmatprep.subr.mxu0 %v3708
    %v3710 = vand.u32 %v123, 4294901760
    %3711 = vmatpush1.msra.mxu0 %v3710
    %v3712 = vand.u32 %v126, 4294901760
    %3713 = vmatprep.subr.mxu0 %v3712
    %v3714 = vand.u32 %v125, 4294901760
    %3715 = vmatpush1.msra.mxu0 %v3714
    %v3716 = vand.u32 %v128, 4294901760
    %3717 = vmatprep.subr.mxu0 %v3716
    %v3718 = vand.u32 %v127, 4294901760
    %3719 = vmatpush1.msra.mxu0 %v3718
    %v3720 = vand.u32 %v130, 4294901760
    %3721 = vmatprep.subr.mxu0 %v3720
    %v3722 = vand.u32 %v129, 4294901760
    %3723 = vmatpush1.msra.mxu0 %v3722
    %v3724 = vand.u32 %v132, 4294901760
    %3725 = vmatprep.subr.mxu0 %v3724
    %v3726 = vand.u32 %v131, 4294901760
    %3727 = vmatpush1.msra.mxu0 %v3726
    %v3728 = vand.u32 %v2858, 4294901760
    %v3729 = vsub.f32 %v2858, %v3728
    %v3730 = vand.u32 %v3729, 4294901760
    %3731 = vmatprep.mubr.f32.mxu0 %v3730
    %v3732 = vand.u32 %v2857, 4294901760
    %v3733 = vsub.f32 %v2857, %v3732
    %v3734 = vand.u32 %v3733, 4294901760
    %3735 = vmatmul.mubr.f32.gmra.mrb[0].mxu0 %v3734
    %v3736 = vpop.f32.mrb[0].mxu0
    %v3737 = vadd.f32 %v3596, %v3736
    %v3738 = vpop.f32.mrb[0].mxu0
    %v3739 = vadd.f32 %v3598, %v3738
    %3740 = vdwg.mxu0
    %v3741 = vand.u32 %v70, 4294901760
    %v3742 = vsub.f32 %v70, %v3741
    %v3743 = vand.u32 %v3742, 4294901760
    %3744 = vmatprep.subr.mxu0 %v3743
    %v3745 = vand.u32 %v69, 4294901760
    %v3746 = vsub.f32 %v69, %v3745
    %v3747 = vand.u32 %v3746, 4294901760
    %3748 = vmatpush1.msra.mxu0 %v3747
    %v3749 = vand.u32 %v72, 4294901760
    %v3750 = vsub.f32 %v72, %v3749
    %v3751 = vand.u32 %v3750, 4294901760
    %3752 = vmatprep.subr.mxu0 %v3751
    %v3753 = vand.u32 %v71, 4294901760
    %v3754 = vsub.f32 %v71, %v3753
    %v3755 = vand.u32 %v3754, 4294901760
    %3756 = vmatpush1.msra.mxu0 %v3755
    %v3757 = vand.u32 %v74, 4294901760
    %v3758 = vsub.f32 %v74, %v3757
    %v3759 = vand.u32 %v3758, 4294901760
    %3760 = vmatprep.subr.mxu0 %v3759
    %v3761 = vand.u32 %v73, 4294901760
    %v3762 = vsub.f32 %v73, %v3761
    %v3763 = vand.u32 %v3762, 4294901760
    %3764 = vmatpush1.msra.mxu0 %v3763
    %v3765 = vand.u32 %v76, 4294901760
    %v3766 = vsub.f32 %v76, %v3765
    %v3767 = vand.u32 %v3766, 4294901760
    %3768 = vmatprep.subr.mxu0 %v3767
    %v3769 = vand.u32 %v75, 4294901760
    %v3770 = vsub.f32 %v75, %v3769
    %v3771 = vand.u32 %v3770, 4294901760
    %3772 = vmatpush1.msra.mxu0 %v3771
    %v3773 = vand.u32 %v78, 4294901760
    %v3774 = vsub.f32 %v78, %v3773
    %v3775 = vand.u32 %v3774, 4294901760
    %3776 = vmatprep.subr.mxu0 %v3775
    %v3777 = vand.u32 %v77, 4294901760
    %v3778 = vsub.f32 %v77, %v3777
    %v3779 = vand.u32 %v3778, 4294901760
    %3780 = vmatpush1.msra.mxu0 %v3779
    %v3781 = vand.u32 %v80, 4294901760
    %v3782 = vsub.f32 %v80, %v3781
    %v3783 = vand.u32 %v3782, 4294901760
    %3784 = vmatprep.subr.mxu0 %v3783
    %v3785 = vand.u32 %v79, 4294901760
    %v3786 = vsub.f32 %v79, %v3785
    %v3787 = vand.u32 %v3786, 4294901760
    %3788 = vmatpush1.msra.mxu0 %v3787
    %v3789 = vand.u32 %v82, 4294901760
    %v3790 = vsub.f32 %v82, %v3789
    %v3791 = vand.u32 %v3790, 4294901760
    %3792 = vmatprep.subr.mxu0 %v3791
    %v3793 = vand.u32 %v81, 4294901760
    %v3794 = vsub.f32 %v81, %v3793
    %v3795 = vand.u32 %v3794, 4294901760
    %3796 = vmatpush1.msra.mxu0 %v3795
    %v3797 = vand.u32 %v84, 4294901760
    %v3798 = vsub.f32 %v84, %v3797
    %v3799 = vand.u32 %v3798, 4294901760
    %3800 = vmatprep.subr.mxu0 %v3799
    %v3801 = vand.u32 %v83, 4294901760
    %v3802 = vsub.f32 %v83, %v3801
    %v3803 = vand.u32 %v3802, 4294901760
    %3804 = vmatpush1.msra.mxu0 %v3803
    %v3805 = vand.u32 %v86, 4294901760
    %v3806 = vsub.f32 %v86, %v3805
    %v3807 = vand.u32 %v3806, 4294901760
    %3808 = vmatprep.subr.mxu0 %v3807
    %v3809 = vand.u32 %v85, 4294901760
    %v3810 = vsub.f32 %v85, %v3809
    %v3811 = vand.u32 %v3810, 4294901760
    %3812 = vmatpush1.msra.mxu0 %v3811
    %v3813 = vand.u32 %v88, 4294901760
    %v3814 = vsub.f32 %v88, %v3813
    %v3815 = vand.u32 %v3814, 4294901760
    %3816 = vmatprep.subr.mxu0 %v3815
    %v3817 = vand.u32 %v87, 4294901760
    %v3818 = vsub.f32 %v87, %v3817
    %v3819 = vand.u32 %v3818, 4294901760
    %3820 = vmatpush1.msra.mxu0 %v3819
    %v3821 = vand.u32 %v90, 4294901760
    %v3822 = vsub.f32 %v90, %v3821
    %v3823 = vand.u32 %v3822, 4294901760
    %3824 = vmatprep.subr.mxu0 %v3823
    %v3825 = vand.u32 %v89, 4294901760
    %v3826 = vsub.f32 %v89, %v3825
    %v3827 = vand.u32 %v3826, 4294901760
    %3828 = vmatpush1.msra.mxu0 %v3827
    %v3829 = vand.u32 %v92, 4294901760
    %v3830 = vsub.f32 %v92, %v3829
    %v3831 = vand.u32 %v3830, 4294901760
    %3832 = vmatprep.subr.mxu0 %v3831
    %v3833 = vand.u32 %v91, 4294901760
    %v3834 = vsub.f32 %v91, %v3833
    %v3835 = vand.u32 %v3834, 4294901760
    %3836 = vmatpush1.msra.mxu0 %v3835
    %v3837 = vand.u32 %v94, 4294901760
    %v3838 = vsub.f32 %v94, %v3837
    %v3839 = vand.u32 %v3838, 4294901760
    %3840 = vmatprep.subr.mxu0 %v3839
    %v3841 = vand.u32 %v93, 4294901760
    %v3842 = vsub.f32 %v93, %v3841
    %v3843 = vand.u32 %v3842, 4294901760
    %3844 = vmatpush1.msra.mxu0 %v3843
    %v3845 = vand.u32 %v96, 4294901760
    %v3846 = vsub.f32 %v96, %v3845
    %v3847 = vand.u32 %v3846, 4294901760
    %3848 = vmatprep.subr.mxu0 %v3847
    %v3849 = vand.u32 %v95, 4294901760
    %v3850 = vsub.f32 %v95, %v3849
    %v3851 = vand.u32 %v3850, 4294901760
    %3852 = vmatpush1.msra.mxu0 %v3851
    %v3853 = vand.u32 %v98, 4294901760
    %v3854 = vsub.f32 %v98, %v3853
    %v3855 = vand.u32 %v3854, 4294901760
    %3856 = vmatprep.subr.mxu0 %v3855
    %v3857 = vand.u32 %v97, 4294901760
    %v3858 = vsub.f32 %v97, %v3857
    %v3859 = vand.u32 %v3858, 4294901760
    %3860 = vmatpush1.msra.mxu0 %v3859
    %v3861 = vand.u32 %v100, 4294901760
    %v3862 = vsub.f32 %v100, %v3861
    %v3863 = vand.u32 %v3862, 4294901760
    %3864 = vmatprep.subr.mxu0 %v3863
    %v3865 = vand.u32 %v99, 4294901760
    %v3866 = vsub.f32 %v99, %v3865
    %v3867 = vand.u32 %v3866, 4294901760
    %3868 = vmatpush1.msra.mxu0 %v3867
    %v3869 = vand.u32 %v102, 4294901760
    %v3870 = vsub.f32 %v102, %v3869
    %v3871 = vand.u32 %v3870, 4294901760
    %3872 = vmatprep.subr.mxu0 %v3871
    %v3873 = vand.u32 %v101, 4294901760
    %v3874 = vsub.f32 %v101, %v3873
    %v3875 = vand.u32 %v3874, 4294901760
    %3876 = vmatpush1.msra.mxu0 %v3875
    %v3877 = vand.u32 %v104, 4294901760
    %v3878 = vsub.f32 %v104, %v3877
    %v3879 = vand.u32 %v3878, 4294901760
    %3880 = vmatprep.subr.mxu0 %v3879
    %v3881 = vand.u32 %v103, 4294901760
    %v3882 = vsub.f32 %v103, %v3881
    %v3883 = vand.u32 %v3882, 4294901760
    %3884 = vmatpush1.msra.mxu0 %v3883
    %v3885 = vand.u32 %v106, 4294901760
    %v3886 = vsub.f32 %v106, %v3885
    %v3887 = vand.u32 %v3886, 4294901760
    %3888 = vmatprep.subr.mxu0 %v3887
    %v3889 = vand.u32 %v105, 4294901760
    %v3890 = vsub.f32 %v105, %v3889
    %v3891 = vand.u32 %v3890, 4294901760
    %3892 = vmatpush1.msra.mxu0 %v3891
    %v3893 = vand.u32 %v108, 4294901760
    %v3894 = vsub.f32 %v108, %v3893
    %v3895 = vand.u32 %v3894, 4294901760
    %3896 = vmatprep.subr.mxu0 %v3895
    %v3897 = vand.u32 %v107, 4294901760
    %v3898 = vsub.f32 %v107, %v3897
    %v3899 = vand.u32 %v3898, 4294901760
    %3900 = vmatpush1.msra.mxu0 %v3899
    %v3901 = vand.u32 %v110, 4294901760
    %v3902 = vsub.f32 %v110, %v3901
    %v3903 = vand.u32 %v3902, 4294901760
    %3904 = vmatprep.subr.mxu0 %v3903
    %v3905 = vand.u32 %v109, 4294901760
    %v3906 = vsub.f32 %v109, %v3905
    %v3907 = vand.u32 %v3906, 4294901760
    %3908 = vmatpush1.msra.mxu0 %v3907
    %v3909 = vand.u32 %v112, 4294901760
    %v3910 = vsub.f32 %v112, %v3909
    %v3911 = vand.u32 %v3910, 4294901760
    %3912 = vmatprep.subr.mxu0 %v3911
    %v3913 = vand.u32 %v111, 4294901760
    %v3914 = vsub.f32 %v111, %v3913
    %v3915 = vand.u32 %v3914, 4294901760
    %3916 = vmatpush1.msra.mxu0 %v3915
    %v3917 = vand.u32 %v114, 4294901760
    %v3918 = vsub.f32 %v114, %v3917
    %v3919 = vand.u32 %v3918, 4294901760
    %3920 = vmatprep.subr.mxu0 %v3919
    %v3921 = vand.u32 %v113, 4294901760
    %v3922 = vsub.f32 %v113, %v3921
    %v3923 = vand.u32 %v3922, 4294901760
    %3924 = vmatpush1.msra.mxu0 %v3923
    %v3925 = vand.u32 %v116, 4294901760
    %v3926 = vsub.f32 %v116, %v3925
    %v3927 = vand.u32 %v3926, 4294901760
    %3928 = vmatprep.subr.mxu0 %v3927
    %v3929 = vand.u32 %v115, 4294901760
    %v3930 = vsub.f32 %v115, %v3929
    %v3931 = vand.u32 %v3930, 4294901760
    %3932 = vmatpush1.msra.mxu0 %v3931
    %v3933 = vand.u32 %v118, 4294901760
    %v3934 = vsub.f32 %v118, %v3933
    %v3935 = vand.u32 %v3934, 4294901760
    %3936 = vmatprep.subr.mxu0 %v3935
    %v3937 = vand.u32 %v117, 4294901760
    %v3938 = vsub.f32 %v117, %v3937
    %v3939 = vand.u32 %v3938, 4294901760
    %3940 = vmatpush1.msra.mxu0 %v3939
    %v3941 = vand.u32 %v120, 4294901760
    %v3942 = vsub.f32 %v120, %v3941
    %v3943 = vand.u32 %v3942, 4294901760
    %3944 = vmatprep.subr.mxu0 %v3943
    %v3945 = vand.u32 %v119, 4294901760
    %v3946 = vsub.f32 %v119, %v3945
    %v3947 = vand.u32 %v3946, 4294901760
    %3948 = vmatpush1.msra.mxu0 %v3947
    %v3949 = vand.u32 %v122, 4294901760
    %v3950 = vsub.f32 %v122, %v3949
    %v3951 = vand.u32 %v3950, 4294901760
    %3952 = vmatprep.subr.mxu0 %v3951
    %v3953 = vand.u32 %v121, 4294901760
    %v3954 = vsub.f32 %v121, %v3953
    %v3955 = vand.u32 %v3954, 4294901760
    %3956 = vmatpush1.msra.mxu0 %v3955
    %v3957 = vand.u32 %v124, 4294901760
    %v3958 = vsub.f32 %v124, %v3957
    %v3959 = vand.u32 %v3958, 4294901760
    %3960 = vmatprep.subr.mxu0 %v3959
    %v3961 = vand.u32 %v123, 4294901760
    %v3962 = vsub.f32 %v123, %v3961
    %v3963 = vand.u32 %v3962, 4294901760
    %3964 = vmatpush1.msra.mxu0 %v3963
    %v3965 = vand.u32 %v126, 4294901760
    %v3966 = vsub.f32 %v126, %v3965
    %v3967 = vand.u32 %v3966, 4294901760
    %3968 = vmatprep.subr.mxu0 %v3967
    %v3969 = vand.u32 %v125, 4294901760
    %v3970 = vsub.f32 %v125, %v3969
    %v3971 = vand.u32 %v3970, 4294901760
    %3972 = vmatpush1.msra.mxu0 %v3971
    %v3973 = vand.u32 %v128, 4294901760
    %v3974 = vsub.f32 %v128, %v3973
    %v3975 = vand.u32 %v3974, 4294901760
    %3976 = vmatprep.subr.mxu0 %v3975
    %v3977 = vand.u32 %v127, 4294901760
    %v3978 = vsub.f32 %v127, %v3977
    %v3979 = vand.u32 %v3978, 4294901760
    %3980 = vmatpush1.msra.mxu0 %v3979
    %v3981 = vand.u32 %v130, 4294901760
    %v3982 = vsub.f32 %v130, %v3981
    %v3983 = vand.u32 %v3982, 4294901760
    %3984 = vmatprep.subr.mxu0 %v3983
    %v3985 = vand.u32 %v129, 4294901760
    %v3986 = vsub.f32 %v129, %v3985
    %v3987 = vand.u32 %v3986, 4294901760
    %3988 = vmatpush1.msra.mxu0 %v3987
    %v3989 = vand.u32 %v132, 4294901760
    %v3990 = vsub.f32 %v132, %v3989
    %v3991 = vand.u32 %v3990, 4294901760
    %3992 = vmatprep.subr.mxu0 %v3991
    %v3993 = vand.u32 %v131, 4294901760
    %v3994 = vsub.f32 %v131, %v3993
    %v3995 = vand.u32 %v3994, 4294901760
    %3996 = vmatpush1.msra.mxu0 %v3995
    %v3997 = vand.u32 %v2858, 4294901760
    %3998 = vmatprep.mubr.f32.mxu0 %v3997
    %v3999 = vand.u32 %v2857, 4294901760
    %4000 = vmatmul.mubr.f32.gmra.mrb[0].mxu0 %v3999
    %v4001 = vpop.f32.mrb[0].mxu0
    %v4002 = vadd.f32 %v3737, %v4001
    %v4003 = vpop.f32.mrb[0].mxu0
    %v4004 = vadd.f32 %v3739, %v4003
    %4005 = vdwg.mxu0
    %v4006 = vand.u32 %v70, 4294901760
    %4007 = vmatprep.subr.mxu0 %v4006
    %v4008 = vand.u32 %v69, 4294901760
    %4009 = vmatpush1.msra.mxu0 %v4008
    %v4010 = vand.u32 %v72, 4294901760
    %4011 = vmatprep.subr.mxu0 %v4010
    %v4012 = vand.u32 %v71, 4294901760
    %4013 = vmatpush1.msra.mxu0 %v4012
    %v4014 = vand.u32 %v74, 4294901760
    %4015 = vmatprep.subr.mxu0 %v4014
    %v4016 = vand.u32 %v73, 4294901760
    %4017 = vmatpush1.msra.mxu0 %v4016
    %v4018 = vand.u32 %v76, 4294901760
    %4019 = vmatprep.subr.mxu0 %v4018
    %v4020 = vand.u32 %v75, 4294901760
    %4021 = vmatpush1.msra.mxu0 %v4020
    %v4022 = vand.u32 %v78, 4294901760
    %4023 = vmatprep.subr.mxu0 %v4022
    %v4024 = vand.u32 %v77, 4294901760
    %4025 = vmatpush1.msra.mxu0 %v4024
    %v4026 = vand.u32 %v80, 4294901760
    %4027 = vmatprep.subr.mxu0 %v4026
    %v4028 = vand.u32 %v79, 4294901760
    %4029 = vmatpush1.msra.mxu0 %v4028
    %v4030 = vand.u32 %v82, 4294901760
    %4031 = vmatprep.subr.mxu0 %v4030
    %v4032 = vand.u32 %v81, 4294901760
    %4033 = vmatpush1.msra.mxu0 %v4032
    %v4034 = vand.u32 %v84, 4294901760
    %4035 = vmatprep.subr.mxu0 %v4034
    %v4036 = vand.u32 %v83, 4294901760
    %4037 = vmatpush1.msra.mxu0 %v4036
    %v4038 = vand.u32 %v86, 4294901760
    %4039 = vmatprep.subr.mxu0 %v4038
    %v4040 = vand.u32 %v85, 4294901760
    %4041 = vmatpush1.msra.mxu0 %v4040
    %v4042 = vand.u32 %v88, 4294901760
    %4043 = vmatprep.subr.mxu0 %v4042
    %v4044 = vand.u32 %v87, 4294901760
    %4045 = vmatpush1.msra.mxu0 %v4044
    %v4046 = vand.u32 %v90, 4294901760
    %4047 = vmatprep.subr.mxu0 %v4046
    %v4048 = vand.u32 %v89, 4294901760
    %4049 = vmatpush1.msra.mxu0 %v4048
    %v4050 = vand.u32 %v92, 4294901760
    %4051 = vmatprep.subr.mxu0 %v4050
    %v4052 = vand.u32 %v91, 4294901760
    %4053 = vmatpush1.msra.mxu0 %v4052
    %v4054 = vand.u32 %v94, 4294901760
    %4055 = vmatprep.subr.mxu0 %v4054
    %v4056 = vand.u32 %v93, 4294901760
    %4057 = vmatpush1.msra.mxu0 %v4056
    %v4058 = vand.u32 %v96, 4294901760
    %4059 = vmatprep.subr.mxu0 %v4058
    %v4060 = vand.u32 %v95, 4294901760
    %4061 = vmatpush1.msra.mxu0 %v4060
    %v4062 = vand.u32 %v98, 4294901760
    %4063 = vmatprep.subr.mxu0 %v4062
    %v4064 = vand.u32 %v97, 4294901760
    %4065 = vmatpush1.msra.mxu0 %v4064
    %v4066 = vand.u32 %v100, 4294901760
    %4067 = vmatprep.subr.mxu0 %v4066
    %v4068 = vand.u32 %v99, 4294901760
    %4069 = vmatpush1.msra.mxu0 %v4068
    %v4070 = vand.u32 %v102, 4294901760
    %4071 = vmatprep.subr.mxu0 %v4070
    %v4072 = vand.u32 %v101, 4294901760
    %4073 = vmatpush1.msra.mxu0 %v4072
    %v4074 = vand.u32 %v104, 4294901760
    %4075 = vmatprep.subr.mxu0 %v4074
    %v4076 = vand.u32 %v103, 4294901760
    %4077 = vmatpush1.msra.mxu0 %v4076
    %v4078 = vand.u32 %v106, 4294901760
    %4079 = vmatprep.subr.mxu0 %v4078
    %v4080 = vand.u32 %v105, 4294901760
    %4081 = vmatpush1.msra.mxu0 %v4080
    %v4082 = vand.u32 %v108, 4294901760
    %4083 = vmatprep.subr.mxu0 %v4082
    %v4084 = vand.u32 %v107, 4294901760
    %4085 = vmatpush1.msra.mxu0 %v4084
    %v4086 = vand.u32 %v110, 4294901760
    %4087 = vmatprep.subr.mxu0 %v4086
    %v4088 = vand.u32 %v109, 4294901760
    %4089 = vmatpush1.msra.mxu0 %v4088
    %v4090 = vand.u32 %v112, 4294901760
    %4091 = vmatprep.subr.mxu0 %v4090
    %v4092 = vand.u32 %v111, 4294901760
    %4093 = vmatpush1.msra.mxu0 %v4092
    %v4094 = vand.u32 %v114, 4294901760
    %4095 = vmatprep.subr.mxu0 %v4094
    %v4096 = vand.u32 %v113, 4294901760
    %4097 = vmatpush1.msra.mxu0 %v4096
    %v4098 = vand.u32 %v116, 4294901760
    %4099 = vmatprep.subr.mxu0 %v4098
    %v4100 = vand.u32 %v115, 4294901760
    %4101 = vmatpush1.msra.mxu0 %v4100
    %v4102 = vand.u32 %v118, 4294901760
    %4103 = vmatprep.subr.mxu0 %v4102
    %v4104 = vand.u32 %v117, 4294901760
    %4105 = vmatpush1.msra.mxu0 %v4104
    %v4106 = vand.u32 %v120, 4294901760
    %4107 = vmatprep.subr.mxu0 %v4106
    %v4108 = vand.u32 %v119, 4294901760
    %4109 = vmatpush1.msra.mxu0 %v4108
    %v4110 = vand.u32 %v122, 4294901760
    %4111 = vmatprep.subr.mxu0 %v4110
    %v4112 = vand.u32 %v121, 4294901760
    %4113 = vmatpush1.msra.mxu0 %v4112
    %v4114 = vand.u32 %v124, 4294901760
    %4115 = vmatprep.subr.mxu0 %v4114
    %v4116 = vand.u32 %v123, 4294901760
    %4117 = vmatpush1.msra.mxu0 %v4116
    %v4118 = vand.u32 %v126, 4294901760
    %4119 = vmatprep.subr.mxu0 %v4118
    %v4120 = vand.u32 %v125, 4294901760
    %4121 = vmatpush1.msra.mxu0 %v4120
    %v4122 = vand.u32 %v128, 4294901760
    %4123 = vmatprep.subr.mxu0 %v4122
    %v4124 = vand.u32 %v127, 4294901760
    %4125 = vmatpush1.msra.mxu0 %v4124
    %v4126 = vand.u32 %v130, 4294901760
    %4127 = vmatprep.subr.mxu0 %v4126
    %v4128 = vand.u32 %v129, 4294901760
    %4129 = vmatpush1.msra.mxu0 %v4128
    %v4130 = vand.u32 %v132, 4294901760
    %4131 = vmatprep.subr.mxu0 %v4130
    %v4132 = vand.u32 %v131, 4294901760
    %4133 = vmatpush1.msra.mxu0 %v4132
    %v4134 = vand.u32 %v2858, 4294901760
    %4135 = vmatprep.mubr.f32.mxu0 %v4134
    %v4136 = vand.u32 %v2857, 4294901760
    %4137 = vmatmul.mubr.f32.gmra.mrb[0].mxu0 %v4136
    %v4138 = vpop.f32.mrb[0].mxu0
    %v4139 = vadd.f32 %v4002, %v4138
    %v4140 = vpop.f32.mrb[0].mxu0
    %v4141 = vadd.f32 %v4004, %v4140
    %4142 = vdwg.mxu0
    %v4143 = vand.u32 %v134, 4294901760
    %4144 = vmatprep.subr.mxu0 %v4143
    %v4145 = vand.u32 %v133, 4294901760
    %4146 = vmatpush1.msra.mxu0 %v4145
    %v4147 = vand.u32 %v136, 4294901760
    %4148 = vmatprep.subr.mxu0 %v4147
    %v4149 = vand.u32 %v135, 4294901760
    %4150 = vmatpush1.msra.mxu0 %v4149
    %v4151 = vand.u32 %v138, 4294901760
    %4152 = vmatprep.subr.mxu0 %v4151
    %v4153 = vand.u32 %v137, 4294901760
    %4154 = vmatpush1.msra.mxu0 %v4153
    %v4155 = vand.u32 %v140, 4294901760
    %4156 = vmatprep.subr.mxu0 %v4155
    %v4157 = vand.u32 %v139, 4294901760
    %4158 = vmatpush1.msra.mxu0 %v4157
    %v4159 = vand.u32 %v142, 4294901760
    %4160 = vmatprep.subr.mxu0 %v4159
    %v4161 = vand.u32 %v141, 4294901760
    %4162 = vmatpush1.msra.mxu0 %v4161
    %v4163 = vand.u32 %v144, 4294901760
    %4164 = vmatprep.subr.mxu0 %v4163
    %v4165 = vand.u32 %v143, 4294901760
    %4166 = vmatpush1.msra.mxu0 %v4165
    %v4167 = vand.u32 %v146, 4294901760
    %4168 = vmatprep.subr.mxu0 %v4167
    %v4169 = vand.u32 %v145, 4294901760
    %4170 = vmatpush1.msra.mxu0 %v4169
    %v4171 = vand.u32 %v148, 4294901760
    %4172 = vmatprep.subr.mxu0 %v4171
    %v4173 = vand.u32 %v147, 4294901760
    %4174 = vmatpush1.msra.mxu0 %v4173
    %v4175 = vand.u32 %v150, 4294901760
    %4176 = vmatprep.subr.mxu0 %v4175
    %v4177 = vand.u32 %v149, 4294901760
    %4178 = vmatpush1.msra.mxu0 %v4177
    %v4179 = vand.u32 %v152, 4294901760
    %4180 = vmatprep.subr.mxu0 %v4179
    %v4181 = vand.u32 %v151, 4294901760
    %4182 = vmatpush1.msra.mxu0 %v4181
    %v4183 = vand.u32 %v154, 4294901760
    %4184 = vmatprep.subr.mxu0 %v4183
    %v4185 = vand.u32 %v153, 4294901760
    %4186 = vmatpush1.msra.mxu0 %v4185
    %v4187 = vand.u32 %v156, 4294901760
    %4188 = vmatprep.subr.mxu0 %v4187
    %v4189 = vand.u32 %v155, 4294901760
    %4190 = vmatpush1.msra.mxu0 %v4189
    %v4191 = vand.u32 %v158, 4294901760
    %4192 = vmatprep.subr.mxu0 %v4191
    %v4193 = vand.u32 %v157, 4294901760
    %4194 = vmatpush1.msra.mxu0 %v4193
    %v4195 = vand.u32 %v160, 4294901760
    %4196 = vmatprep.subr.mxu0 %v4195
    %v4197 = vand.u32 %v159, 4294901760
    %4198 = vmatpush1.msra.mxu0 %v4197
    %v4199 = vand.u32 %v162, 4294901760
    %4200 = vmatprep.subr.mxu0 %v4199
    %v4201 = vand.u32 %v161, 4294901760
    %4202 = vmatpush1.msra.mxu0 %v4201
    %v4203 = vand.u32 %v164, 4294901760
    %4204 = vmatprep.subr.mxu0 %v4203
    %v4205 = vand.u32 %v163, 4294901760
    %4206 = vmatpush1.msra.mxu0 %v4205
    %v4207 = vand.u32 %v166, 4294901760
    %4208 = vmatprep.subr.mxu0 %v4207
    %v4209 = vand.u32 %v165, 4294901760
    %4210 = vmatpush1.msra.mxu0 %v4209
    %v4211 = vand.u32 %v168, 4294901760
    %4212 = vmatprep.subr.mxu0 %v4211
    %v4213 = vand.u32 %v167, 4294901760
    %4214 = vmatpush1.msra.mxu0 %v4213
    %v4215 = vand.u32 %v170, 4294901760
    %4216 = vmatprep.subr.mxu0 %v4215
    %v4217 = vand.u32 %v169, 4294901760
    %4218 = vmatpush1.msra.mxu0 %v4217
    %v4219 = vand.u32 %v172, 4294901760
    %4220 = vmatprep.subr.mxu0 %v4219
    %v4221 = vand.u32 %v171, 4294901760
    %4222 = vmatpush1.msra.mxu0 %v4221
    %v4223 = vand.u32 %v174, 4294901760
    %4224 = vmatprep.subr.mxu0 %v4223
    %v4225 = vand.u32 %v173, 4294901760
    %4226 = vmatpush1.msra.mxu0 %v4225
    %v4227 = vand.u32 %v176, 4294901760
    %4228 = vmatprep.subr.mxu0 %v4227
    %v4229 = vand.u32 %v175, 4294901760
    %4230 = vmatpush1.msra.mxu0 %v4229
    %v4231 = vand.u32 %v178, 4294901760
    %4232 = vmatprep.subr.mxu0 %v4231
    %v4233 = vand.u32 %v177, 4294901760
    %4234 = vmatpush1.msra.mxu0 %v4233
    %v4235 = vand.u32 %v180, 4294901760
    %4236 = vmatprep.subr.mxu0 %v4235
    %v4237 = vand.u32 %v179, 4294901760
    %4238 = vmatpush1.msra.mxu0 %v4237
    %v4239 = vand.u32 %v182, 4294901760
    %4240 = vmatprep.subr.mxu0 %v4239
    %v4241 = vand.u32 %v181, 4294901760
    %4242 = vmatpush1.msra.mxu0 %v4241
    %v4243 = vand.u32 %v184, 4294901760
    %4244 = vmatprep.subr.mxu0 %v4243
    %v4245 = vand.u32 %v183, 4294901760
    %4246 = vmatpush1.msra.mxu0 %v4245
    %v4247 = vand.u32 %v186, 4294901760
    %4248 = vmatprep.subr.mxu0 %v4247
    %v4249 = vand.u32 %v185, 4294901760
    %4250 = vmatpush1.msra.mxu0 %v4249
    %v4251 = vand.u32 %v188, 4294901760
    %4252 = vmatprep.subr.mxu0 %v4251
    %v4253 = vand.u32 %v187, 4294901760
    %4254 = vmatpush1.msra.mxu0 %v4253
    %v4255 = vand.u32 %v190, 4294901760
    %4256 = vmatprep.subr.mxu0 %v4255
    %v4257 = vand.u32 %v189, 4294901760
    %4258 = vmatpush1.msra.mxu0 %v4257
    %v4259 = vand.u32 %v192, 4294901760
    %4260 = vmatprep.subr.mxu0 %v4259
    %v4261 = vand.u32 %v191, 4294901760
    %4262 = vmatpush1.msra.mxu0 %v4261
    %v4263 = vand.u32 %v194, 4294901760
    %4264 = vmatprep.subr.mxu0 %v4263
    %v4265 = vand.u32 %v193, 4294901760
    %4266 = vmatpush1.msra.mxu0 %v4265
    %v4267 = vand.u32 %v196, 4294901760
    %4268 = vmatprep.subr.mxu0 %v4267
    %v4269 = vand.u32 %v195, 4294901760
    %4270 = vmatpush1.msra.mxu0 %v4269
    %v4271 = vand.u32 %v2858, 4294901760
    %v4272 = vsub.f32 %v2858, %v4271
    %v4273 = vand.u32 %v4272, 4294901760
    %v4274 = vsub.f32 %v4272, %v4273
    %v4275 = vand.u32 %v4274, 4294901760
    %4276 = vmatprep.mubr.f32.mxu0 %v4275
    %v4277 = vand.u32 %v2857, 4294901760
    %v4278 = vsub.f32 %v2857, %v4277
    %v4279 = vand.u32 %v4278, 4294901760
    %v4280 = vsub.f32 %v4278, %v4279
    %v4281 = vand.u32 %v4280, 4294901760
    %4282 = vmatmul.mubr.f32.gmra.mrb[0].mxu0 %v4281
    %v4283 = vpop.f32.mrb[0].mxu0
    %v4284 = vadd.f32 0.0, %v4283
    %v4285 = vpop.f32.mrb[0].mxu0
    %v4286 = vadd.f32 0.0, %v4285
    %4287 = vdwg.mxu0
    %v4288 = vand.u32 %v134, 4294901760
    %v4289 = vsub.f32 %v134, %v4288
    %v4290 = vand.u32 %v4289, 4294901760
    %v4291 = vsub.f32 %v4289, %v4290
    %v4292 = vand.u32 %v4291, 4294901760
    %4293 = vmatprep.subr.mxu0 %v4292
    %v4294 = vand.u32 %v133, 4294901760
    %v4295 = vsub.f32 %v133, %v4294
    %v4296 = vand.u32 %v4295, 4294901760
    %v4297 = vsub.f32 %v4295, %v4296
    %v4298 = vand.u32 %v4297, 4294901760
    %4299 = vmatpush1.msra.mxu0 %v4298
    %v4300 = vand.u32 %v136, 4294901760
    %v4301 = vsub.f32 %v136, %v4300
    %v4302 = vand.u32 %v4301, 4294901760
    %v4303 = vsub.f32 %v4301, %v4302
    %v4304 = vand.u32 %v4303, 4294901760
    %4305 = vmatprep.subr.mxu0 %v4304
    %v4306 = vand.u32 %v135, 4294901760
    %v4307 = vsub.f32 %v135, %v4306
    %v4308 = vand.u32 %v4307, 4294901760
    %v4309 = vsub.f32 %v4307, %v4308
    %v4310 = vand.u32 %v4309, 4294901760
    %4311 = vmatpush1.msra.mxu0 %v4310
    %v4312 = vand.u32 %v138, 4294901760
    %v4313 = vsub.f32 %v138, %v4312
    %v4314 = vand.u32 %v4313, 4294901760
    %v4315 = vsub.f32 %v4313, %v4314
    %v4316 = vand.u32 %v4315, 4294901760
    %4317 = vmatprep.subr.mxu0 %v4316
    %v4318 = vand.u32 %v137, 4294901760
    %v4319 = vsub.f32 %v137, %v4318
    %v4320 = vand.u32 %v4319, 4294901760
    %v4321 = vsub.f32 %v4319, %v4320
    %v4322 = vand.u32 %v4321, 4294901760
    %4323 = vmatpush1.msra.mxu0 %v4322
    %v4324 = vand.u32 %v140, 4294901760
    %v4325 = vsub.f32 %v140, %v4324
    %v4326 = vand.u32 %v4325, 4294901760
    %v4327 = vsub.f32 %v4325, %v4326
    %v4328 = vand.u32 %v4327, 4294901760
    %4329 = vmatprep.subr.mxu0 %v4328
    %v4330 = vand.u32 %v139, 4294901760
    %v4331 = vsub.f32 %v139, %v4330
    %v4332 = vand.u32 %v4331, 4294901760
    %v4333 = vsub.f32 %v4331, %v4332
    %v4334 = vand.u32 %v4333, 4294901760
    %4335 = vmatpush1.msra.mxu0 %v4334
    %v4336 = vand.u32 %v142, 4294901760
    %v4337 = vsub.f32 %v142, %v4336
    %v4338 = vand.u32 %v4337, 4294901760
    %v4339 = vsub.f32 %v4337, %v4338
    %v4340 = vand.u32 %v4339, 4294901760
    %4341 = vmatprep.subr.mxu0 %v4340
    %v4342 = vand.u32 %v141, 4294901760
    %v4343 = vsub.f32 %v141, %v4342
    %v4344 = vand.u32 %v4343, 4294901760
    %v4345 = vsub.f32 %v4343, %v4344
    %v4346 = vand.u32 %v4345, 4294901760
    %4347 = vmatpush1.msra.mxu0 %v4346
    %v4348 = vand.u32 %v144, 4294901760
    %v4349 = vsub.f32 %v144, %v4348
    %v4350 = vand.u32 %v4349, 4294901760
    %v4351 = vsub.f32 %v4349, %v4350
    %v4352 = vand.u32 %v4351, 4294901760
    %4353 = vmatprep.subr.mxu0 %v4352
    %v4354 = vand.u32 %v143, 4294901760
    %v4355 = vsub.f32 %v143, %v4354
    %v4356 = vand.u32 %v4355, 4294901760
    %v4357 = vsub.f32 %v4355, %v4356
    %v4358 = vand.u32 %v4357, 4294901760
    %4359 = vmatpush1.msra.mxu0 %v4358
    %v4360 = vand.u32 %v146, 4294901760
    %v4361 = vsub.f32 %v146, %v4360
    %v4362 = vand.u32 %v4361, 4294901760
    %v4363 = vsub.f32 %v4361, %v4362
    %v4364 = vand.u32 %v4363, 4294901760
    %4365 = vmatprep.subr.mxu0 %v4364
    %v4366 = vand.u32 %v145, 4294901760
    %v4367 = vsub.f32 %v145, %v4366
    %v4368 = vand.u32 %v4367, 4294901760
    %v4369 = vsub.f32 %v4367, %v4368
    %v4370 = vand.u32 %v4369, 4294901760
    %4371 = vmatpush1.msra.mxu0 %v4370
    %v4372 = vand.u32 %v148, 4294901760
    %v4373 = vsub.f32 %v148, %v4372
    %v4374 = vand.u32 %v4373, 4294901760
    %v4375 = vsub.f32 %v4373, %v4374
    %v4376 = vand.u32 %v4375, 4294901760
    %4377 = vmatprep.subr.mxu0 %v4376
    %v4378 = vand.u32 %v147, 4294901760
    %v4379 = vsub.f32 %v147, %v4378
    %v4380 = vand.u32 %v4379, 4294901760
    %v4381 = vsub.f32 %v4379, %v4380
    %v4382 = vand.u32 %v4381, 4294901760
    %4383 = vmatpush1.msra.mxu0 %v4382
    %v4384 = vand.u32 %v150, 4294901760
    %v4385 = vsub.f32 %v150, %v4384
    %v4386 = vand.u32 %v4385, 4294901760
    %v4387 = vsub.f32 %v4385, %v4386
    %v4388 = vand.u32 %v4387, 4294901760
    %4389 = vmatprep.subr.mxu0 %v4388
    %v4390 = vand.u32 %v149, 4294901760
    %v4391 = vsub.f32 %v149, %v4390
    %v4392 = vand.u32 %v4391, 4294901760
    %v4393 = vsub.f32 %v4391, %v4392
    %v4394 = vand.u32 %v4393, 4294901760
    %4395 = vmatpush1.msra.mxu0 %v4394
    %v4396 = vand.u32 %v152, 4294901760
    %v4397 = vsub.f32 %v152, %v4396
    %v4398 = vand.u32 %v4397, 4294901760
    %v4399 = vsub.f32 %v4397, %v4398
    %v4400 = vand.u32 %v4399, 4294901760
    %4401 = vmatprep.subr.mxu0 %v4400
    %v4402 = vand.u32 %v151, 4294901760
    %v4403 = vsub.f32 %v151, %v4402
    %v4404 = vand.u32 %v4403, 4294901760
    %v4405 = vsub.f32 %v4403, %v4404
    %v4406 = vand.u32 %v4405, 4294901760
    %4407 = vmatpush1.msra.mxu0 %v4406
    %v4408 = vand.u32 %v154, 4294901760
    %v4409 = vsub.f32 %v154, %v4408
    %v4410 = vand.u32 %v4409, 4294901760
    %v4411 = vsub.f32 %v4409, %v4410
    %v4412 = vand.u32 %v4411, 4294901760
    %4413 = vmatprep.subr.mxu0 %v4412
    %v4414 = vand.u32 %v153, 4294901760
    %v4415 = vsub.f32 %v153, %v4414
    %v4416 = vand.u32 %v4415, 4294901760
    %v4417 = vsub.f32 %v4415, %v4416
    %v4418 = vand.u32 %v4417, 4294901760
    %4419 = vmatpush1.msra.mxu0 %v4418
    %v4420 = vand.u32 %v156, 4294901760
    %v4421 = vsub.f32 %v156, %v4420
    %v4422 = vand.u32 %v4421, 4294901760
    %v4423 = vsub.f32 %v4421, %v4422
    %v4424 = vand.u32 %v4423, 4294901760
    %4425 = vmatprep.subr.mxu0 %v4424
    %v4426 = vand.u32 %v155, 4294901760
    %v4427 = vsub.f32 %v155, %v4426
    %v4428 = vand.u32 %v4427, 4294901760
    %v4429 = vsub.f32 %v4427, %v4428
    %v4430 = vand.u32 %v4429, 4294901760
    %4431 = vmatpush1.msra.mxu0 %v4430
    %v4432 = vand.u32 %v158, 4294901760
    %v4433 = vsub.f32 %v158, %v4432
    %v4434 = vand.u32 %v4433, 4294901760
    %v4435 = vsub.f32 %v4433, %v4434
    %v4436 = vand.u32 %v4435, 4294901760
    %4437 = vmatprep.subr.mxu0 %v4436
    %v4438 = vand.u32 %v157, 4294901760
    %v4439 = vsub.f32 %v157, %v4438
    %v4440 = vand.u32 %v4439, 4294901760
    %v4441 = vsub.f32 %v4439, %v4440
    %v4442 = vand.u32 %v4441, 4294901760
    %4443 = vmatpush1.msra.mxu0 %v4442
    %v4444 = vand.u32 %v160, 4294901760
    %v4445 = vsub.f32 %v160, %v4444
    %v4446 = vand.u32 %v4445, 4294901760
    %v4447 = vsub.f32 %v4445, %v4446
    %v4448 = vand.u32 %v4447, 4294901760
    %4449 = vmatprep.subr.mxu0 %v4448
    %v4450 = vand.u32 %v159, 4294901760
    %v4451 = vsub.f32 %v159, %v4450
    %v4452 = vand.u32 %v4451, 4294901760
    %v4453 = vsub.f32 %v4451, %v4452
    %v4454 = vand.u32 %v4453, 4294901760
    %4455 = vmatpush1.msra.mxu0 %v4454
    %v4456 = vand.u32 %v162, 4294901760
    %v4457 = vsub.f32 %v162, %v4456
    %v4458 = vand.u32 %v4457, 4294901760
    %v4459 = vsub.f32 %v4457, %v4458
    %v4460 = vand.u32 %v4459, 4294901760
    %4461 = vmatprep.subr.mxu0 %v4460
    %v4462 = vand.u32 %v161, 4294901760
    %v4463 = vsub.f32 %v161, %v4462
    %v4464 = vand.u32 %v4463, 4294901760
    %v4465 = vsub.f32 %v4463, %v4464
    %v4466 = vand.u32 %v4465, 4294901760
    %4467 = vmatpush1.msra.mxu0 %v4466
    %v4468 = vand.u32 %v164, 4294901760
    %v4469 = vsub.f32 %v164, %v4468
    %v4470 = vand.u32 %v4469, 4294901760
    %v4471 = vsub.f32 %v4469, %v4470
    %v4472 = vand.u32 %v4471, 4294901760
    %4473 = vmatprep.subr.mxu0 %v4472
    %v4474 = vand.u32 %v163, 4294901760
    %v4475 = vsub.f32 %v163, %v4474
    %v4476 = vand.u32 %v4475, 4294901760
    %v4477 = vsub.f32 %v4475, %v4476
    %v4478 = vand.u32 %v4477, 4294901760
    %4479 = vmatpush1.msra.mxu0 %v4478
    %v4480 = vand.u32 %v166, 4294901760
    %v4481 = vsub.f32 %v166, %v4480
    %v4482 = vand.u32 %v4481, 4294901760
    %v4483 = vsub.f32 %v4481, %v4482
    %v4484 = vand.u32 %v4483, 4294901760
    %4485 = vmatprep.subr.mxu0 %v4484
    %v4486 = vand.u32 %v165, 4294901760
    %v4487 = vsub.f32 %v165, %v4486
    %v4488 = vand.u32 %v4487, 4294901760
    %v4489 = vsub.f32 %v4487, %v4488
    %v4490 = vand.u32 %v4489, 4294901760
    %4491 = vmatpush1.msra.mxu0 %v4490
    %v4492 = vand.u32 %v168, 4294901760
    %v4493 = vsub.f32 %v168, %v4492
    %v4494 = vand.u32 %v4493, 4294901760
    %v4495 = vsub.f32 %v4493, %v4494
    %v4496 = vand.u32 %v4495, 4294901760
    %4497 = vmatprep.subr.mxu0 %v4496
    %v4498 = vand.u32 %v167, 4294901760
    %v4499 = vsub.f32 %v167, %v4498
    %v4500 = vand.u32 %v4499, 4294901760
    %v4501 = vsub.f32 %v4499, %v4500
    %v4502 = vand.u32 %v4501, 4294901760
    %4503 = vmatpush1.msra.mxu0 %v4502
    %v4504 = vand.u32 %v170, 4294901760
    %v4505 = vsub.f32 %v170, %v4504
    %v4506 = vand.u32 %v4505, 4294901760
    %v4507 = vsub.f32 %v4505, %v4506
    %v4508 = vand.u32 %v4507, 4294901760
    %4509 = vmatprep.subr.mxu0 %v4508
    %v4510 = vand.u32 %v169, 4294901760
    %v4511 = vsub.f32 %v169, %v4510
    %v4512 = vand.u32 %v4511, 4294901760
    %v4513 = vsub.f32 %v4511, %v4512
    %v4514 = vand.u32 %v4513, 4294901760
    %4515 = vmatpush1.msra.mxu0 %v4514
    %v4516 = vand.u32 %v172, 4294901760
    %v4517 = vsub.f32 %v172, %v4516
    %v4518 = vand.u32 %v4517, 4294901760
    %v4519 = vsub.f32 %v4517, %v4518
    %v4520 = vand.u32 %v4519, 4294901760
    %4521 = vmatprep.subr.mxu0 %v4520
    %v4522 = vand.u32 %v171, 4294901760
    %v4523 = vsub.f32 %v171, %v4522
    %v4524 = vand.u32 %v4523, 4294901760
    %v4525 = vsub.f32 %v4523, %v4524
    %v4526 = vand.u32 %v4525, 4294901760
    %4527 = vmatpush1.msra.mxu0 %v4526
    %v4528 = vand.u32 %v174, 4294901760
    %v4529 = vsub.f32 %v174, %v4528
    %v4530 = vand.u32 %v4529, 4294901760
    %v4531 = vsub.f32 %v4529, %v4530
    %v4532 = vand.u32 %v4531, 4294901760
    %4533 = vmatprep.subr.mxu0 %v4532
    %v4534 = vand.u32 %v173, 4294901760
    %v4535 = vsub.f32 %v173, %v4534
    %v4536 = vand.u32 %v4535, 4294901760
    %v4537 = vsub.f32 %v4535, %v4536
    %v4538 = vand.u32 %v4537, 4294901760
    %4539 = vmatpush1.msra.mxu0 %v4538
    %v4540 = vand.u32 %v176, 4294901760
    %v4541 = vsub.f32 %v176, %v4540
    %v4542 = vand.u32 %v4541, 4294901760
    %v4543 = vsub.f32 %v4541, %v4542
    %v4544 = vand.u32 %v4543, 4294901760
    %4545 = vmatprep.subr.mxu0 %v4544
    %v4546 = vand.u32 %v175, 4294901760
    %v4547 = vsub.f32 %v175, %v4546
    %v4548 = vand.u32 %v4547, 4294901760
    %v4549 = vsub.f32 %v4547, %v4548
    %v4550 = vand.u32 %v4549, 4294901760
    %4551 = vmatpush1.msra.mxu0 %v4550
    %v4552 = vand.u32 %v178, 4294901760
    %v4553 = vsub.f32 %v178, %v4552
    %v4554 = vand.u32 %v4553, 4294901760
    %v4555 = vsub.f32 %v4553, %v4554
    %v4556 = vand.u32 %v4555, 4294901760
    %4557 = vmatprep.subr.mxu0 %v4556
    %v4558 = vand.u32 %v177, 4294901760
    %v4559 = vsub.f32 %v177, %v4558
    %v4560 = vand.u32 %v4559, 4294901760
    %v4561 = vsub.f32 %v4559, %v4560
    %v4562 = vand.u32 %v4561, 4294901760
    %4563 = vmatpush1.msra.mxu0 %v4562
    %v4564 = vand.u32 %v180, 4294901760
    %v4565 = vsub.f32 %v180, %v4564
    %v4566 = vand.u32 %v4565, 4294901760
    %v4567 = vsub.f32 %v4565, %v4566
    %v4568 = vand.u32 %v4567, 4294901760
    %4569 = vmatprep.subr.mxu0 %v4568
    %v4570 = vand.u32 %v179, 4294901760
    %v4571 = vsub.f32 %v179, %v4570
    %v4572 = vand.u32 %v4571, 4294901760
    %v4573 = vsub.f32 %v4571, %v4572
    %v4574 = vand.u32 %v4573, 4294901760
    %4575 = vmatpush1.msra.mxu0 %v4574
    %v4576 = vand.u32 %v182, 4294901760
    %v4577 = vsub.f32 %v182, %v4576
    %v4578 = vand.u32 %v4577, 4294901760
    %v4579 = vsub.f32 %v4577, %v4578
    %v4580 = vand.u32 %v4579, 4294901760
    %4581 = vmatprep.subr.mxu0 %v4580
    %v4582 = vand.u32 %v181, 4294901760
    %v4583 = vsub.f32 %v181, %v4582
    %v4584 = vand.u32 %v4583, 4294901760
    %v4585 = vsub.f32 %v4583, %v4584
    %v4586 = vand.u32 %v4585, 4294901760
    %4587 = vmatpush1.msra.mxu0 %v4586
    %v4588 = vand.u32 %v184, 4294901760
    %v4589 = vsub.f32 %v184, %v4588
    %v4590 = vand.u32 %v4589, 4294901760
    %v4591 = vsub.f32 %v4589, %v4590
    %v4592 = vand.u32 %v4591, 4294901760
    %4593 = vmatprep.subr.mxu0 %v4592
    %v4594 = vand.u32 %v183, 4294901760
    %v4595 = vsub.f32 %v183, %v4594
    %v4596 = vand.u32 %v4595, 4294901760
    %v4597 = vsub.f32 %v4595, %v4596
    %v4598 = vand.u32 %v4597, 4294901760
    %4599 = vmatpush1.msra.mxu0 %v4598
    %v4600 = vand.u32 %v186, 4294901760
    %v4601 = vsub.f32 %v186, %v4600
    %v4602 = vand.u32 %v4601, 4294901760
    %v4603 = vsub.f32 %v4601, %v4602
    %v4604 = vand.u32 %v4603, 4294901760
    %4605 = vmatprep.subr.mxu0 %v4604
    %v4606 = vand.u32 %v185, 4294901760
    %v4607 = vsub.f32 %v185, %v4606
    %v4608 = vand.u32 %v4607, 4294901760
    %v4609 = vsub.f32 %v4607, %v4608
    %v4610 = vand.u32 %v4609, 4294901760
    %4611 = vmatpush1.msra.mxu0 %v4610
    %v4612 = vand.u32 %v188, 4294901760
    %v4613 = vsub.f32 %v188, %v4612
    %v4614 = vand.u32 %v4613, 4294901760
    %v4615 = vsub.f32 %v4613, %v4614
    %v4616 = vand.u32 %v4615, 4294901760
    %4617 = vmatprep.subr.mxu0 %v4616
    %v4618 = vand.u32 %v187, 4294901760
    %v4619 = vsub.f32 %v187, %v4618
    %v4620 = vand.u32 %v4619, 4294901760
    %v4621 = vsub.f32 %v4619, %v4620
    %v4622 = vand.u32 %v4621, 4294901760
    %4623 = vmatpush1.msra.mxu0 %v4622
    %v4624 = vand.u32 %v190, 4294901760
    %v4625 = vsub.f32 %v190, %v4624
    %v4626 = vand.u32 %v4625, 4294901760
    %v4627 = vsub.f32 %v4625, %v4626
    %v4628 = vand.u32 %v4627, 4294901760
    %4629 = vmatprep.subr.mxu0 %v4628
    %v4630 = vand.u32 %v189, 4294901760
    %v4631 = vsub.f32 %v189, %v4630
    %v4632 = vand.u32 %v4631, 4294901760
    %v4633 = vsub.f32 %v4631, %v4632
    %v4634 = vand.u32 %v4633, 4294901760
    %4635 = vmatpush1.msra.mxu0 %v4634
    %v4636 = vand.u32 %v192, 4294901760
    %v4637 = vsub.f32 %v192, %v4636
    %v4638 = vand.u32 %v4637, 4294901760
    %v4639 = vsub.f32 %v4637, %v4638
    %v4640 = vand.u32 %v4639, 4294901760
    %4641 = vmatprep.subr.mxu0 %v4640
    %v4642 = vand.u32 %v191, 4294901760
    %v4643 = vsub.f32 %v191, %v4642
    %v4644 = vand.u32 %v4643, 4294901760
    %v4645 = vsub.f32 %v4643, %v4644
    %v4646 = vand.u32 %v4645, 4294901760
    %4647 = vmatpush1.msra.mxu0 %v4646
    %v4648 = vand.u32 %v194, 4294901760
    %v4649 = vsub.f32 %v194, %v4648
    %v4650 = vand.u32 %v4649, 4294901760
    %v4651 = vsub.f32 %v4649, %v4650
    %v4652 = vand.u32 %v4651, 4294901760
    %4653 = vmatprep.subr.mxu0 %v4652
    %v4654 = vand.u32 %v193, 4294901760
    %v4655 = vsub.f32 %v193, %v4654
    %v4656 = vand.u32 %v4655, 4294901760
    %v4657 = vsub.f32 %v4655, %v4656
    %v4658 = vand.u32 %v4657, 4294901760
    %4659 = vmatpush1.msra.mxu0 %v4658
    %v4660 = vand.u32 %v196, 4294901760
    %v4661 = vsub.f32 %v196, %v4660
    %v4662 = vand.u32 %v4661, 4294901760
    %v4663 = vsub.f32 %v4661, %v4662
    %v4664 = vand.u32 %v4663, 4294901760
    %4665 = vmatprep.subr.mxu0 %v4664
    %v4666 = vand.u32 %v195, 4294901760
    %v4667 = vsub.f32 %v195, %v4666
    %v4668 = vand.u32 %v4667, 4294901760
    %v4669 = vsub.f32 %v4667, %v4668
    %v4670 = vand.u32 %v4669, 4294901760
    %4671 = vmatpush1.msra.mxu0 %v4670
    %v4672 = vand.u32 %v2858, 4294901760
    %4673 = vmatprep.mubr.f32.mxu0 %v4672
    %v4674 = vand.u32 %v2857, 4294901760
    %4675 = vmatmul.mubr.f32.gmra.mrb[0].mxu0 %v4674
    %v4676 = vpop.f32.mrb[0].mxu0
    %v4677 = vadd.f32 %v4284, %v4676
    %v4678 = vpop.f32.mrb[0].mxu0
    %v4679 = vadd.f32 %v4286, %v4678
    %4680 = vdwg.mxu0
    %v4681 = vand.u32 %v134, 4294901760
    %v4682 = vsub.f32 %v134, %v4681
    %4683 = vmatprep.subr.mxu0 %v4682
    %v4684 = vand.u32 %v133, 4294901760
    %v4685 = vsub.f32 %v133, %v4684
    %4686 = vmatpush1.msra.mxu0 %v4685
    %v4687 = vand.u32 %v136, 4294901760
    %v4688 = vsub.f32 %v136, %v4687
    %4689 = vmatprep.subr.mxu0 %v4688
    %v4690 = vand.u32 %v135, 4294901760
    %v4691 = vsub.f32 %v135, %v4690
    %4692 = vmatpush1.msra.mxu0 %v4691
    %v4693 = vand.u32 %v138, 4294901760
    %v4694 = vsub.f32 %v138, %v4693
    %4695 = vmatprep.subr.mxu0 %v4694
    %v4696 = vand.u32 %v137, 4294901760
    %v4697 = vsub.f32 %v137, %v4696
    %4698 = vmatpush1.msra.mxu0 %v4697
    %v4699 = vand.u32 %v140, 4294901760
    %v4700 = vsub.f32 %v140, %v4699
    %4701 = vmatprep.subr.mxu0 %v4700
    %v4702 = vand.u32 %v139, 4294901760
    %v4703 = vsub.f32 %v139, %v4702
    %4704 = vmatpush1.msra.mxu0 %v4703
    %v4705 = vand.u32 %v142, 4294901760
    %v4706 = vsub.f32 %v142, %v4705
    %4707 = vmatprep.subr.mxu0 %v4706
    %v4708 = vand.u32 %v141, 4294901760
    %v4709 = vsub.f32 %v141, %v4708
    %4710 = vmatpush1.msra.mxu0 %v4709
    %v4711 = vand.u32 %v144, 4294901760
    %v4712 = vsub.f32 %v144, %v4711
    %4713 = vmatprep.subr.mxu0 %v4712
    %v4714 = vand.u32 %v143, 4294901760
    %v4715 = vsub.f32 %v143, %v4714
    %4716 = vmatpush1.msra.mxu0 %v4715
    %v4717 = vand.u32 %v146, 4294901760
    %v4718 = vsub.f32 %v146, %v4717
    %4719 = vmatprep.subr.mxu0 %v4718
    %v4720 = vand.u32 %v145, 4294901760
    %v4721 = vsub.f32 %v145, %v4720
    %4722 = vmatpush1.msra.mxu0 %v4721
    %v4723 = vand.u32 %v148, 4294901760
    %v4724 = vsub.f32 %v148, %v4723
    %4725 = vmatprep.subr.mxu0 %v4724
    %v4726 = vand.u32 %v147, 4294901760
    %v4727 = vsub.f32 %v147, %v4726
    %4728 = vmatpush1.msra.mxu0 %v4727
    %v4729 = vand.u32 %v150, 4294901760
    %v4730 = vsub.f32 %v150, %v4729
    %4731 = vmatprep.subr.mxu0 %v4730
    %v4732 = vand.u32 %v149, 4294901760
    %v4733 = vsub.f32 %v149, %v4732
    %4734 = vmatpush1.msra.mxu0 %v4733
    %v4735 = vand.u32 %v152, 4294901760
    %v4736 = vsub.f32 %v152, %v4735
    %4737 = vmatprep.subr.mxu0 %v4736
    %v4738 = vand.u32 %v151, 4294901760
    %v4739 = vsub.f32 %v151, %v4738
    %4740 = vmatpush1.msra.mxu0 %v4739
    %v4741 = vand.u32 %v154, 4294901760
    %v4742 = vsub.f32 %v154, %v4741
    %4743 = vmatprep.subr.mxu0 %v4742
    %v4744 = vand.u32 %v153, 4294901760
    %v4745 = vsub.f32 %v153, %v4744
    %4746 = vmatpush1.msra.mxu0 %v4745
    %v4747 = vand.u32 %v156, 4294901760
    %v4748 = vsub.f32 %v156, %v4747
    %4749 = vmatprep.subr.mxu0 %v4748
    %v4750 = vand.u32 %v155, 4294901760
    %v4751 = vsub.f32 %v155, %v4750
    %4752 = vmatpush1.msra.mxu0 %v4751
    %v4753 = vand.u32 %v158, 4294901760
    %v4754 = vsub.f32 %v158, %v4753
    %4755 = vmatprep.subr.mxu0 %v4754
    %v4756 = vand.u32 %v157, 4294901760
    %v4757 = vsub.f32 %v157, %v4756
    %4758 = vmatpush1.msra.mxu0 %v4757
    %v4759 = vand.u32 %v160, 4294901760
    %v4760 = vsub.f32 %v160, %v4759
    %4761 = vmatprep.subr.mxu0 %v4760
    %v4762 = vand.u32 %v159, 4294901760
    %v4763 = vsub.f32 %v159, %v4762
    %4764 = vmatpush1.msra.mxu0 %v4763
    %v4765 = vand.u32 %v162, 4294901760
    %v4766 = vsub.f32 %v162, %v4765
    %4767 = vmatprep.subr.mxu0 %v4766
    %v4768 = vand.u32 %v161, 4294901760
    %v4769 = vsub.f32 %v161, %v4768
    %4770 = vmatpush1.msra.mxu0 %v4769
    %v4771 = vand.u32 %v164, 4294901760
    %v4772 = vsub.f32 %v164, %v4771
    %4773 = vmatprep.subr.mxu0 %v4772
    %v4774 = vand.u32 %v163, 4294901760
    %v4775 = vsub.f32 %v163, %v4774
    %4776 = vmatpush1.msra.mxu0 %v4775
    %v4777 = vand.u32 %v166, 4294901760
    %v4778 = vsub.f32 %v166, %v4777
    %4779 = vmatprep.subr.mxu0 %v4778
    %v4780 = vand.u32 %v165, 4294901760
    %v4781 = vsub.f32 %v165, %v4780
    %4782 = vmatpush1.msra.mxu0 %v4781
    %v4783 = vand.u32 %v168, 4294901760
    %v4784 = vsub.f32 %v168, %v4783
    %4785 = vmatprep.subr.mxu0 %v4784
    %v4786 = vand.u32 %v167, 4294901760
    %v4787 = vsub.f32 %v167, %v4786
    %4788 = vmatpush1.msra.mxu0 %v4787
    %v4789 = vand.u32 %v170, 4294901760
    %v4790 = vsub.f32 %v170, %v4789
    %4791 = vmatprep.subr.mxu0 %v4790
    %v4792 = vand.u32 %v169, 4294901760
    %v4793 = vsub.f32 %v169, %v4792
    %4794 = vmatpush1.msra.mxu0 %v4793
    %v4795 = vand.u32 %v172, 4294901760
    %v4796 = vsub.f32 %v172, %v4795
    %4797 = vmatprep.subr.mxu0 %v4796
    %v4798 = vand.u32 %v171, 4294901760
    %v4799 = vsub.f32 %v171, %v4798
    %4800 = vmatpush1.msra.mxu0 %v4799
    %v4801 = vand.u32 %v174, 4294901760
    %v4802 = vsub.f32 %v174, %v4801
    %4803 = vmatprep.subr.mxu0 %v4802
    %v4804 = vand.u32 %v173, 4294901760
    %v4805 = vsub.f32 %v173, %v4804
    %4806 = vmatpush1.msra.mxu0 %v4805
    %v4807 = vand.u32 %v176, 4294901760
    %v4808 = vsub.f32 %v176, %v4807
    %4809 = vmatprep.subr.mxu0 %v4808
    %v4810 = vand.u32 %v175, 4294901760
    %v4811 = vsub.f32 %v175, %v4810
    %4812 = vmatpush1.msra.mxu0 %v4811
    %v4813 = vand.u32 %v178, 4294901760
    %v4814 = vsub.f32 %v178, %v4813
    %4815 = vmatprep.subr.mxu0 %v4814
    %v4816 = vand.u32 %v177, 4294901760
    %v4817 = vsub.f32 %v177, %v4816
    %4818 = vmatpush1.msra.mxu0 %v4817
    %v4819 = vand.u32 %v180, 4294901760
    %v4820 = vsub.f32 %v180, %v4819
    %4821 = vmatprep.subr.mxu0 %v4820
    %v4822 = vand.u32 %v179, 4294901760
    %v4823 = vsub.f32 %v179, %v4822
    %4824 = vmatpush1.msra.mxu0 %v4823
    %v4825 = vand.u32 %v182, 4294901760
    %v4826 = vsub.f32 %v182, %v4825
    %4827 = vmatprep.subr.mxu0 %v4826
    %v4828 = vand.u32 %v181, 4294901760
    %v4829 = vsub.f32 %v181, %v4828
    %4830 = vmatpush1.msra.mxu0 %v4829
    %v4831 = vand.u32 %v184, 4294901760
    %v4832 = vsub.f32 %v184, %v4831
    %4833 = vmatprep.subr.mxu0 %v4832
    %v4834 = vand.u32 %v183, 4294901760
    %v4835 = vsub.f32 %v183, %v4834
    %4836 = vmatpush1.msra.mxu0 %v4835
    %v4837 = vand.u32 %v186, 4294901760
    %v4838 = vsub.f32 %v186, %v4837
    %4839 = vmatprep.subr.mxu0 %v4838
    %v4840 = vand.u32 %v185, 4294901760
    %v4841 = vsub.f32 %v185, %v4840
    %4842 = vmatpush1.msra.mxu0 %v4841
    %v4843 = vand.u32 %v188, 4294901760
    %v4844 = vsub.f32 %v188, %v4843
    %4845 = vmatprep.subr.mxu0 %v4844
    %v4846 = vand.u32 %v187, 4294901760
    %v4847 = vsub.f32 %v187, %v4846
    %4848 = vmatpush1.msra.mxu0 %v4847
    %v4849 = vand.u32 %v190, 4294901760
    %v4850 = vsub.f32 %v190, %v4849
    %4851 = vmatprep.subr.mxu0 %v4850
    %v4852 = vand.u32 %v189, 4294901760
    %v4853 = vsub.f32 %v189, %v4852
    %4854 = vmatpush1.msra.mxu0 %v4853
    %v4855 = vand.u32 %v192, 4294901760
    %v4856 = vsub.f32 %v192, %v4855
    %4857 = vmatprep.subr.mxu0 %v4856
    %v4858 = vand.u32 %v191, 4294901760
    %v4859 = vsub.f32 %v191, %v4858
    %4860 = vmatpush1.msra.mxu0 %v4859
    %v4861 = vand.u32 %v194, 4294901760
    %v4862 = vsub.f32 %v194, %v4861
    %4863 = vmatprep.subr.mxu0 %v4862
    %v4864 = vand.u32 %v193, 4294901760
    %v4865 = vsub.f32 %v193, %v4864
    %4866 = vmatpush1.msra.mxu0 %v4865
    %v4867 = vand.u32 %v196, 4294901760
    %v4868 = vsub.f32 %v196, %v4867
    %4869 = vmatprep.subr.mxu0 %v4868
    %v4870 = vand.u32 %v195, 4294901760
    %v4871 = vsub.f32 %v195, %v4870
    %4872 = vmatpush1.msra.mxu0 %v4871
    %v4873 = vand.u32 %v2858, 4294901760
    %v4874 = vsub.f32 %v2858, %v4873
    %4875 = vmatprep.mubr.f32.mxu0 %v4874
    %v4876 = vand.u32 %v2857, 4294901760
    %v4877 = vsub.f32 %v2857, %v4876
    %4878 = vmatmul.mubr.f32.gmra.mrb[0].mxu0 %v4877
    %v4879 = vpop.f32.mrb[0].mxu0
    %v4880 = vadd.f32 %v4677, %v4879
    %v4881 = vpop.f32.mrb[0].mxu0
    %v4882 = vadd.f32 %v4679, %v4881
    %4883 = vdwg.mxu0
    %v4884 = vand.u32 %v134, 4294901760
    %4885 = vmatprep.subr.mxu0 %v4884
    %v4886 = vand.u32 %v133, 4294901760
    %4887 = vmatpush1.msra.mxu0 %v4886
    %v4888 = vand.u32 %v136, 4294901760
    %4889 = vmatprep.subr.mxu0 %v4888
    %v4890 = vand.u32 %v135, 4294901760
    %4891 = vmatpush1.msra.mxu0 %v4890
    %v4892 = vand.u32 %v138, 4294901760
    %4893 = vmatprep.subr.mxu0 %v4892
    %v4894 = vand.u32 %v137, 4294901760
    %4895 = vmatpush1.msra.mxu0 %v4894
    %v4896 = vand.u32 %v140, 4294901760
    %4897 = vmatprep.subr.mxu0 %v4896
    %v4898 = vand.u32 %v139, 4294901760
    %4899 = vmatpush1.msra.mxu0 %v4898
    %v4900 = vand.u32 %v142, 4294901760
    %4901 = vmatprep.subr.mxu0 %v4900
    %v4902 = vand.u32 %v141, 4294901760
    %4903 = vmatpush1.msra.mxu0 %v4902
    %v4904 = vand.u32 %v144, 4294901760
    %4905 = vmatprep.subr.mxu0 %v4904
    %v4906 = vand.u32 %v143, 4294901760
    %4907 = vmatpush1.msra.mxu0 %v4906
    %v4908 = vand.u32 %v146, 4294901760
    %4909 = vmatprep.subr.mxu0 %v4908
    %v4910 = vand.u32 %v145, 4294901760
    %4911 = vmatpush1.msra.mxu0 %v4910
    %v4912 = vand.u32 %v148, 4294901760
    %4913 = vmatprep.subr.mxu0 %v4912
    %v4914 = vand.u32 %v147, 4294901760
    %4915 = vmatpush1.msra.mxu0 %v4914
    %v4916 = vand.u32 %v150, 4294901760
    %4917 = vmatprep.subr.mxu0 %v4916
    %v4918 = vand.u32 %v149, 4294901760
    %4919 = vmatpush1.msra.mxu0 %v4918
    %v4920 = vand.u32 %v152, 4294901760
    %4921 = vmatprep.subr.mxu0 %v4920
    %v4922 = vand.u32 %v151, 4294901760
    %4923 = vmatpush1.msra.mxu0 %v4922
    %v4924 = vand.u32 %v154, 4294901760
    %4925 = vmatprep.subr.mxu0 %v4924
    %v4926 = vand.u32 %v153, 4294901760
    %4927 = vmatpush1.msra.mxu0 %v4926
    %v4928 = vand.u32 %v156, 4294901760
    %4929 = vmatprep.subr.mxu0 %v4928
    %v4930 = vand.u32 %v155, 4294901760
    %4931 = vmatpush1.msra.mxu0 %v4930
    %v4932 = vand.u32 %v158, 4294901760
    %4933 = vmatprep.subr.mxu0 %v4932
    %v4934 = vand.u32 %v157, 4294901760
    %4935 = vmatpush1.msra.mxu0 %v4934
    %v4936 = vand.u32 %v160, 4294901760
    %4937 = vmatprep.subr.mxu0 %v4936
    %v4938 = vand.u32 %v159, 4294901760
    %4939 = vmatpush1.msra.mxu0 %v4938
    %v4940 = vand.u32 %v162, 4294901760
    %4941 = vmatprep.subr.mxu0 %v4940
    %v4942 = vand.u32 %v161, 4294901760
    %4943 = vmatpush1.msra.mxu0 %v4942
    %v4944 = vand.u32 %v164, 4294901760
    %4945 = vmatprep.subr.mxu0 %v4944
    %v4946 = vand.u32 %v163, 4294901760
    %4947 = vmatpush1.msra.mxu0 %v4946
    %v4948 = vand.u32 %v166, 4294901760
    %4949 = vmatprep.subr.mxu0 %v4948
    %v4950 = vand.u32 %v165, 4294901760
    %4951 = vmatpush1.msra.mxu0 %v4950
    %v4952 = vand.u32 %v168, 4294901760
    %4953 = vmatprep.subr.mxu0 %v4952
    %v4954 = vand.u32 %v167, 4294901760
    %4955 = vmatpush1.msra.mxu0 %v4954
    %v4956 = vand.u32 %v170, 4294901760
    %4957 = vmatprep.subr.mxu0 %v4956
    %v4958 = vand.u32 %v169, 4294901760
    %4959 = vmatpush1.msra.mxu0 %v4958
    %v4960 = vand.u32 %v172, 4294901760
    %4961 = vmatprep.subr.mxu0 %v4960
    %v4962 = vand.u32 %v171, 4294901760
    %4963 = vmatpush1.msra.mxu0 %v4962
    %v4964 = vand.u32 %v174, 4294901760
    %4965 = vmatprep.subr.mxu0 %v4964
    %v4966 = vand.u32 %v173, 4294901760
    %4967 = vmatpush1.msra.mxu0 %v4966
    %v4968 = vand.u32 %v176, 4294901760
    %4969 = vmatprep.subr.mxu0 %v4968
    %v4970 = vand.u32 %v175, 4294901760
    %4971 = vmatpush1.msra.mxu0 %v4970
    %v4972 = vand.u32 %v178, 4294901760
    %4973 = vmatprep.subr.mxu0 %v4972
    %v4974 = vand.u32 %v177, 4294901760
    %4975 = vmatpush1.msra.mxu0 %v4974
    %v4976 = vand.u32 %v180, 4294901760
    %4977 = vmatprep.subr.mxu0 %v4976
    %v4978 = vand.u32 %v179, 4294901760
    %4979 = vmatpush1.msra.mxu0 %v4978
    %v4980 = vand.u32 %v182, 4294901760
    %4981 = vmatprep.subr.mxu0 %v4980
    %v4982 = vand.u32 %v181, 4294901760
    %4983 = vmatpush1.msra.mxu0 %v4982
    %v4984 = vand.u32 %v184, 4294901760
    %4985 = vmatprep.subr.mxu0 %v4984
    %v4986 = vand.u32 %v183, 4294901760
    %4987 = vmatpush1.msra.mxu0 %v4986
    %v4988 = vand.u32 %v186, 4294901760
    %4989 = vmatprep.subr.mxu0 %v4988
    %v4990 = vand.u32 %v185, 4294901760
    %4991 = vmatpush1.msra.mxu0 %v4990
    %v4992 = vand.u32 %v188, 4294901760
    %4993 = vmatprep.subr.mxu0 %v4992
    %v4994 = vand.u32 %v187, 4294901760
    %4995 = vmatpush1.msra.mxu0 %v4994
    %v4996 = vand.u32 %v190, 4294901760
    %4997 = vmatprep.subr.mxu0 %v4996
    %v4998 = vand.u32 %v189, 4294901760
    %4999 = vmatpush1.msra.mxu0 %v4998
    %v5000 = vand.u32 %v192, 4294901760
    %5001 = vmatprep.subr.mxu0 %v5000
    %v5002 = vand.u32 %v191, 4294901760
    %5003 = vmatpush1.msra.mxu0 %v5002
    %v5004 = vand.u32 %v194, 4294901760
    %5005 = vmatprep.subr.mxu0 %v5004
    %v5006 = vand.u32 %v193, 4294901760
    %5007 = vmatpush1.msra.mxu0 %v5006
    %v5008 = vand.u32 %v196, 4294901760
    %5009 = vmatprep.subr.mxu0 %v5008
    %v5010 = vand.u32 %v195, 4294901760
    %5011 = vmatpush1.msra.mxu0 %v5010
    %v5012 = vand.u32 %v2858, 4294901760
    %v5013 = vsub.f32 %v2858, %v5012
    %v5014 = vand.u32 %v5013, 4294901760
    %5015 = vmatprep.mubr.f32.mxu0 %v5014
    %v5016 = vand.u32 %v2857, 4294901760
    %v5017 = vsub.f32 %v2857, %v5016
    %v5018 = vand.u32 %v5017, 4294901760
    %5019 = vmatmul.mubr.f32.gmra.mrb[0].mxu0 %v5018
    %v5020 = vpop.f32.mrb[0].mxu0
    %v5021 = vadd.f32 %v4880, %v5020
    %v5022 = vpop.f32.mrb[0].mxu0
    %v5023 = vadd.f32 %v4882, %v5022
    %5024 = vdwg.mxu0
    %v5025 = vand.u32 %v134, 4294901760
    %v5026 = vsub.f32 %v134, %v5025
    %v5027 = vand.u32 %v5026, 4294901760
    %5028 = vmatprep.subr.mxu0 %v5027
    %v5029 = vand.u32 %v133, 4294901760
    %v5030 = vsub.f32 %v133, %v5029
    %v5031 = vand.u32 %v5030, 4294901760
    %5032 = vmatpush1.msra.mxu0 %v5031
    %v5033 = vand.u32 %v136, 4294901760
    %v5034 = vsub.f32 %v136, %v5033
    %v5035 = vand.u32 %v5034, 4294901760
    %5036 = vmatprep.subr.mxu0 %v5035
    %v5037 = vand.u32 %v135, 4294901760
    %v5038 = vsub.f32 %v135, %v5037
    %v5039 = vand.u32 %v5038, 4294901760
    %5040 = vmatpush1.msra.mxu0 %v5039
    %v5041 = vand.u32 %v138, 4294901760
    %v5042 = vsub.f32 %v138, %v5041
    %v5043 = vand.u32 %v5042, 4294901760
    %5044 = vmatprep.subr.mxu0 %v5043
    %v5045 = vand.u32 %v137, 4294901760
    %v5046 = vsub.f32 %v137, %v5045
    %v5047 = vand.u32 %v5046, 4294901760
    %5048 = vmatpush1.msra.mxu0 %v5047
    %v5049 = vand.u32 %v140, 4294901760
    %v5050 = vsub.f32 %v140, %v5049
    %v5051 = vand.u32 %v5050, 4294901760
    %5052 = vmatprep.subr.mxu0 %v5051
    %v5053 = vand.u32 %v139, 4294901760
    %v5054 = vsub.f32 %v139, %v5053
    %v5055 = vand.u32 %v5054, 4294901760
    %5056 = vmatpush1.msra.mxu0 %v5055
    %v5057 = vand.u32 %v142, 4294901760
    %v5058 = vsub.f32 %v142, %v5057
    %v5059 = vand.u32 %v5058, 4294901760
    %5060 = vmatprep.subr.mxu0 %v5059
    %v5061 = vand.u32 %v141, 4294901760
    %v5062 = vsub.f32 %v141, %v5061
    %v5063 = vand.u32 %v5062, 4294901760
    %5064 = vmatpush1.msra.mxu0 %v5063
    %v5065 = vand.u32 %v144, 4294901760
    %v5066 = vsub.f32 %v144, %v5065
    %v5067 = vand.u32 %v5066, 4294901760
    %5068 = vmatprep.subr.mxu0 %v5067
    %v5069 = vand.u32 %v143, 4294901760
    %v5070 = vsub.f32 %v143, %v5069
    %v5071 = vand.u32 %v5070, 4294901760
    %5072 = vmatpush1.msra.mxu0 %v5071
    %v5073 = vand.u32 %v146, 4294901760
    %v5074 = vsub.f32 %v146, %v5073
    %v5075 = vand.u32 %v5074, 4294901760
    %5076 = vmatprep.subr.mxu0 %v5075
    %v5077 = vand.u32 %v145, 4294901760
    %v5078 = vsub.f32 %v145, %v5077
    %v5079 = vand.u32 %v5078, 4294901760
    %5080 = vmatpush1.msra.mxu0 %v5079
    %v5081 = vand.u32 %v148, 4294901760
    %v5082 = vsub.f32 %v148, %v5081
    %v5083 = vand.u32 %v5082, 4294901760
    %5084 = vmatprep.subr.mxu0 %v5083
    %v5085 = vand.u32 %v147, 4294901760
    %v5086 = vsub.f32 %v147, %v5085
    %v5087 = vand.u32 %v5086, 4294901760
    %5088 = vmatpush1.msra.mxu0 %v5087
    %v5089 = vand.u32 %v150, 4294901760
    %v5090 = vsub.f32 %v150, %v5089
    %v5091 = vand.u32 %v5090, 4294901760
    %5092 = vmatprep.subr.mxu0 %v5091
    %v5093 = vand.u32 %v149, 4294901760
    %v5094 = vsub.f32 %v149, %v5093
    %v5095 = vand.u32 %v5094, 4294901760
    %5096 = vmatpush1.msra.mxu0 %v5095
    %v5097 = vand.u32 %v152, 4294901760
    %v5098 = vsub.f32 %v152, %v5097
    %v5099 = vand.u32 %v5098, 4294901760
    %5100 = vmatprep.subr.mxu0 %v5099
    %v5101 = vand.u32 %v151, 4294901760
    %v5102 = vsub.f32 %v151, %v5101
    %v5103 = vand.u32 %v5102, 4294901760
    %5104 = vmatpush1.msra.mxu0 %v5103
    %v5105 = vand.u32 %v154, 4294901760
    %v5106 = vsub.f32 %v154, %v5105
    %v5107 = vand.u32 %v5106, 4294901760
    %5108 = vmatprep.subr.mxu0 %v5107
    %v5109 = vand.u32 %v153, 4294901760
    %v5110 = vsub.f32 %v153, %v5109
    %v5111 = vand.u32 %v5110, 4294901760
    %5112 = vmatpush1.msra.mxu0 %v5111
    %v5113 = vand.u32 %v156, 4294901760
    %v5114 = vsub.f32 %v156, %v5113
    %v5115 = vand.u32 %v5114, 4294901760
    %5116 = vmatprep.subr.mxu0 %v5115
    %v5117 = vand.u32 %v155, 4294901760
    %v5118 = vsub.f32 %v155, %v5117
    %v5119 = vand.u32 %v5118, 4294901760
    %5120 = vmatpush1.msra.mxu0 %v5119
    %v5121 = vand.u32 %v158, 4294901760
    %v5122 = vsub.f32 %v158, %v5121
    %v5123 = vand.u32 %v5122, 4294901760
    %5124 = vmatprep.subr.mxu0 %v5123
    %v5125 = vand.u32 %v157, 4294901760
    %v5126 = vsub.f32 %v157, %v5125
    %v5127 = vand.u32 %v5126, 4294901760
    %5128 = vmatpush1.msra.mxu0 %v5127
    %v5129 = vand.u32 %v160, 4294901760
    %v5130 = vsub.f32 %v160, %v5129
    %v5131 = vand.u32 %v5130, 4294901760
    %5132 = vmatprep.subr.mxu0 %v5131
    %v5133 = vand.u32 %v159, 4294901760
    %v5134 = vsub.f32 %v159, %v5133
    %v5135 = vand.u32 %v5134, 4294901760
    %5136 = vmatpush1.msra.mxu0 %v5135
    %v5137 = vand.u32 %v162, 4294901760
    %v5138 = vsub.f32 %v162, %v5137
    %v5139 = vand.u32 %v5138, 4294901760
    %5140 = vmatprep.subr.mxu0 %v5139
    %v5141 = vand.u32 %v161, 4294901760
    %v5142 = vsub.f32 %v161, %v5141
    %v5143 = vand.u32 %v5142, 4294901760
    %5144 = vmatpush1.msra.mxu0 %v5143
    %v5145 = vand.u32 %v164, 4294901760
    %v5146 = vsub.f32 %v164, %v5145
    %v5147 = vand.u32 %v5146, 4294901760
    %5148 = vmatprep.subr.mxu0 %v5147
    %v5149 = vand.u32 %v163, 4294901760
    %v5150 = vsub.f32 %v163, %v5149
    %v5151 = vand.u32 %v5150, 4294901760
    %5152 = vmatpush1.msra.mxu0 %v5151
    %v5153 = vand.u32 %v166, 4294901760
    %v5154 = vsub.f32 %v166, %v5153
    %v5155 = vand.u32 %v5154, 4294901760
    %5156 = vmatprep.subr.mxu0 %v5155
    %v5157 = vand.u32 %v165, 4294901760
    %v5158 = vsub.f32 %v165, %v5157
    %v5159 = vand.u32 %v5158, 4294901760
    %5160 = vmatpush1.msra.mxu0 %v5159
    %v5161 = vand.u32 %v168, 4294901760
    %v5162 = vsub.f32 %v168, %v5161
    %v5163 = vand.u32 %v5162, 4294901760
    %5164 = vmatprep.subr.mxu0 %v5163
    %v5165 = vand.u32 %v167, 4294901760
    %v5166 = vsub.f32 %v167, %v5165
    %v5167 = vand.u32 %v5166, 4294901760
    %5168 = vmatpush1.msra.mxu0 %v5167
    %v5169 = vand.u32 %v170, 4294901760
    %v5170 = vsub.f32 %v170, %v5169
    %v5171 = vand.u32 %v5170, 4294901760
    %5172 = vmatprep.subr.mxu0 %v5171
    %v5173 = vand.u32 %v169, 4294901760
    %v5174 = vsub.f32 %v169, %v5173
    %v5175 = vand.u32 %v5174, 4294901760
    %5176 = vmatpush1.msra.mxu0 %v5175
    %v5177 = vand.u32 %v172, 4294901760
    %v5178 = vsub.f32 %v172, %v5177
    %v5179 = vand.u32 %v5178, 4294901760
    %5180 = vmatprep.subr.mxu0 %v5179
    %v5181 = vand.u32 %v171, 4294901760
    %v5182 = vsub.f32 %v171, %v5181
    %v5183 = vand.u32 %v5182, 4294901760
    %5184 = vmatpush1.msra.mxu0 %v5183
    %v5185 = vand.u32 %v174, 4294901760
    %v5186 = vsub.f32 %v174, %v5185
    %v5187 = vand.u32 %v5186, 4294901760
    %5188 = vmatprep.subr.mxu0 %v5187
    %v5189 = vand.u32 %v173, 4294901760
    %v5190 = vsub.f32 %v173, %v5189
    %v5191 = vand.u32 %v5190, 4294901760
    %5192 = vmatpush1.msra.mxu0 %v5191
    %v5193 = vand.u32 %v176, 4294901760
    %v5194 = vsub.f32 %v176, %v5193
    %v5195 = vand.u32 %v5194, 4294901760
    %5196 = vmatprep.subr.mxu0 %v5195
    %v5197 = vand.u32 %v175, 4294901760
    %v5198 = vsub.f32 %v175, %v5197
    %v5199 = vand.u32 %v5198, 4294901760
    %5200 = vmatpush1.msra.mxu0 %v5199
    %v5201 = vand.u32 %v178, 4294901760
    %v5202 = vsub.f32 %v178, %v5201
    %v5203 = vand.u32 %v5202, 4294901760
    %5204 = vmatprep.subr.mxu0 %v5203
    %v5205 = vand.u32 %v177, 4294901760
    %v5206 = vsub.f32 %v177, %v5205
    %v5207 = vand.u32 %v5206, 4294901760
    %5208 = vmatpush1.msra.mxu0 %v5207
    %v5209 = vand.u32 %v180, 4294901760
    %v5210 = vsub.f32 %v180, %v5209
    %v5211 = vand.u32 %v5210, 4294901760
    %5212 = vmatprep.subr.mxu0 %v5211
    %v5213 = vand.u32 %v179, 4294901760
    %v5214 = vsub.f32 %v179, %v5213
    %v5215 = vand.u32 %v5214, 4294901760
    %5216 = vmatpush1.msra.mxu0 %v5215
    %v5217 = vand.u32 %v182, 4294901760
    %v5218 = vsub.f32 %v182, %v5217
    %v5219 = vand.u32 %v5218, 4294901760
    %5220 = vmatprep.subr.mxu0 %v5219
    %v5221 = vand.u32 %v181, 4294901760
    %v5222 = vsub.f32 %v181, %v5221
    %v5223 = vand.u32 %v5222, 4294901760
    %5224 = vmatpush1.msra.mxu0 %v5223
    %v5225 = vand.u32 %v184, 4294901760
    %v5226 = vsub.f32 %v184, %v5225
    %v5227 = vand.u32 %v5226, 4294901760
    %5228 = vmatprep.subr.mxu0 %v5227
    %v5229 = vand.u32 %v183, 4294901760
    %v5230 = vsub.f32 %v183, %v5229
    %v5231 = vand.u32 %v5230, 4294901760
    %5232 = vmatpush1.msra.mxu0 %v5231
    %v5233 = vand.u32 %v186, 4294901760
    %v5234 = vsub.f32 %v186, %v5233
    %v5235 = vand.u32 %v5234, 4294901760
    %5236 = vmatprep.subr.mxu0 %v5235
    %v5237 = vand.u32 %v185, 4294901760
    %v5238 = vsub.f32 %v185, %v5237
    %v5239 = vand.u32 %v5238, 4294901760
    %5240 = vmatpush1.msra.mxu0 %v5239
    %v5241 = vand.u32 %v188, 4294901760
    %v5242 = vsub.f32 %v188, %v5241
    %v5243 = vand.u32 %v5242, 4294901760
    %5244 = vmatprep.subr.mxu0 %v5243
    %v5245 = vand.u32 %v187, 4294901760
    %v5246 = vsub.f32 %v187, %v5245
    %v5247 = vand.u32 %v5246, 4294901760
    %5248 = vmatpush1.msra.mxu0 %v5247
    %v5249 = vand.u32 %v190, 4294901760
    %v5250 = vsub.f32 %v190, %v5249
    %v5251 = vand.u32 %v5250, 4294901760
    %5252 = vmatprep.subr.mxu0 %v5251
    %v5253 = vand.u32 %v189, 4294901760
    %v5254 = vsub.f32 %v189, %v5253
    %v5255 = vand.u32 %v5254, 4294901760
    %5256 = vmatpush1.msra.mxu0 %v5255
    %v5257 = vand.u32 %v192, 4294901760
    %v5258 = vsub.f32 %v192, %v5257
    %v5259 = vand.u32 %v5258, 4294901760
    %5260 = vmatprep.subr.mxu0 %v5259
    %v5261 = vand.u32 %v191, 4294901760
    %v5262 = vsub.f32 %v191, %v5261
    %v5263 = vand.u32 %v5262, 4294901760
    %5264 = vmatpush1.msra.mxu0 %v5263
    %v5265 = vand.u32 %v194, 4294901760
    %v5266 = vsub.f32 %v194, %v5265
    %v5267 = vand.u32 %v5266, 4294901760
    %5268 = vmatprep.subr.mxu0 %v5267
    %v5269 = vand.u32 %v193, 4294901760
    %v5270 = vsub.f32 %v193, %v5269
    %v5271 = vand.u32 %v5270, 4294901760
    %5272 = vmatpush1.msra.mxu0 %v5271
    %v5273 = vand.u32 %v196, 4294901760
    %v5274 = vsub.f32 %v196, %v5273
    %v5275 = vand.u32 %v5274, 4294901760
    %5276 = vmatprep.subr.mxu0 %v5275
    %v5277 = vand.u32 %v195, 4294901760
    %v5278 = vsub.f32 %v195, %v5277
    %v5279 = vand.u32 %v5278, 4294901760
    %5280 = vmatpush1.msra.mxu0 %v5279
    %v5281 = vand.u32 %v2858, 4294901760
    %5282 = vmatprep.mubr.f32.mxu0 %v5281
    %v5283 = vand.u32 %v2857, 4294901760
    %5284 = vmatmul.mubr.f32.gmra.mrb[0].mxu0 %v5283
    %v5285 = vpop.f32.mrb[0].mxu0
    %v5286 = vadd.f32 %v5021, %v5285
    %v5287 = vpop.f32.mrb[0].mxu0
    %v5288 = vadd.f32 %v5023, %v5287
    %5289 = vdwg.mxu0
    %v5290 = vand.u32 %v134, 4294901760
    %5291 = vmatprep.subr.mxu0 %v5290
    %v5292 = vand.u32 %v133, 4294901760
    %5293 = vmatpush1.msra.mxu0 %v5292
    %v5294 = vand.u32 %v136, 4294901760
    %5295 = vmatprep.subr.mxu0 %v5294
    %v5296 = vand.u32 %v135, 4294901760
    %5297 = vmatpush1.msra.mxu0 %v5296
    %v5298 = vand.u32 %v138, 4294901760
    %5299 = vmatprep.subr.mxu0 %v5298
    %v5300 = vand.u32 %v137, 4294901760
    %5301 = vmatpush1.msra.mxu0 %v5300
    %v5302 = vand.u32 %v140, 4294901760
    %5303 = vmatprep.subr.mxu0 %v5302
    %v5304 = vand.u32 %v139, 4294901760
    %5305 = vmatpush1.msra.mxu0 %v5304
    %v5306 = vand.u32 %v142, 4294901760
    %5307 = vmatprep.subr.mxu0 %v5306
    %v5308 = vand.u32 %v141, 4294901760
    %5309 = vmatpush1.msra.mxu0 %v5308
    %v5310 = vand.u32 %v144, 4294901760
    %5311 = vmatprep.subr.mxu0 %v5310
    %v5312 = vand.u32 %v143, 4294901760
    %5313 = vmatpush1.msra.mxu0 %v5312
    %v5314 = vand.u32 %v146, 4294901760
    %5315 = vmatprep.subr.mxu0 %v5314
    %v5316 = vand.u32 %v145, 4294901760
    %5317 = vmatpush1.msra.mxu0 %v5316
    %v5318 = vand.u32 %v148, 4294901760
    %5319 = vmatprep.subr.mxu0 %v5318
    %v5320 = vand.u32 %v147, 4294901760
    %5321 = vmatpush1.msra.mxu0 %v5320
    %v5322 = vand.u32 %v150, 4294901760
    %5323 = vmatprep.subr.mxu0 %v5322
    %v5324 = vand.u32 %v149, 4294901760
    %5325 = vmatpush1.msra.mxu0 %v5324
    %v5326 = vand.u32 %v152, 4294901760
    %5327 = vmatprep.subr.mxu0 %v5326
    %v5328 = vand.u32 %v151, 4294901760
    %5329 = vmatpush1.msra.mxu0 %v5328
    %v5330 = vand.u32 %v154, 4294901760
    %5331 = vmatprep.subr.mxu0 %v5330
    %v5332 = vand.u32 %v153, 4294901760
    %5333 = vmatpush1.msra.mxu0 %v5332
    %v5334 = vand.u32 %v156, 4294901760
    %5335 = vmatprep.subr.mxu0 %v5334
    %v5336 = vand.u32 %v155, 4294901760
    %5337 = vmatpush1.msra.mxu0 %v5336
    %v5338 = vand.u32 %v158, 4294901760
    %5339 = vmatprep.subr.mxu0 %v5338
    %v5340 = vand.u32 %v157, 4294901760
    %5341 = vmatpush1.msra.mxu0 %v5340
    %v5342 = vand.u32 %v160, 4294901760
    %5343 = vmatprep.subr.mxu0 %v5342
    %v5344 = vand.u32 %v159, 4294901760
    %5345 = vmatpush1.msra.mxu0 %v5344
    %v5346 = vand.u32 %v162, 4294901760
    %5347 = vmatprep.subr.mxu0 %v5346
    %v5348 = vand.u32 %v161, 4294901760
    %5349 = vmatpush1.msra.mxu0 %v5348
    %v5350 = vand.u32 %v164, 4294901760
    %5351 = vmatprep.subr.mxu0 %v5350
    %v5352 = vand.u32 %v163, 4294901760
    %5353 = vmatpush1.msra.mxu0 %v5352
    %v5354 = vand.u32 %v166, 4294901760
    %5355 = vmatprep.subr.mxu0 %v5354
    %v5356 = vand.u32 %v165, 4294901760
    %5357 = vmatpush1.msra.mxu0 %v5356
    %v5358 = vand.u32 %v168, 4294901760
    %5359 = vmatprep.subr.mxu0 %v5358
    %v5360 = vand.u32 %v167, 4294901760
    %5361 = vmatpush1.msra.mxu0 %v5360
    %v5362 = vand.u32 %v170, 4294901760
    %5363 = vmatprep.subr.mxu0 %v5362
    %v5364 = vand.u32 %v169, 4294901760
    %5365 = vmatpush1.msra.mxu0 %v5364
    %v5366 = vand.u32 %v172, 4294901760
    %5367 = vmatprep.subr.mxu0 %v5366
    %v5368 = vand.u32 %v171, 4294901760
    %5369 = vmatpush1.msra.mxu0 %v5368
    %v5370 = vand.u32 %v174, 4294901760
    %5371 = vmatprep.subr.mxu0 %v5370
    %v5372 = vand.u32 %v173, 4294901760
    %5373 = vmatpush1.msra.mxu0 %v5372
    %v5374 = vand.u32 %v176, 4294901760
    %5375 = vmatprep.subr.mxu0 %v5374
    %v5376 = vand.u32 %v175, 4294901760
    %5377 = vmatpush1.msra.mxu0 %v5376
    %v5378 = vand.u32 %v178, 4294901760
    %5379 = vmatprep.subr.mxu0 %v5378
    %v5380 = vand.u32 %v177, 4294901760
    %5381 = vmatpush1.msra.mxu0 %v5380
    %v5382 = vand.u32 %v180, 4294901760
    %5383 = vmatprep.subr.mxu0 %v5382
    %v5384 = vand.u32 %v179, 4294901760
    %5385 = vmatpush1.msra.mxu0 %v5384
    %v5386 = vand.u32 %v182, 4294901760
    %5387 = vmatprep.subr.mxu0 %v5386
    %v5388 = vand.u32 %v181, 4294901760
    %5389 = vmatpush1.msra.mxu0 %v5388
    %v5390 = vand.u32 %v184, 4294901760
    %5391 = vmatprep.subr.mxu0 %v5390
    %v5392 = vand.u32 %v183, 4294901760
    %5393 = vmatpush1.msra.mxu0 %v5392
    %v5394 = vand.u32 %v186, 4294901760
    %5395 = vmatprep.subr.mxu0 %v5394
    %v5396 = vand.u32 %v185, 4294901760
    %5397 = vmatpush1.msra.mxu0 %v5396
    %v5398 = vand.u32 %v188, 4294901760
    %5399 = vmatprep.subr.mxu0 %v5398
    %v5400 = vand.u32 %v187, 4294901760
    %5401 = vmatpush1.msra.mxu0 %v5400
    %v5402 = vand.u32 %v190, 4294901760
    %5403 = vmatprep.subr.mxu0 %v5402
    %v5404 = vand.u32 %v189, 4294901760
    %5405 = vmatpush1.msra.mxu0 %v5404
    %v5406 = vand.u32 %v192, 4294901760
    %5407 = vmatprep.subr.mxu0 %v5406
    %v5408 = vand.u32 %v191, 4294901760
    %5409 = vmatpush1.msra.mxu0 %v5408
    %v5410 = vand.u32 %v194, 4294901760
    %5411 = vmatprep.subr.mxu0 %v5410
    %v5412 = vand.u32 %v193, 4294901760
    %5413 = vmatpush1.msra.mxu0 %v5412
    %v5414 = vand.u32 %v196, 4294901760
    %5415 = vmatprep.subr.mxu0 %v5414
    %v5416 = vand.u32 %v195, 4294901760
    %5417 = vmatpush1.msra.mxu0 %v5416
    %v5418 = vand.u32 %v2858, 4294901760
    %5419 = vmatprep.mubr.f32.mxu0 %v5418
    %v5420 = vand.u32 %v2857, 4294901760
    %5421 = vmatmul.mubr.f32.gmra.mrb[0].mxu0 %v5420
    %v5422 = vpop.f32.mrb[0].mxu0
    %v5423 = vadd.f32 %v5286, %v5422
    %v5424 = vpop.f32.mrb[0].mxu0
    %v5425 = vadd.f32 %v5288, %v5424
    %5426 = vdwg.mxu0
    %v5427 = vmul.f32 %v4139, %v4139
    %v5428 = vmul.f32 %v4141, %v4141
    %v5429 = vmul.f32 %v5423, %v5423
    %v5430 = vmul.f32 %v5425, %v5425
    %v5431 = vadd.f32 %v5427, %v5429
    %v5432 = vadd.f32 %v5428, %v5430
    %v5433 = vrsqrt.pop %v5431
    %v5434 = vmul.f32 %v5431, %v5433
    %vm5435 = vcmp.eq.f32.partialorder %v5431, inf
    %v5436 = vsel %vm5435, %v5431, %v5434
    %vm5437 = vcmp.eq.f32.partialorder %v5431, 0.0
    %v5438 = vand.u32 %v5431, 2147483648
    %v5439 = vsel %vm5437, %v5438, %v5436
    %v5440 = vrsqrt.pop %v5432
    %v5441 = vmul.f32 %v5432, %v5440
    %vm5442 = vcmp.eq.f32.partialorder %v5432, inf
    %v5443 = vsel %vm5442, %v5432, %v5441
    %vm5444 = vcmp.eq.f32.partialorder %v5432, 0.0
    %v5445 = vand.u32 %v5432, 2147483648
    %v5446 = vsel %vm5444, %v5445, %v5443
    %v5447 = vand.u32 2147483647, %v5423
    %v5448 = vand.u32 2147483647, %v5425
    %v5449 = vand.u32 2147483647, %v4139
    %v5450 = vand.u32 2147483647, %v4141
    %v5451 = vmax.f32 %v5449, %v5447
    %v5452 = vmax.f32 %v5450, %v5448
    %v5453 = vmin.f32 %v5449, %v5447
    %v5454 = vmin.f32 %v5450, %v5448
    %v5455 = vmax.f32 %v5451, 1e-30
    %v5456 = vmax.f32 %v5452, 1e-30
    %v5457 = vrcp.pop %v5455
    %v5458 = vmul.f32 %v5453, %v5457
    %v5459 = vrcp.pop %v5456
    %v5460 = vmul.f32 %v5454, %v5459
    %vm5461 = vcmp.gt.f32.partialorder %v5458, 0.41421357
    %vm5462 = vcmp.gt.f32.partialorder %v5460, 0.41421357
    %v5463 = vsub.f32 %v5458, 1.0
    %v5464 = vsub.f32 %v5460, 1.0
    %v5465 = vadd.f32 %v5458, 1.0
    %v5466 = vadd.f32 %v5460, 1.0
    %v5467 = vrcp.pop %v5465
    %v5468 = vmul.f32 %v5463, %v5467
    %v5469 = vrcp.pop %v5466
    %v5470 = vmul.f32 %v5464, %v5469
    %v5471 = vsel %vm5461, %v5468, %v5458
    %v5472 = vsel %vm5462, %v5470, %v5460
    %v5473 = vsel %vm5461, 0.7853982, 0.0
    %v5474 = vsel %vm5462, 0.7853982, 0.0
    %v5475 = vmul.f32 %v5471, %v5471
    %v5476 = vmul.f32 %v5472, %v5472
    %v5477 = vmul.f32 %v5475, 0.080537446
    %v5478 = vmul.f32 %v5476, 0.080537446
    %v5479 = vsub.f32 %v5477, 0.13877685
    %v5480 = vsub.f32 %v5478, 0.13877685
    %v5481 = vmul.f32 %v5479, %v5475
    %v5482 = vmul.f32 %v5480, %v5476
    %v5483 = vadd.f32 %v5481, 0.19977711
    %v5484 = vadd.f32 %v5482, 0.19977711
    %v5485 = vmul.f32 %v5483, %v5475
    %v5486 = vmul.f32 %v5484, %v5476
    %v5487 = vsub.f32 %v5485, 0.3333295
    %v5488 = vsub.f32 %v5486, 0.3333295
    %v5489 = vmul.f32 %v5487, %v5475
    %v5490 = vmul.f32 %v5488, %v5476
    %v5491 = vmul.f32 %v5489, %v5471
    %v5492 = vmul.f32 %v5490, %v5472
    %v5493 = vadd.f32 %v5491, %v5471
    %v5494 = vadd.f32 %v5492, %v5472
    %v5495 = vadd.f32 %v5473, %v5493
    %v5496 = vadd.f32 %v5474, %v5494
    %vm5497 = vcmp.gt.f32.partialorder %v5447, %v5449
    %vm5498 = vcmp.gt.f32.partialorder %v5448, %v5450
    %v5499 = vsub.f32 1.5707964, %v5495
    %v5500 = vsub.f32 1.5707964, %v5496
    %v5501 = vsel %vm5497, %v5499, %v5495
    %v5502 = vsel %vm5498, %v5500, %v5496
    %vm5503 = vcmp.lt.f32.partialorder %v4139, 0.0
    %vm5504 = vcmp.lt.f32.partialorder %v4141, 0.0
    %v5505 = vsub.f32 3.1415927, %v5501
    %v5506 = vsub.f32 3.1415927, %v5502
    %v5507 = vsel %vm5503, %v5505, %v5501
    %v5508 = vsel %vm5504, %v5506, %v5502
    %vm5509 = vcmp.lt.f32.partialorder %v5423, 0.0
    %vm5510 = vcmp.lt.f32.partialorder %v5425, 0.0
    %v5511 = vsub.f32 0.0, %v5507
    %v5512 = vsub.f32 0.0, %v5508
    %v5513 = vsel %vm5509, %v5511, %v5507
    %v5514 = vsel %vm5510, %v5512, %v5508
    %v5515 = vsub.f32 %v5439, %v5513
    %v5516 = vsub.f32 %v5446, %v5514
    %v5517 = vsub.f32 %v2855, %v5515
    %v5518 = vsub.f32 %v2856, %v5516
    %v5519 = vand.u32 2147483647, %v5517
    %v5520 = vand.u32 2147483647, %v5518
    %5521 = vst [vmem:[#allocation10] sm:$0xff] %v5519
    %5522 = vst [vmem:[#allocation10 + $0x8] sm:$0xff] %v5520
    // Predicated region
    $region34: #{tpu_custom_call.1} parent=1 // pred_check
      _
    $region35: #{tpu_custom_call.1} parent=1 // pred_check_branch
      %5524 = sbr.rel (0) target = $region37
    $region36: #{tpu_custom_call.1} parent=1 // pred_region
      %s5526 = ssub.s32 256, 256
      %5527 = vsyncadd [#allocation4], %s5526
      %s5529 = sshll.u32 [#allocation10], 4
      %s5530 = int_to_ptr.vmem [resolvable:$true] %s5529
      %5532 = dma.vmem_to_hbm [thread:$0]  %s5530, 256, %s4, [#allocation4]
    $region37: #{tpu_custom_call.1} parent=1 // pred_fallthru
      _
    // Predicated region
    $region38: #{tpu_custom_call.1} parent=1 // pred_check
      _
    $region39: #{tpu_custom_call.1} parent=1 // pred_check_branch
      %5534 = sbr.rel (0) target = $region41
    $region40: #{tpu_custom_call.1} parent=1 // pred_region
      %5535 = dma.done [#allocation4], 256
    $region41: #{tpu_custom_call.1} parent=1 // pred_fallthru
      _
    %5536 = vsyncpa [#allocation3], 1
    %5537 = vsyncpa [#allocation6], 1
    %5538 = vsyncpa [#allocation9], 1
    %5539 = vsyncpa [#allocation4], 1

</llo_original>
